<compile_context>
chip_gen: v5e
topology: v5e:2x2
jax: 0.10.0
libtpu: 0.0.40
codegen_flags: <defaults>
</compile_context>

<pallas_src>
import functools

import jax
import jax.numpy as jnp
from jax.experimental import pallas as pl
from jax.experimental.pallas import tpu as pltpu


# ---------------------------------------------------------------------------
# Fused ViT kernel: grid = (batch_tile ["parallel"], depth ["arbitrary"])
# ---------------------------------------------------------------------------
def _vit_fused_kernel(
    # inputs ----------------------------------------------------------------
    xp_ref, pw_ref, pb_ref, cls_ref, pos_ref,
    ln1g_ref, ln1b_ref, wqkv_ref, bqkv_ref, wproj_ref, bproj_ref,
    ln2g_ref, ln2b_ref, wfc1_ref, bfc1_ref, wfc2_ref, bfc2_ref,
    ng_ref, nb_ref, hw_ref, hb_ref,
    # outputs ---------------------------------------------------------------
    attn_ref, logits_ref,
    # scratch ---------------------------------------------------------------
    x_res,
    # statics ---------------------------------------------------------------
    *, BT, N, D, num_heads, n_pad,
):
    d = pl.program_id(1)
    depth = pl.num_programs(1)
    H = num_heads
    hd = D // H
    NP = N - 1
    M = BT * N
    scale = float(hd) ** -0.5  # applied in-kernel (NOT folded into weights)

    def layernorm(z, g, b):
        mu = jnp.mean(z, axis=-1, keepdims=True)
        var = jnp.mean(jnp.square(z - mu), axis=-1, keepdims=True)
        return (z - mu) * jax.lax.rsqrt(var + 1e-5) * g + b

    # ------------- prologue (depth step 0): patch embed + cls + pos --------
    @pl.when(d == 0)
    def _prologue():
        # Conv1d(kernel=stride=patch_size) == GEMM over flattened (t, f) rows.
        xp = xp_ref[...].reshape(BT * NP, -1)                       # bf16
        emb = jnp.dot(xp, pw_ref[...],
                      preferred_element_type=jnp.float32) + pb_ref[...]
        emb = emb.reshape(BT, NP, D) + pos_ref[1:, :]               # bcast over BT
        cls_row = (cls_ref[...] + pos_ref[0:1, :]).reshape(1, 1, D)
        x_res[:, 0:1, :] = jnp.broadcast_to(cls_row, (BT, 1, D))    # whole-tile
        x_res[:, 1:, :] = emb                                       # whole-tile

    # ------------- transformer block at depth d ------------------------------
    x = x_res[...].reshape(M, D)                                    # f32 residual

    # ---- attention branch ----
    xn = layernorm(x, ln1g_ref[0], ln1b_ref[0]).astype(jnp.bfloat16)
    qkv = jnp.dot(xn, wqkv_ref[0],
                  preferred_element_type=jnp.float32) + bqkv_ref[0]  # [M, 3D]

    q_all = (qkv[:, 0:D] * scale).astype(jnp.bfloat16)
    k_all = qkv[:, D:2 * D].astype(jnp.bfloat16)
    v_all = qkv[:, 2 * D:3 * D].astype(jnp.bfloat16)

    o_heads = []
    for h in range(H):  # few heads; each iteration is one batched einsum
        sl = slice(h * hd, (h + 1) * hd)
        qh = q_all[:, sl].reshape(BT, N, hd)
        kh = k_all[:, sl].reshape(BT, N, hd)
        vh = v_all[:, sl].reshape(BT, N, hd)

        s = jnp.einsum('bqd,bkd->bqk', qh, kh,
                       preferred_element_type=jnp.float32)           # [BT, N, N]
        s = s - jnp.max(s, axis=-1, keepdims=True)
        e = jnp.exp(s)
        p = e / jnp.sum(e, axis=-1, keepdims=True)  # exact softmax (exposed output)

        # lane-pad the stored attention map so the HBM store is unmasked
        if n_pad > N:
            p_out = jnp.concatenate(
                [p, jnp.zeros((BT, N, n_pad - N), jnp.float32)], axis=-1)
        else:
            p_out = p
        attn_ref[h] = p_out

        o = jnp.einsum('bqk,bkd->bqd', p.astype(jnp.bfloat16), vh,
                       preferred_element_type=jnp.float32)           # [BT, N, hd]
        o_heads.append(o.reshape(M, hd))

    ao = jnp.concatenate(o_heads, axis=-1).astype(jnp.bfloat16)      # [M, D]
    y = jnp.dot(ao, wproj_ref[0],
                preferred_element_type=jnp.float32) + bproj_ref[0]
    x = x + y                                                        # residual 1

    # ---- MLP branch ----
    xn2 = layernorm(x, ln2g_ref[0], ln2b_ref[0]).astype(jnp.bfloat16)
    h1 = jnp.dot(xn2, wfc1_ref[0],
                 preferred_element_type=jnp.float32) + bfc1_ref[0]
    h1 = jax.nn.gelu(h1, approximate=True)                           # tanh GELU -> EUP
    h2 = jnp.dot(h1.astype(jnp.bfloat16), wfc2_ref[0],
                 preferred_element_type=jnp.float32) + bfc2_ref[0]
    x = x + h2                                                       # residual 2

    x_res[...] = x.reshape(BT, N, D)            # residual stream stays in VMEM

    # ------------- epilogue (last depth step): final LN + head --------------
    @pl.when(d == depth - 1)
    def _epilogue():
        cls_tok = x.reshape(BT, N, D)[:, 0:1, :].reshape(BT, D)
        xn3 = layernorm(cls_tok, ng_ref[...], nb_ref[...])
        logits = jnp.dot(xn3.astype(jnp.bfloat16), hw_ref[...],
                         preferred_element_type=jnp.float32) + hb_ref[...]
        logits_ref[...] = logits.reshape(BT, 1, -1).astype(logits_ref.dtype)


# ---------------------------------------------------------------------------
# Parameter construction (deterministic, mirrors the PyTorch __init__ shapes)
# ---------------------------------------------------------------------------
def init_params(key, *, seq_len, num_features, patch_size, embed_dim,
                depth, num_heads, mlp_ratio, num_classes):
    D = embed_dim
    Hd = int(D * mlp_ratio)
    NP = seq_len // patch_size
    N = NP + 1
    Cp = ((num_classes + 127) // 128) * 128      # lane-padded classifier width

    keys = iter(jax.random.split(key, 4 + 4 * depth))

    def tn(shape):   # ~ trunc_normal_(std=0.02)
        return 0.02 * jax.random.normal(next(keys), shape, jnp.float32)

    # Conv1d weight [D, F, ps] -> GEMM weight [ps*F, D] with rows in (t, f) order
    conv_w = tn((D, num_features, patch_size))
    patch_w = jnp.transpose(conv_w, (2, 1, 0)).reshape(patch_size * num_features, D)

    cls_tok = tn((1, D))
    pos_emb = tn((N, D))

    wqkv, wproj, wfc1, wfc2 = [], [], [], []
    for _ in range(depth):
        wqkv.append(tn((D, 3 * D)))
        wproj.append(tn((D, D)))
        wfc1.append(tn((D, Hd)))
        wfc2.append(tn((Hd, D)))

    head_w = tn((D, num_classes))
    head_w = jnp.pad(head_w, ((0, 0), (0, Cp - num_classes)))

    return dict(
        patch_w=patch_w.astype(jnp.bfloat16),
        patch_b=jnp.zeros((1, D), jnp.float32),
        cls=cls_tok,
        pos=pos_emb,
        ln1_g=jnp.ones((depth, 1, D), jnp.float32),
        ln1_b=jnp.zeros((depth, 1, D), jnp.float32),
        wqkv=jnp.stack(wqkv).astype(jnp.bfloat16),
        bqkv=jnp.zeros((depth, 1, 3 * D), jnp.float32),
        wproj=jnp.stack(wproj).astype(jnp.bfloat16),
        bproj=jnp.zeros((depth, 1, D), jnp.float32),
        ln2_g=jnp.ones((depth, 1, D), jnp.float32),
        ln2_b=jnp.zeros((depth, 1, D), jnp.float32),
        wfc1=jnp.stack(wfc1).astype(jnp.bfloat16),
        bfc1=jnp.zeros((depth, 1, Hd), jnp.float32),
        wfc2=jnp.stack(wfc2).astype(jnp.bfloat16),
        bfc2=jnp.zeros((depth, 1, D), jnp.float32),
        norm_g=jnp.ones((1, D), jnp.float32),
        norm_b=jnp.zeros((1, D), jnp.float32),
        head_w=head_w.astype(jnp.bfloat16),      # bf16 classifier GEMM operand
        head_b=jnp.zeros((1, Cp), jnp.float32),
    )


# ---------------------------------------------------------------------------
# Forward pass wrapper
# ---------------------------------------------------------------------------
def timeseries_vit_forward(x, params, *, patch_size, num_heads, num_classes):
    B, T, F = x.shape
    ps = patch_size
    NP = T // ps
    N = NP + 1
    D = params["pos"].shape[1]
    depth = params["wqkv"].shape[0]
    Hd = params["wfc1"].shape[2]
    Cp = params["head_w"].shape[1]
    H = num_heads
    KP = ps * F
    n_pad = ((N + 127) // 128) * 128

    # batch tiling: 2 tiles when possible (v7x 2-TC megacore lever; also caps
    # per-step VMEM at realistic shapes), otherwise a single tile.
    bt_count = 2 if (B % 2 == 0 and B >= 2) else 1
    BT = B // bt_count

    # stride==kernel Conv1d input flattening: [B, T, F] -> [B, NP, ps*F] ((t,f) order)
    xp = x.reshape(B, NP, KP).astype(jnp.bfloat16)

    kernel = functools.partial(_vit_fused_kernel, BT=BT, N=N, D=D,
                               num_heads=H, n_pad=n_pad)

    args = (xp, params["patch_w"], params["patch_b"], params["cls"], params["pos"],
            params["ln1_g"], params["ln1_b"], params["wqkv"], params["bqkv"],
            params["wproj"], params["bproj"], params["ln2_g"], params["ln2_b"],
            params["wfc1"], params["bfc1"], params["wfc2"], params["bfc2"],
            params["norm_g"], params["norm_b"], params["head_w"], params["head_b"])

    out_shape = (
        jax.ShapeDtypeStruct((depth * H, B, N, n_pad), jnp.float32),  # attn maps
        jax.ShapeDtypeStruct((B, 1, Cp), jnp.float32),                # lane-padded logits
    )
    scratch_shapes = [pltpu.VMEM((BT, N, D), jnp.float32)]            # residual stream

    # advisory cost estimate for XLA's scheduler
    M_all = B * N
    hd = D // H
    flops_block = (2 * M_all * D * 3 * D + 2 * 2 * B * H * N * N * hd
                   + 2 * M_all * D * D + 2 * 2 * M_all * D * Hd)
    flops = depth * flops_block + 2 * B * NP * KP * D + 2 * B * D * Cp
    transcendentals = depth * (B * H * N * N + M_all * Hd)
    bytes_accessed = int(sum(int(a.size) * a.dtype.itemsize for a in args)
                         + depth * H * B * N * n_pad * 4 + B * Cp * 4)

    def run(single_buffer_constants):
        const_kwargs = (dict(pipeline_mode=pl.Buffered(1))
                        if single_buffer_constants else {})

        def rep(shape):     # constant-index inputs: fetched once, single-buffered
            zeros = (0,) * len(shape)
            return pl.BlockSpec(shape, lambda bt, d: zeros, **const_kwargs)

        def per_depth(tail):   # per-layer stacks, selected by the depth index
            zeros = (0,) * len(tail)
            return pl.BlockSpec((1,) + tail, lambda bt, d: (d,) + zeros)

        in_specs = [
            pl.BlockSpec((BT, NP, KP), lambda bt, d: (bt, 0, 0)),   # patch input
            rep((KP, D)), rep((1, D)),                              # patch W / b
            rep((1, D)), rep((N, D)),                               # cls, pos
            per_depth((1, D)), per_depth((1, D)),                   # ln1 g/b
            per_depth((D, 3 * D)), per_depth((1, 3 * D)),           # qkv W/b
            per_depth((D, D)), per_depth((1, D)),                   # proj W/b
            per_depth((1, D)), per_depth((1, D)),                   # ln2 g/b
            per_depth((D, Hd)), per_depth((1, Hd)),                 # fc1 W/b
            per_depth((Hd, D)), per_depth((1, D)),                  # fc2 W/b
            rep((1, D)), rep((1, D)),                               # final norm g/b
            rep((D, Cp)), rep((1, Cp)),                             # head W/b
        ]
        out_specs = (
            pl.BlockSpec((H, BT, N, n_pad), lambda bt, d: (d, bt, 0, 0)),
            pl.BlockSpec((BT, 1, Cp), lambda bt, d: (bt, 0, 0)),
        )
        return pl.pallas_call(
            kernel,
            out_shape=out_shape,
            grid=(bt_count, depth),
            in_specs=in_specs,
            out_specs=out_specs,
            scratch_shapes=scratch_shapes,
            compiler_params=pltpu.CompilerParams(
                dimension_semantics=("parallel", "arbitrary"),
                vmem_limit_bytes=64 * 1024 * 1024),
            cost_estimate=pl.CostEstimate(
                flops=int(flops), transcendentals=int(transcendentals),
                bytes_accessed=int(bytes_accessed)),
        )(*args)

    try:
        attn_all, logits_pad = run(True)
    except Exception:
        # pl.Buffered(1) single-buffering unavailable -> default double-buffering
        attn_all, logits_pad = run(False)

    logits = logits_pad[:, 0, :num_classes]
    attn = attn_all.reshape(depth, H, B, N, n_pad)[..., :N]
    attn = jnp.transpose(attn, (0, 2, 1, 3, 4))            # [depth, B, H, N, N]
    attn_weights_list = [attn[i] for i in range(depth)]
    return logits, attn_weights_list


# ---------------------------------------------------------------------------
# Pure-JAX reference (f32, exact-erf GELU) for numerical validation
# ---------------------------------------------------------------------------
def _forward_reference(x, params, *, patch_size, num_heads, num_classes):
    B, T, F = x.shape
    ps = patch_size
    NP = T // ps
    N = NP + 1
    D = params["pos"].shape[1]
    H = num_heads
    hd = D // H
    depth = params["wqkv"].shape[0]
    scale = hd ** -0.5
    f32 = lambda a: jnp.asarray(a, jnp.float32)

    def ln(z, g, b):
        mu = z.mean(-1, keepdims=True)
        var = jnp.mean(jnp.square(z - mu), -1, keepdims=True)
        return (z - mu) * jax.lax.rsqrt(var + 1e-5) * g + b

    xp = x.reshape(B, NP, ps * F)
    emb = xp @ f32(params["patch_w"]) + params["patch_b"]
    cls = jnp.broadcast_to(params["cls"][None], (B, 1, D))
    h = jnp.concatenate([cls, emb], axis=1) + params["pos"][None]

    attn_list = []
    for d in range(depth):
        xn = ln(h, params["ln1_g"][d], params["ln1_b"][d])
        qkv = xn @ f32(params["wqkv"][d]) + params["bqkv"][d]
        q, k, v = jnp.split(qkv, 3, axis=-1)
        heads = lambda t: t.reshape(B, N, H, hd).transpose(0, 2, 1, 3)
        q, k, v = heads(q) * scale, heads(k), heads(v)
        s = q @ jnp.swapaxes(k, -1, -2)
        p = jax.nn.softmax(s, axis=-1)
        attn_list.append(p)
        o = (p @ v).transpose(0, 2, 1, 3).reshape(B, N, D)
        h = h + (o @ f32(params["wproj"][d]) + params["bproj"][d])
        xn2 = ln(h, params["ln2_g"][d], params["ln2_b"][d])
        m = xn2 @ f32(params["wfc1"][d]) + params["bfc1"][d]
        m = jax.nn.gelu(m, approximate=False)     # exact erf GELU (PyTorch nn.GELU)
        h = h + (m @ f32(params["wfc2"][d]) + params["bfc2"][d])

    cls_out = ln(h[:, 0], params["norm_g"], params["norm_b"])
    logits = cls_out @ f32(params["head_w"]) + params["head_b"]
    return logits[:, :num_classes], attn_list


# ---------------------------------------------------------------------------
if __name__ == "__main__":
    # small, module-consistent shapes
    B, T, F = 2, 16, 4
    patch_size = 4
    embed_dim = 32
    depth = 2
    num_heads = 4
    mlp_ratio = 4.0
    num_classes = 10

    key = jax.random.PRNGKey(0)
    kx, kp = jax.random.split(key)
    x = jax.random.normal(kx, (B, T, F), jnp.float32)

    params = init_params(
        kp, seq_len=T, num_features=F, patch_size=patch_size,
        embed_dim=embed_dim, depth=depth, num_heads=num_heads,
        mlp_ratio=mlp_ratio, num_classes=num_classes)

    logits, attn_ws = timeseries_vit_forward(
        x, params, patch_size=patch_size, num_heads=num_heads,
        num_classes=num_classes)
    logits = jax.block_until_ready(logits)
    attn_ws = [jax.block_until_ready(w) for w in attn_ws]

    N = T // patch_size + 1
    assert logits.shape == (B, num_classes)
    assert len(attn_ws) == depth
    assert all(w.shape == (B, num_heads, N, N) for w in attn_ws)
    assert bool(jnp.all(jnp.isfinite(logits)))

    # numerical check against the pure-JAX reference (bf16 matmuls + tanh GELU
    # in the kernel -> loose tolerance)
    ref_logits, ref_attn = _forward_reference(
        x, params, patch_size=patch_size, num_heads=num_heads,
        num_classes=num_classes)
    assert bool(jnp.max(jnp.abs(logits - ref_logits)) < 2e-2)
    for w, rw in zip(attn_ws, ref_attn):
        assert bool(jnp.max(jnp.abs(w - rw)) < 2e-2)

    print("KERNEL_OK")
</pallas_src>

<mosaic_0001>
module attributes {stable_mosaic.version = 11 : i64} {
  func.func @_vit_fused_kernel(%arg0: i32, %arg1: i32, %arg2: memref<1x4x16xbf16, #tpu.memory_space<vmem>>, %arg3: memref<16x32xbf16, #tpu.memory_space<vmem>>, %arg4: memref<1x32xf32, #tpu.memory_space<vmem>>, %arg5: memref<1x32xf32, #tpu.memory_space<vmem>>, %arg6: memref<5x32xf32, #tpu.memory_space<vmem>>, %arg7: memref<1x1x32xf32, #tpu.memory_space<vmem>>, %arg8: memref<1x1x32xf32, #tpu.memory_space<vmem>>, %arg9: memref<1x32x96xbf16, #tpu.memory_space<vmem>>, %arg10: memref<1x1x96xf32, #tpu.memory_space<vmem>>, %arg11: memref<1x32x32xbf16, #tpu.memory_space<vmem>>, %arg12: memref<1x1x32xf32, #tpu.memory_space<vmem>>, %arg13: memref<1x1x32xf32, #tpu.memory_space<vmem>>, %arg14: memref<1x1x32xf32, #tpu.memory_space<vmem>>, %arg15: memref<1x32x128xbf16, #tpu.memory_space<vmem>>, %arg16: memref<1x1x128xf32, #tpu.memory_space<vmem>>, %arg17: memref<1x128x32xbf16, #tpu.memory_space<vmem>>, %arg18: memref<1x1x32xf32, #tpu.memory_space<vmem>>, %arg19: memref<1x32xf32, #tpu.memory_space<vmem>>, %arg20: memref<1x32xf32, #tpu.memory_space<vmem>>, %arg21: memref<32x128xbf16, #tpu.memory_space<vmem>>, %arg22: memref<1x128xf32, #tpu.memory_space<vmem>>, %arg23: memref<4x1x5x128xf32, #tpu.memory_space<vmem>>, %arg24: memref<1x1x128xf32, #tpu.memory_space<vmem>>, %arg25: memref<1x5x32xf32, #tpu.memory_space<vmem>>) attributes {dimension_semantics = [#tpu.dimension_semantics<parallel>, #tpu.dimension_semantics<arbitrary>], iteration_bounds = array<i64: 2, 2>, scalar_prefetch = 0 : i64, scratch_operands = 1 : i64, tpu.core_type = #tpu.core_type<tc>, window_params = [{transform_indices = @transform_0, window_bounds = array<i64: 1, 4, 16>}, {pipeline_mode = #tpu.pipeline_mode<synchronous>, transform_indices = @transform_1, window_bounds = array<i64: 16, 32>}, {pipeline_mode = #tpu.pipeline_mode<synchronous>, transform_indices = @transform_2, window_bounds = array<i64: 1, 32>}, {pipeline_mode = #tpu.pipeline_mode<synchronous>, transform_indices = @transform_3, window_bounds = array<i64: 1, 32>}, {pipeline_mode = #tpu.pipeline_mode<synchronous>, transform_indices = @transform_4, window_bounds = array<i64: 5, 32>}, {transform_indices = @transform_5, window_bounds = array<i64: 1, 1, 32>}, {transform_indices = @transform_6, window_bounds = array<i64: 1, 1, 32>}, {transform_indices = @transform_7, window_bounds = array<i64: 1, 32, 96>}, {transform_indices = @transform_8, window_bounds = array<i64: 1, 1, 96>}, {transform_indices = @transform_9, window_bounds = array<i64: 1, 32, 32>}, {transform_indices = @transform_10, window_bounds = array<i64: 1, 1, 32>}, {transform_indices = @transform_11, window_bounds = array<i64: 1, 1, 32>}, {transform_indices = @transform_12, window_bounds = array<i64: 1, 1, 32>}, {transform_indices = @transform_13, window_bounds = array<i64: 1, 32, 128>}, {transform_indices = @transform_14, window_bounds = array<i64: 1, 1, 128>}, {transform_indices = @transform_15, window_bounds = array<i64: 1, 128, 32>}, {transform_indices = @transform_16, window_bounds = array<i64: 1, 1, 32>}, {pipeline_mode = #tpu.pipeline_mode<synchronous>, transform_indices = @transform_17, window_bounds = array<i64: 1, 32>}, {pipeline_mode = #tpu.pipeline_mode<synchronous>, transform_indices = @transform_18, window_bounds = array<i64: 1, 32>}, {pipeline_mode = #tpu.pipeline_mode<synchronous>, transform_indices = @transform_19, window_bounds = array<i64: 32, 128>}, {pipeline_mode = #tpu.pipeline_mode<synchronous>, transform_indices = @transform_20, window_bounds = array<i64: 1, 128>}, {transform_indices = @transform_21, window_bounds = array<i64: 4, 1, 5, 128>}, {transform_indices = @transform_22, window_bounds = array<i64: 1, 1, 128>}]} {
    %c0_i32 = arith.constant 0 : i32
    %0 = arith.cmpi eq, %arg1, %c0_i32 : i32
    %1 = arith.extui %0 : i1 to i32
    %c0_i32_0 = arith.constant 0 : i32
    %2 = arith.cmpi ne, %1, %c0_i32_0 : i32
    scf.if %2 {
      %c0_94 = arith.constant 0 : index
      %c0_95 = arith.constant 0 : index
      %c0_96 = arith.constant 0 : index
      %214 = vector.load %arg2[%c0_94, %c0_95, %c0_96] : memref<1x4x16xbf16, #tpu.memory_space<vmem>>, vector<1x4x16xbf16>
      %215 = vector.shape_cast %214 : vector<1x4x16xbf16> to vector<4x16xbf16>
      %c0_97 = arith.constant 0 : index
      %c0_98 = arith.constant 0 : index
      %216 = vector.load %arg3[%c0_97, %c0_98] : memref<16x32xbf16, #tpu.memory_space<vmem>>, vector<16x32xbf16>
      %cst_99 = arith.constant dense<0.000000e+00> : vector<4x32xf32>
      %217 = tpu.matmul %215, %216, %cst_99 {dimension_numbers = #tpu.dot_dimension_numbers<[1], [0], [0], [1], [0, 0, 1, 1], [], []>} : vector<4x16xbf16>, vector<16x32xbf16>, vector<4x32xf32> -> vector<4x32xf32>
      %c0_100 = arith.constant 0 : index
      %c0_101 = arith.constant 0 : index
      %218 = vector.load %arg4[%c0_100, %c0_101] : memref<1x32xf32, #tpu.memory_space<vmem>>, vector<1x32xf32>
      %219 = vector.broadcast %218 : vector<1x32xf32> to vector<4x32xf32>
      %220 = arith.addf %217, %219 : vector<4x32xf32>
      %221 = vector.shape_cast %220 : vector<4x32xf32> to vector<1x4x32xf32>
      %c1_102 = arith.constant 1 : index
      %c0_103 = arith.constant 0 : index
      %222 = vector.load %arg6[%c1_102, %c0_103] : memref<5x32xf32, #tpu.memory_space<vmem>>, vector<4x32xf32>
      %223 = vector.shape_cast %222 : vector<4x32xf32> to vector<1x4x32xf32>
      %224 = arith.addf %221, %223 : vector<1x4x32xf32>
      %c0_104 = arith.constant 0 : index
      %c0_105 = arith.constant 0 : index
      %225 = vector.load %arg5[%c0_104, %c0_105] : memref<1x32xf32, #tpu.memory_space<vmem>>, vector<1x32xf32>
      %c0_106 = arith.constant 0 : index
      %c0_107 = arith.constant 0 : index
      %226 = vector.load %arg6[%c0_106, %c0_107] : memref<5x32xf32, #tpu.memory_space<vmem>>, vector<1x32xf32>
      %227 = arith.addf %225, %226 : vector<1x32xf32>
      %228 = vector.shape_cast %227 : vector<1x32xf32> to vector<1x1x32xf32>
      %c0_108 = arith.constant 0 : index
      %c0_109 = arith.constant 0 : index
      %c0_110 = arith.constant 0 : index
      %229 = vector.load %arg25[%c0_108, %c0_109, %c0_110] : memref<1x5x32xf32, #tpu.memory_space<vmem>>, vector<1x1x32xf32>
      tpu.vector_store %arg25[%c0_108, %c0_109, %c0_110], %228 {strides = array<i32>} : memref<1x5x32xf32, #tpu.memory_space<vmem>>, vector<1x1x32xf32>,
      %c0_111 = arith.constant 0 : index
      %c1_112 = arith.constant 1 : index
      %c0_113 = arith.constant 0 : index
      %230 = vector.load %arg25[%c0_111, %c1_112, %c0_113] : memref<1x5x32xf32, #tpu.memory_space<vmem>>, vector<1x4x32xf32>
      tpu.vector_store %arg25[%c0_111, %c1_112, %c0_113], %224 {strides = array<i32>} : memref<1x5x32xf32, #tpu.memory_space<vmem>>, vector<1x4x32xf32>,
    } else {
    }
    %c0 = arith.constant 0 : index
    %c0_1 = arith.constant 0 : index
    %c0_2 = arith.constant 0 : index
    %3 = vector.load %arg25[%c0, %c0_1, %c0_2] : memref<1x5x32xf32, #tpu.memory_space<vmem>>, vector<1x5x32xf32>
    %4 = vector.shape_cast %3 : vector<1x5x32xf32> to vector<5x32xf32>
    %c0_3 = arith.constant 0 : index
    %c0_4 = arith.constant 0 : index
    %c0_5 = arith.constant 0 : index
    %5 = vector.load %arg7[%c0_3, %c0_4, %c0_5] : memref<1x1x32xf32, #tpu.memory_space<vmem>>, vector<1x1x32xf32>
    %6 = vector.shape_cast %5 : vector<1x1x32xf32> to vector<1x32xf32>
    %c0_6 = arith.constant 0 : index
    %c0_7 = arith.constant 0 : index
    %c0_8 = arith.constant 0 : index
    %7 = vector.load %arg8[%c0_6, %c0_7, %c0_8] : memref<1x1x32xf32, #tpu.memory_space<vmem>>, vector<1x1x32xf32>
    %8 = vector.shape_cast %7 : vector<1x1x32xf32> to vector<1x32xf32>
    %cst = arith.constant dense<0.000000e+00> : vector<5xf32>
    %9 = vector.multi_reduction <add>, %4, %cst [1] : vector<5x32xf32> to vector<5xf32>
    %10 = vector.shape_cast %9 : vector<5xf32> to vector<5x1xf32>
    %cst_9 = arith.constant 3.200000e+01 : f32
    %11 = vector.broadcast %cst_9 : f32 to vector<5x1xf32>
    %12 = arith.divf %10, %11 : vector<5x1xf32>
    %13 = vector.broadcast %12 : vector<5x1xf32> to vector<5x32xf32>
    %14 = arith.subf %4, %13 : vector<5x32xf32>
    %15 = arith.mulf %14, %14 : vector<5x32xf32>
    %cst_10 = arith.constant dense<0.000000e+00> : vector<5xf32>
    %16 = vector.multi_reduction <add>, %15, %cst_10 [1] : vector<5x32xf32> to vector<5xf32>
    %17 = vector.shape_cast %16 : vector<5xf32> to vector<5x1xf32>
    %cst_11 = arith.constant 3.200000e+01 : f32
    %18 = vector.broadcast %cst_11 : f32 to vector<5x1xf32>
    %19 = arith.divf %17, %18 : vector<5x1xf32>
    %20 = vector.broadcast %12 : vector<5x1xf32> to vector<5x32xf32>
    %21 = arith.subf %4, %20 : vector<5x32xf32>
    %cst_12 = arith.constant 9.99999974E-6 : f32
    %22 = vector.broadcast %cst_12 : f32 to vector<5x1xf32>
    %23 = arith.addf %19, %22 : vector<5x1xf32>
    %24 = math.rsqrt %23 : vector<5x1xf32>
    %25 = vector.broadcast %24 : vector<5x1xf32> to vector<5x32xf32>
    %26 = arith.mulf %21, %25 : vector<5x32xf32>
    %27 = vector.broadcast %6 : vector<1x32xf32> to vector<5x32xf32>
    %28 = arith.mulf %26, %27 : vector<5x32xf32>
    %29 = vector.broadcast %8 : vector<1x32xf32> to vector<5x32xf32>
    %30 = arith.addf %28, %29 : vector<5x32xf32>
    %31 = arith.truncf %30 : vector<5x32xf32> to vector<5x32xbf16>
    %c0_13 = arith.constant 0 : index
    %c0_14 = arith.constant 0 : index
    %c0_15 = arith.constant 0 : index
    %32 = vector.load %arg9[%c0_13, %c0_14, %c0_15] : memref<1x32x96xbf16, #tpu.memory_space<vmem>>, vector<1x32x96xbf16>
    %33 = vector.shape_cast %32 : vector<1x32x96xbf16> to vector<32x96xbf16>
    %cst_16 = arith.constant dense<0.000000e+00> : vector<5x96xf32>
    %34 = tpu.matmul %31, %33, %cst_16 {dimension_numbers = #tpu.dot_dimension_numbers<[1], [0], [0], [1], [0, 0, 1, 1], [], []>} : vector<5x32xbf16>, vector<32x96xbf16>, vector<5x96xf32> -> vector<5x96xf32>
    %c0_17 = arith.constant 0 : index
    %c0_18 = arith.constant 0 : index
    %c0_19 = arith.constant 0 : index
    %35 = vector.load %arg10[%c0_17, %c0_18, %c0_19] : memref<1x1x96xf32, #tpu.memory_space<vmem>>, vector<1x1x96xf32>
    %36 = vector.shape_cast %35 : vector<1x1x96xf32> to vector<1x96xf32>
    %37 = vector.broadcast %36 : vector<1x96xf32> to vector<5x96xf32>
    %38 = arith.addf %34, %37 : vector<5x96xf32>
    %39 = vector.extract_strided_slice %38 {offsets = [0, 0], sizes = [5, 32], strides = [1, 1]} : vector<5x96xf32> to vector<5x32xf32>
    %cst_20 = arith.constant 0.353553385 : f32
    %40 = vector.broadcast %cst_20 : f32 to vector<5x32xf32>
    %41 = arith.mulf %39, %40 : vector<5x32xf32>
    %42 = arith.truncf %41 : vector<5x32xf32> to vector<5x32xbf16>
    %43 = vector.extract_strided_slice %38 {offsets = [0, 32], sizes = [5, 32], strides = [1, 1]} : vector<5x96xf32> to vector<5x32xf32>
    %44 = arith.truncf %43 : vector<5x32xf32> to vector<5x32xbf16>
    %45 = vector.extract_strided_slice %38 {offsets = [0, 64], sizes = [5, 32], strides = [1, 1]} : vector<5x96xf32> to vector<5x32xf32>
    %46 = arith.truncf %45 : vector<5x32xf32> to vector<5x32xbf16>
    %47 = vector.extract_strided_slice %42 {offsets = [0, 0], sizes = [5, 8], strides = [1, 1]} : vector<5x32xbf16> to vector<5x8xbf16>
    %48 = vector.shape_cast %47 : vector<5x8xbf16> to vector<1x5x8xbf16>
    %49 = vector.extract_strided_slice %44 {offsets = [0, 0], sizes = [5, 8], strides = [1, 1]} : vector<5x32xbf16> to vector<5x8xbf16>
    %50 = vector.shape_cast %49 : vector<5x8xbf16> to vector<1x5x8xbf16>
    %51 = vector.extract_strided_slice %46 {offsets = [0, 0], sizes = [5, 8], strides = [1, 1]} : vector<5x32xbf16> to vector<5x8xbf16>
    %52 = vector.shape_cast %51 : vector<5x8xbf16> to vector<1x5x8xbf16>
    "tpu.trace_start"() <{level = 10 : i32, message = "bqd,bkd->bqk"}> : () -> ()
    %cst_21 = arith.constant dense<0.000000e+00> : vector<1x5x5xf32>
    %53 = tpu.matmul %48, %50, %cst_21 {dimension_numbers = #tpu.dot_dimension_numbers<[2], [2], [1], [1], [0, 0, 0, 1, 1, 1], [0], [0]>} : vector<1x5x8xbf16>, vector<1x5x8xbf16>, vector<1x5x5xf32> -> vector<1x5x5xf32>
    "tpu.trace_stop"() : () -> ()
    %cst_22 = arith.constant dense<0xFF800000> : vector<1x5xf32>
    %54 = vector.multi_reduction <maximumf>, %53, %cst_22 [2] : vector<1x5x5xf32> to vector<1x5xf32>
    %55 = vector.shape_cast %54 : vector<1x5xf32> to vector<1x5x1xf32>
    %56 = vector.broadcast %55 : vector<1x5x1xf32> to vector<1x5x5xf32>
    %57 = arith.subf %53, %56 : vector<1x5x5xf32>
    %58 = math.exp %57 : vector<1x5x5xf32>
    %cst_23 = arith.constant dense<0.000000e+00> : vector<1x5xf32>
    %59 = vector.multi_reduction <add>, %58, %cst_23 [2] : vector<1x5x5xf32> to vector<1x5xf32>
    %60 = vector.shape_cast %59 : vector<1x5xf32> to vector<1x5x1xf32>
    %61 = vector.broadcast %60 : vector<1x5x1xf32> to vector<1x5x5xf32>
    %62 = arith.divf %58, %61 : vector<1x5x5xf32>
    %cst_24 = arith.constant 0.000000e+00 : f32
    %63 = vector.broadcast %cst_24 : f32 to vector<1x5x123xf32>
    %64 = tpu.concatenate %62, %63 in 2 : vector<1x5x5xf32>, vector<1x5x123xf32> -> vector<1x5x128xf32>
    %c0_25 = arith.constant 0 : index
    %c0_26 = arith.constant 0 : index
    %c0_27 = arith.constant 0 : index
    %c0_28 = arith.constant 0 : index
    %65 = vector.load %arg23[%c0_25, %c0_26, %c0_27, %c0_28] : memref<4x1x5x128xf32, #tpu.memory_space<vmem>>, vector<1x1x5x128xf32>
    %66 = vector.shape_cast %65 : vector<1x1x5x128xf32> to vector<1x5x128xf32>
    %67 = vector.shape_cast %64 : vector<1x5x128xf32> to vector<1x1x5x128xf32>
    tpu.vector_store %arg23[%c0_25, %c0_26, %c0_27, %c0_28], %67 {strides = array<i32>} : memref<4x1x5x128xf32, #tpu.memory_space<vmem>>, vector<1x1x5x128xf32>,
    %68 = arith.truncf %62 : vector<1x5x5xf32> to vector<1x5x5xbf16>
    "tpu.trace_start"() <{level = 10 : i32, message = "bqk,bkd->bqd"}> : () -> ()
    %cst_29 = arith.constant dense<0.000000e+00> : vector<1x5x8xf32>
    %69 = tpu.matmul %68, %52, %cst_29 {dimension_numbers = #tpu.dot_dimension_numbers<[2], [1], [1], [2], [0, 0, 0, 1, 1, 2], [0], [0]>} : vector<1x5x5xbf16>, vector<1x5x8xbf16>, vector<1x5x8xf32> -> vector<1x5x8xf32>
    "tpu.trace_stop"() : () -> ()
    %70 = vector.shape_cast %69 : vector<1x5x8xf32> to vector<5x8xf32>
    %71 = vector.extract_strided_slice %42 {offsets = [0, 8], sizes = [5, 8], strides = [1, 1]} : vector<5x32xbf16> to vector<5x8xbf16>
    %72 = vector.shape_cast %71 : vector<5x8xbf16> to vector<1x5x8xbf16>
    %73 = vector.extract_strided_slice %44 {offsets = [0, 8], sizes = [5, 8], strides = [1, 1]} : vector<5x32xbf16> to vector<5x8xbf16>
    %74 = vector.shape_cast %73 : vector<5x8xbf16> to vector<1x5x8xbf16>
    %75 = vector.extract_strided_slice %46 {offsets = [0, 8], sizes = [5, 8], strides = [1, 1]} : vector<5x32xbf16> to vector<5x8xbf16>
    %76 = vector.shape_cast %75 : vector<5x8xbf16> to vector<1x5x8xbf16>
    "tpu.trace_start"() <{level = 10 : i32, message = "bqd,bkd->bqk"}> : () -> ()
    %cst_30 = arith.constant dense<0.000000e+00> : vector<1x5x5xf32>
    %77 = tpu.matmul %72, %74, %cst_30 {dimension_numbers = #tpu.dot_dimension_numbers<[2], [2], [1], [1], [0, 0, 0, 1, 1, 1], [0], [0]>} : vector<1x5x8xbf16>, vector<1x5x8xbf16>, vector<1x5x5xf32> -> vector<1x5x5xf32>
    "tpu.trace_stop"() : () -> ()
    %cst_31 = arith.constant dense<0xFF800000> : vector<1x5xf32>
    %78 = vector.multi_reduction <maximumf>, %77, %cst_31 [2] : vector<1x5x5xf32> to vector<1x5xf32>
    %79 = vector.shape_cast %78 : vector<1x5xf32> to vector<1x5x1xf32>
    %80 = vector.broadcast %79 : vector<1x5x1xf32> to vector<1x5x5xf32>
    %81 = arith.subf %77, %80 : vector<1x5x5xf32>
    %82 = math.exp %81 : vector<1x5x5xf32>
    %cst_32 = arith.constant dense<0.000000e+00> : vector<1x5xf32>
    %83 = vector.multi_reduction <add>, %82, %cst_32 [2] : vector<1x5x5xf32> to vector<1x5xf32>
    %84 = vector.shape_cast %83 : vector<1x5xf32> to vector<1x5x1xf32>
    %85 = vector.broadcast %84 : vector<1x5x1xf32> to vector<1x5x5xf32>
    %86 = arith.divf %82, %85 : vector<1x5x5xf32>
    %cst_33 = arith.constant 0.000000e+00 : f32
    %87 = vector.broadcast %cst_33 : f32 to vector<1x5x123xf32>
    %88 = tpu.concatenate %86, %87 in 2 : vector<1x5x5xf32>, vector<1x5x123xf32> -> vector<1x5x128xf32>
    %c1 = arith.constant 1 : index
    %c0_34 = arith.constant 0 : index
    %c0_35 = arith.constant 0 : index
    %c0_36 = arith.constant 0 : index
    %89 = vector.load %arg23[%c1, %c0_34, %c0_35, %c0_36] : memref<4x1x5x128xf32, #tpu.memory_space<vmem>>, vector<1x1x5x128xf32>
    %90 = vector.shape_cast %89 : vector<1x1x5x128xf32> to vector<1x5x128xf32>
    %91 = vector.shape_cast %88 : vector<1x5x128xf32> to vector<1x1x5x128xf32>
    tpu.vector_store %arg23[%c1, %c0_34, %c0_35, %c0_36], %91 {strides = array<i32>} : memref<4x1x5x128xf32, #tpu.memory_space<vmem>>, vector<1x1x5x128xf32>,
    %92 = arith.truncf %86 : vector<1x5x5xf32> to vector<1x5x5xbf16>
    "tpu.trace_start"() <{level = 10 : i32, message = "bqk,bkd->bqd"}> : () -> ()
    %cst_37 = arith.constant dense<0.000000e+00> : vector<1x5x8xf32>
    %93 = tpu.matmul %92, %76, %cst_37 {dimension_numbers = #tpu.dot_dimension_numbers<[2], [1], [1], [2], [0, 0, 0, 1, 1, 2], [0], [0]>} : vector<1x5x5xbf16>, vector<1x5x8xbf16>, vector<1x5x8xf32> -> vector<1x5x8xf32>
    "tpu.trace_stop"() : () -> ()
    %94 = vector.shape_cast %93 : vector<1x5x8xf32> to vector<5x8xf32>
    %95 = vector.extract_strided_slice %42 {offsets = [0, 16], sizes = [5, 8], strides = [1, 1]} : vector<5x32xbf16> to vector<5x8xbf16>
    %96 = vector.shape_cast %95 : vector<5x8xbf16> to vector<1x5x8xbf16>
    %97 = vector.extract_strided_slice %44 {offsets = [0, 16], sizes = [5, 8], strides = [1, 1]} : vector<5x32xbf16> to vector<5x8xbf16>
    %98 = vector.shape_cast %97 : vector<5x8xbf16> to vector<1x5x8xbf16>
    %99 = vector.extract_strided_slice %46 {offsets = [0, 16], sizes = [5, 8], strides = [1, 1]} : vector<5x32xbf16> to vector<5x8xbf16>
    %100 = vector.shape_cast %99 : vector<5x8xbf16> to vector<1x5x8xbf16>
    "tpu.trace_start"() <{level = 10 : i32, message = "bqd,bkd->bqk"}> : () -> ()
    %cst_38 = arith.constant dense<0.000000e+00> : vector<1x5x5xf32>
    %101 = tpu.matmul %96, %98, %cst_38 {dimension_numbers = #tpu.dot_dimension_numbers<[2], [2], [1], [1], [0, 0, 0, 1, 1, 1], [0], [0]>} : vector<1x5x8xbf16>, vector<1x5x8xbf16>, vector<1x5x5xf32> -> vector<1x5x5xf32>
    "tpu.trace_stop"() : () -> ()
    %cst_39 = arith.constant dense<0xFF800000> : vector<1x5xf32>
    %102 = vector.multi_reduction <maximumf>, %101, %cst_39 [2] : vector<1x5x5xf32> to vector<1x5xf32>
    %103 = vector.shape_cast %102 : vector<1x5xf32> to vector<1x5x1xf32>
    %104 = vector.broadcast %103 : vector<1x5x1xf32> to vector<1x5x5xf32>
    %105 = arith.subf %101, %104 : vector<1x5x5xf32>
    %106 = math.exp %105 : vector<1x5x5xf32>
    %cst_40 = arith.constant dense<0.000000e+00> : vector<1x5xf32>
    %107 = vector.multi_reduction <add>, %106, %cst_40 [2] : vector<1x5x5xf32> to vector<1x5xf32>
    %108 = vector.shape_cast %107 : vector<1x5xf32> to vector<1x5x1xf32>
    %109 = vector.broadcast %108 : vector<1x5x1xf32> to vector<1x5x5xf32>
    %110 = arith.divf %106, %109 : vector<1x5x5xf32>
    %cst_41 = arith.constant 0.000000e+00 : f32
    %111 = vector.broadcast %cst_41 : f32 to vector<1x5x123xf32>
    %112 = tpu.concatenate %110, %111 in 2 : vector<1x5x5xf32>, vector<1x5x123xf32> -> vector<1x5x128xf32>
    %c2 = arith.constant 2 : index
    %c0_42 = arith.constant 0 : index
    %c0_43 = arith.constant 0 : index
    %c0_44 = arith.constant 0 : index
    %113 = vector.load %arg23[%c2, %c0_42, %c0_43, %c0_44] : memref<4x1x5x128xf32, #tpu.memory_space<vmem>>, vector<1x1x5x128xf32>
    %114 = vector.shape_cast %113 : vector<1x1x5x128xf32> to vector<1x5x128xf32>
    %115 = vector.shape_cast %112 : vector<1x5x128xf32> to vector<1x1x5x128xf32>
    tpu.vector_store %arg23[%c2, %c0_42, %c0_43, %c0_44], %115 {strides = array<i32>} : memref<4x1x5x128xf32, #tpu.memory_space<vmem>>, vector<1x1x5x128xf32>,
    %116 = arith.truncf %110 : vector<1x5x5xf32> to vector<1x5x5xbf16>
    "tpu.trace_start"() <{level = 10 : i32, message = "bqk,bkd->bqd"}> : () -> ()
    %cst_45 = arith.constant dense<0.000000e+00> : vector<1x5x8xf32>
    %117 = tpu.matmul %116, %100, %cst_45 {dimension_numbers = #tpu.dot_dimension_numbers<[2], [1], [1], [2], [0, 0, 0, 1, 1, 2], [0], [0]>} : vector<1x5x5xbf16>, vector<1x5x8xbf16>, vector<1x5x8xf32> -> vector<1x5x8xf32>
    "tpu.trace_stop"() : () -> ()
    %118 = vector.shape_cast %117 : vector<1x5x8xf32> to vector<5x8xf32>
    %119 = vector.extract_strided_slice %42 {offsets = [0, 24], sizes = [5, 8], strides = [1, 1]} : vector<5x32xbf16> to vector<5x8xbf16>
    %120 = vector.shape_cast %119 : vector<5x8xbf16> to vector<1x5x8xbf16>
    %121 = vector.extract_strided_slice %44 {offsets = [0, 24], sizes = [5, 8], strides = [1, 1]} : vector<5x32xbf16> to vector<5x8xbf16>
    %122 = vector.shape_cast %121 : vector<5x8xbf16> to vector<1x5x8xbf16>
    %123 = vector.extract_strided_slice %46 {offsets = [0, 24], sizes = [5, 8], strides = [1, 1]} : vector<5x32xbf16> to vector<5x8xbf16>
    %124 = vector.shape_cast %123 : vector<5x8xbf16> to vector<1x5x8xbf16>
    "tpu.trace_start"() <{level = 10 : i32, message = "bqd,bkd->bqk"}> : () -> ()
    %cst_46 = arith.constant dense<0.000000e+00> : vector<1x5x5xf32>
    %125 = tpu.matmul %120, %122, %cst_46 {dimension_numbers = #tpu.dot_dimension_numbers<[2], [2], [1], [1], [0, 0, 0, 1, 1, 1], [0], [0]>} : vector<1x5x8xbf16>, vector<1x5x8xbf16>, vector<1x5x5xf32> -> vector<1x5x5xf32>
    "tpu.trace_stop"() : () -> ()
    %cst_47 = arith.constant dense<0xFF800000> : vector<1x5xf32>
    %126 = vector.multi_reduction <maximumf>, %125, %cst_47 [2] : vector<1x5x5xf32> to vector<1x5xf32>
    %127 = vector.shape_cast %126 : vector<1x5xf32> to vector<1x5x1xf32>
    %128 = vector.broadcast %127 : vector<1x5x1xf32> to vector<1x5x5xf32>
    %129 = arith.subf %125, %128 : vector<1x5x5xf32>
    %130 = math.exp %129 : vector<1x5x5xf32>
    %cst_48 = arith.constant dense<0.000000e+00> : vector<1x5xf32>
    %131 = vector.multi_reduction <add>, %130, %cst_48 [2] : vector<1x5x5xf32> to vector<1x5xf32>
    %132 = vector.shape_cast %131 : vector<1x5xf32> to vector<1x5x1xf32>
    %133 = vector.broadcast %132 : vector<1x5x1xf32> to vector<1x5x5xf32>
    %134 = arith.divf %130, %133 : vector<1x5x5xf32>
    %cst_49 = arith.constant 0.000000e+00 : f32
    %135 = vector.broadcast %cst_49 : f32 to vector<1x5x123xf32>
    %136 = tpu.concatenate %134, %135 in 2 : vector<1x5x5xf32>, vector<1x5x123xf32> -> vector<1x5x128xf32>
    %c3 = arith.constant 3 : index
    %c0_50 = arith.constant 0 : index
    %c0_51 = arith.constant 0 : index
    %c0_52 = arith.constant 0 : index
    %137 = vector.load %arg23[%c3, %c0_50, %c0_51, %c0_52] : memref<4x1x5x128xf32, #tpu.memory_space<vmem>>, vector<1x1x5x128xf32>
    %138 = vector.shape_cast %137 : vector<1x1x5x128xf32> to vector<1x5x128xf32>
    %139 = vector.shape_cast %136 : vector<1x5x128xf32> to vector<1x1x5x128xf32>
    tpu.vector_store %arg23[%c3, %c0_50, %c0_51, %c0_52], %139 {strides = array<i32>} : memref<4x1x5x128xf32, #tpu.memory_space<vmem>>, vector<1x1x5x128xf32>,
    %140 = arith.truncf %134 : vector<1x5x5xf32> to vector<1x5x5xbf16>
    "tpu.trace_start"() <{level = 10 : i32, message = "bqk,bkd->bqd"}> : () -> ()
    %cst_53 = arith.constant dense<0.000000e+00> : vector<1x5x8xf32>
    %141 = tpu.matmul %140, %124, %cst_53 {dimension_numbers = #tpu.dot_dimension_numbers<[2], [1], [1], [2], [0, 0, 0, 1, 1, 2], [0], [0]>} : vector<1x5x5xbf16>, vector<1x5x8xbf16>, vector<1x5x8xf32> -> vector<1x5x8xf32>
    "tpu.trace_stop"() : () -> ()
    %142 = vector.shape_cast %141 : vector<1x5x8xf32> to vector<5x8xf32>
    %143 = tpu.concatenate %70, %94, %118, %142 in 1 : vector<5x8xf32>, vector<5x8xf32>, vector<5x8xf32>, vector<5x8xf32> -> vector<5x32xf32>
    %144 = arith.truncf %143 : vector<5x32xf32> to vector<5x32xbf16>
    %c0_54 = arith.constant 0 : index
    %c0_55 = arith.constant 0 : index
    %c0_56 = arith.constant 0 : index
    %145 = vector.load %arg11[%c0_54, %c0_55, %c0_56] : memref<1x32x32xbf16, #tpu.memory_space<vmem>>, vector<1x32x32xbf16>
    %146 = vector.shape_cast %145 : vector<1x32x32xbf16> to vector<32x32xbf16>
    %cst_57 = arith.constant dense<0.000000e+00> : vector<5x32xf32>
    %147 = tpu.matmul %144, %146, %cst_57 {dimension_numbers = #tpu.dot_dimension_numbers<[1], [0], [0], [1], [0, 0, 1, 1], [], []>} : vector<5x32xbf16>, vector<32x32xbf16>, vector<5x32xf32> -> vector<5x32xf32>
    %c0_58 = arith.constant 0 : index
    %c0_59 = arith.constant 0 : index
    %c0_60 = arith.constant 0 : index
    %148 = vector.load %arg12[%c0_58, %c0_59, %c0_60] : memref<1x1x32xf32, #tpu.memory_space<vmem>>, vector<1x1x32xf32>
    %149 = vector.shape_cast %148 : vector<1x1x32xf32> to vector<1x32xf32>
    %150 = vector.broadcast %149 : vector<1x32xf32> to vector<5x32xf32>
    %151 = arith.addf %147, %150 : vector<5x32xf32>
    %152 = arith.addf %4, %151 : vector<5x32xf32>
    %c0_61 = arith.constant 0 : index
    %c0_62 = arith.constant 0 : index
    %c0_63 = arith.constant 0 : index
    %153 = vector.load %arg13[%c0_61, %c0_62, %c0_63] : memref<1x1x32xf32, #tpu.memory_space<vmem>>, vector<1x1x32xf32>
    %154 = vector.shape_cast %153 : vector<1x1x32xf32> to vector<1x32xf32>
    %c0_64 = arith.constant 0 : index
    %c0_65 = arith.constant 0 : index
    %c0_66 = arith.constant 0 : index
    %155 = vector.load %arg14[%c0_64, %c0_65, %c0_66] : memref<1x1x32xf32, #tpu.memory_space<vmem>>, vector<1x1x32xf32>
    %156 = vector.shape_cast %155 : vector<1x1x32xf32> to vector<1x32xf32>
    %cst_67 = arith.constant dense<0.000000e+00> : vector<5xf32>
    %157 = vector.multi_reduction <add>, %152, %cst_67 [1] : vector<5x32xf32> to vector<5xf32>
    %158 = vector.shape_cast %157 : vector<5xf32> to vector<5x1xf32>
    %cst_68 = arith.constant 3.200000e+01 : f32
    %159 = vector.broadcast %cst_68 : f32 to vector<5x1xf32>
    %160 = arith.divf %158, %159 : vector<5x1xf32>
    %161 = vector.broadcast %160 : vector<5x1xf32> to vector<5x32xf32>
    %162 = arith.subf %152, %161 : vector<5x32xf32>
    %163 = arith.mulf %162, %162 : vector<5x32xf32>
    %cst_69 = arith.constant dense<0.000000e+00> : vector<5xf32>
    %164 = vector.multi_reduction <add>, %163, %cst_69 [1] : vector<5x32xf32> to vector<5xf32>
    %165 = vector.shape_cast %164 : vector<5xf32> to vector<5x1xf32>
    %cst_70 = arith.constant 3.200000e+01 : f32
    %166 = vector.broadcast %cst_70 : f32 to vector<5x1xf32>
    %167 = arith.divf %165, %166 : vector<5x1xf32>
    %168 = vector.broadcast %160 : vector<5x1xf32> to vector<5x32xf32>
    %169 = arith.subf %152, %168 : vector<5x32xf32>
    %cst_71 = arith.constant 9.99999974E-6 : f32
    %170 = vector.broadcast %cst_71 : f32 to vector<5x1xf32>
    %171 = arith.addf %167, %170 : vector<5x1xf32>
    %172 = math.rsqrt %171 : vector<5x1xf32>
    %173 = vector.broadcast %172 : vector<5x1xf32> to vector<5x32xf32>
    %174 = arith.mulf %169, %173 : vector<5x32xf32>
    %175 = vector.broadcast %154 : vector<1x32xf32> to vector<5x32xf32>
    %176 = arith.mulf %174, %175 : vector<5x32xf32>
    %177 = vector.broadcast %156 : vector<1x32xf32> to vector<5x32xf32>
    %178 = arith.addf %176, %177 : vector<5x32xf32>
    %179 = arith.truncf %178 : vector<5x32xf32> to vector<5x32xbf16>
    %c0_72 = arith.constant 0 : index
    %c0_73 = arith.constant 0 : index
    %c0_74 = arith.constant 0 : index
    %180 = vector.load %arg15[%c0_72, %c0_73, %c0_74] : memref<1x32x128xbf16, #tpu.memory_space<vmem>>, vector<1x32x128xbf16>
    %181 = vector.shape_cast %180 : vector<1x32x128xbf16> to vector<32x128xbf16>
    %cst_75 = arith.constant dense<0.000000e+00> : vector<5x128xf32>
    %182 = tpu.matmul %179, %181, %cst_75 {dimension_numbers = #tpu.dot_dimension_numbers<[1], [0], [0], [1], [0, 0, 1, 1], [], []>} : vector<5x32xbf16>, vector<32x128xbf16>, vector<5x128xf32> -> vector<5x128xf32>
    %c0_76 = arith.constant 0 : index
    %c0_77 = arith.constant 0 : index
    %c0_78 = arith.constant 0 : index
    %183 = vector.load %arg16[%c0_76, %c0_77, %c0_78] : memref<1x1x128xf32, #tpu.memory_space<vmem>>, vector<1x1x128xf32>
    %184 = vector.shape_cast %183 : vector<1x1x128xf32> to vector<1x128xf32>
    %185 = vector.broadcast %184 : vector<1x128xf32> to vector<5x128xf32>
    %186 = arith.addf %182, %185 : vector<5x128xf32>
    %187 = arith.mulf %186, %186 : vector<5x128xf32>
    %188 = arith.mulf %186, %187 : vector<5x128xf32>
    %cst_79 = arith.constant 4.471500e-02 : f32
    %189 = vector.broadcast %cst_79 : f32 to vector<5x128xf32>
    %190 = arith.mulf %189, %188 : vector<5x128xf32>
    %191 = arith.addf %186, %190 : vector<5x128xf32>
    %cst_80 = arith.constant 0.797884583 : f32
    %192 = vector.broadcast %cst_80 : f32 to vector<5x128xf32>
    %193 = arith.mulf %192, %191 : vector<5x128xf32>
    %194 = math.tanh %193 : vector<5x128xf32>
    %cst_81 = arith.constant 1.000000e+00 : f32
    %195 = vector.broadcast %cst_81 : f32 to vector<5x128xf32>
    %196 = arith.addf %195, %194 : vector<5x128xf32>
    %cst_82 = arith.constant 5.000000e-01 : f32
    %197 = vector.broadcast %cst_82 : f32 to vector<5x128xf32>
    %198 = arith.mulf %197, %196 : vector<5x128xf32>
    %199 = arith.mulf %186, %198 : vector<5x128xf32>
    %200 = arith.truncf %199 : vector<5x128xf32> to vector<5x128xbf16>
    %c0_83 = arith.constant 0 : index
    %c0_84 = arith.constant 0 : index
    %c0_85 = arith.constant 0 : index
    %201 = vector.load %arg17[%c0_83, %c0_84, %c0_85] : memref<1x128x32xbf16, #tpu.memory_space<vmem>>, vector<1x128x32xbf16>
    %202 = vector.shape_cast %201 : vector<1x128x32xbf16> to vector<128x32xbf16>
    %cst_86 = arith.constant dense<0.000000e+00> : vector<5x32xf32>
    %203 = tpu.matmul %200, %202, %cst_86 {dimension_numbers = #tpu.dot_dimension_numbers<[1], [0], [0], [1], [0, 0, 1, 1], [], []>} : vector<5x128xbf16>, vector<128x32xbf16>, vector<5x32xf32> -> vector<5x32xf32>
    %c0_87 = arith.constant 0 : index
    %c0_88 = arith.constant 0 : index
    %c0_89 = arith.constant 0 : index
    %204 = vector.load %arg18[%c0_87, %c0_88, %c0_89] : memref<1x1x32xf32, #tpu.memory_space<vmem>>, vector<1x1x32xf32>
    %205 = vector.shape_cast %204 : vector<1x1x32xf32> to vector<1x32xf32>
    %206 = vector.broadcast %205 : vector<1x32xf32> to vector<5x32xf32>
    %207 = arith.addf %203, %206 : vector<5x32xf32>
    %208 = arith.addf %152, %207 : vector<5x32xf32>
    %209 = vector.shape_cast %208 : vector<5x32xf32> to vector<1x5x32xf32>
    %c0_90 = arith.constant 0 : index
    %c0_91 = arith.constant 0 : index
    %c0_92 = arith.constant 0 : index
    %210 = vector.load %arg25[%c0_90, %c0_91, %c0_92] : memref<1x5x32xf32, #tpu.memory_space<vmem>>, vector<1x5x32xf32>
    tpu.vector_store %arg25[%c0_90, %c0_91, %c0_92], %209 {strides = array<i32>} : memref<1x5x32xf32, #tpu.memory_space<vmem>>, vector<1x5x32xf32>,
    %c1_i32 = arith.constant 1 : i32
    %211 = arith.cmpi eq, %arg1, %c1_i32 : i32
    %212 = arith.extui %211 : i1 to i32
    %c0_i32_93 = arith.constant 0 : i32
    %213 = arith.cmpi ne, %212, %c0_i32_93 : i32
    scf.if %213 {
      %214 = vector.shape_cast %208 : vector<5x32xf32> to vector<1x5x32xf32>
      %215 = vector.extract_strided_slice %214 {offsets = [0, 0, 0], sizes = [1, 1, 32], strides = [1, 1, 1]} : vector<1x5x32xf32> to vector<1x1x32xf32>
      %216 = vector.shape_cast %215 : vector<1x1x32xf32> to vector<1x32xf32>
      %c0_94 = arith.constant 0 : index
      %c0_95 = arith.constant 0 : index
      %217 = vector.load %arg19[%c0_94, %c0_95] : memref<1x32xf32, #tpu.memory_space<vmem>>, vector<1x32xf32>
      %c0_96 = arith.constant 0 : index
      %c0_97 = arith.constant 0 : index
      %218 = vector.load %arg20[%c0_96, %c0_97] : memref<1x32xf32, #tpu.memory_space<vmem>>, vector<1x32xf32>
      %cst_98 = arith.constant dense<0.000000e+00> : vector<1xf32>
      %219 = vector.multi_reduction <add>, %216, %cst_98 [1] : vector<1x32xf32> to vector<1xf32>
      %220 = vector.shape_cast %219 : vector<1xf32> to vector<1x1xf32>
      %cst_99 = arith.constant 3.200000e+01 : f32
      %221 = vector.broadcast %cst_99 : f32 to vector<1x1xf32>
      %222 = arith.divf %220, %221 : vector<1x1xf32>
      %223 = vector.broadcast %222 : vector<1x1xf32> to vector<1x32xf32>
      %224 = arith.subf %216, %223 : vector<1x32xf32>
      %225 = arith.mulf %224, %224 : vector<1x32xf32>
      %cst_100 = arith.constant dense<0.000000e+00> : vector<1xf32>
      %226 = vector.multi_reduction <add>, %225, %cst_100 [1] : vector<1x32xf32> to vector<1xf32>
      %227 = vector.shape_cast %226 : vector<1xf32> to vector<1x1xf32>
      %cst_101 = arith.constant 3.200000e+01 : f32
      %228 = vector.broadcast %cst_101 : f32 to vector<1x1xf32>
      %229 = arith.divf %227, %228 : vector<1x1xf32>
      %230 = vector.broadcast %222 : vector<1x1xf32> to vector<1x32xf32>
      %231 = arith.subf %216, %230 : vector<1x32xf32>
      %cst_102 = arith.constant 9.99999974E-6 : f32
      %232 = vector.broadcast %cst_102 : f32 to vector<1x1xf32>
      %233 = arith.addf %229, %232 : vector<1x1xf32>
      %234 = math.rsqrt %233 : vector<1x1xf32>
      %235 = vector.broadcast %234 : vector<1x1xf32> to vector<1x32xf32>
      %236 = arith.mulf %231, %235 : vector<1x32xf32>
      %237 = arith.mulf %236, %217 : vector<1x32xf32>
      %238 = arith.addf %237, %218 : vector<1x32xf32>
      %239 = arith.truncf %238 : vector<1x32xf32> to vector<1x32xbf16>
      %c0_103 = arith.constant 0 : index
      %c0_104 = arith.constant 0 : index
      %240 = vector.load %arg21[%c0_103, %c0_104] : memref<32x128xbf16, #tpu.memory_space<vmem>>, vector<32x128xbf16>
      %cst_105 = arith.constant dense<0.000000e+00> : vector<1x128xf32>
      %241 = tpu.matmul %239, %240, %cst_105 {dimension_numbers = #tpu.dot_dimension_numbers<[1], [0], [0], [1], [0, 0, 1, 1], [], []>} : vector<1x32xbf16>, vector<32x128xbf16>, vector<1x128xf32> -> vector<1x128xf32>
      %c0_106 = arith.constant 0 : index
      %c0_107 = arith.constant 0 : index
      %242 = vector.load %arg22[%c0_106, %c0_107] : memref<1x128xf32, #tpu.memory_space<vmem>>, vector<1x128xf32>
      %243 = arith.addf %241, %242 : vector<1x128xf32>
      %244 = vector.shape_cast %243 : vector<1x128xf32> to vector<1x1x128xf32>
      %c0_108 = arith.constant 0 : index
      %c0_109 = arith.constant 0 : index
      %c0_110 = arith.constant 0 : index
      %245 = vector.load %arg24[%c0_108, %c0_109, %c0_110] : memref<1x1x128xf32, #tpu.memory_space<vmem>>, vector<1x1x128xf32>
      tpu.vector_store %arg24[%c0_108, %c0_109, %c0_110], %244 {strides = array<i32>} : memref<1x1x128xf32, #tpu.memory_space<vmem>>, vector<1x1x128xf32>,
    } else {
    }
    return
  }
  func.func @transform_0(%arg0: i32, %arg1: i32) -> (i32, i32, i32) {
    %c0_i32 = arith.constant 0 : i32
    %c0_i32_0 = arith.constant 0 : i32
    %c0_i32_1 = arith.constant 0 : i32
    return %arg0, %c0_i32, %c0_i32_0 : i32, i32, i32
  }
  func.func @transform_1(%arg0: i32, %arg1: i32) -> (i32, i32) {
    %c0_i32 = arith.constant 0 : i32
    %c0_i32_0 = arith.constant 0 : i32
    %c0_i32_1 = arith.constant 0 : i32
    return %c0_i32, %c0_i32_0 : i32, i32
  }
  func.func @transform_2(%arg0: i32, %arg1: i32) -> (i32, i32) {
    %c0_i32 = arith.constant 0 : i32
    %c0_i32_0 = arith.constant 0 : i32
    %c0_i32_1 = arith.constant 0 : i32
    return %c0_i32, %c0_i32_0 : i32, i32
  }
  func.func @transform_3(%arg0: i32, %arg1: i32) -> (i32, i32) {
    %c0_i32 = arith.constant 0 : i32
    %c0_i32_0 = arith.constant 0 : i32
    %c0_i32_1 = arith.constant 0 : i32
    return %c0_i32, %c0_i32_0 : i32, i32
  }
  func.func @transform_4(%arg0: i32, %arg1: i32) -> (i32, i32) {
    %c0_i32 = arith.constant 0 : i32
    %c0_i32_0 = arith.constant 0 : i32
    %c0_i32_1 = arith.constant 0 : i32
    return %c0_i32, %c0_i32_0 : i32, i32
  }
  func.func @transform_5(%arg0: i32, %arg1: i32) -> (i32, i32, i32) {
    %c0_i32 = arith.constant 0 : i32
    %c0_i32_0 = arith.constant 0 : i32
    %c0_i32_1 = arith.constant 0 : i32
    return %arg1, %c0_i32, %c0_i32_0 : i32, i32, i32
  }
  func.func @transform_6(%arg0: i32, %arg1: i32) -> (i32, i32, i32) {
    %c0_i32 = arith.constant 0 : i32
    %c0_i32_0 = arith.constant 0 : i32
    %c0_i32_1 = arith.constant 0 : i32
    return %arg1, %c0_i32, %c0_i32_0 : i32, i32, i32
  }
  func.func @transform_7(%arg0: i32, %arg1: i32) -> (i32, i32, i32) {
    %c0_i32 = arith.constant 0 : i32
    %c0_i32_0 = arith.constant 0 : i32
    %c0_i32_1 = arith.constant 0 : i32
    return %arg1, %c0_i32, %c0_i32_0 : i32, i32, i32
  }
  func.func @transform_8(%arg0: i32, %arg1: i32) -> (i32, i32, i32) {
    %c0_i32 = arith.constant 0 : i32
    %c0_i32_0 = arith.constant 0 : i32
    %c0_i32_1 = arith.constant 0 : i32
    return %arg1, %c0_i32, %c0_i32_0 : i32, i32, i32
  }
  func.func @transform_9(%arg0: i32, %arg1: i32) -> (i32, i32, i32) {
    %c0_i32 = arith.constant 0 : i32
    %c0_i32_0 = arith.constant 0 : i32
    %c0_i32_1 = arith.constant 0 : i32
    return %arg1, %c0_i32, %c0_i32_0 : i32, i32, i32
  }
  func.func @transform_10(%arg0: i32, %arg1: i32) -> (i32, i32, i32) {
    %c0_i32 = arith.constant 0 : i32
    %c0_i32_0 = arith.constant 0 : i32
    %c0_i32_1 = arith.constant 0 : i32
    return %arg1, %c0_i32, %c0_i32_0 : i32, i32, i32
  }
  func.func @transform_11(%arg0: i32, %arg1: i32) -> (i32, i32, i32) {
    %c0_i32 = arith.constant 0 : i32
    %c0_i32_0 = arith.constant 0 : i32
    %c0_i32_1 = arith.constant 0 : i32
    return %arg1, %c0_i32, %c0_i32_0 : i32, i32, i32
  }
  func.func @transform_12(%arg0: i32, %arg1: i32) -> (i32, i32, i32) {
    %c0_i32 = arith.constant 0 : i32
    %c0_i32_0 = arith.constant 0 : i32
    %c0_i32_1 = arith.constant 0 : i32
    return %arg1, %c0_i32, %c0_i32_0 : i32, i32, i32
  }
  func.func @transform_13(%arg0: i32, %arg1: i32) -> (i32, i32, i32) {
    %c0_i32 = arith.constant 0 : i32
    %c0_i32_0 = arith.constant 0 : i32
    %c0_i32_1 = arith.constant 0 : i32
    return %arg1, %c0_i32, %c0_i32_0 : i32, i32, i32
  }
  func.func @transform_14(%arg0: i32, %arg1: i32) -> (i32, i32, i32) {
    %c0_i32 = arith.constant 0 : i32
    %c0_i32_0 = arith.constant 0 : i32
    %c0_i32_1 = arith.constant 0 : i32
    return %arg1, %c0_i32, %c0_i32_0 : i32, i32, i32
  }
  func.func @transform_15(%arg0: i32, %arg1: i32) -> (i32, i32, i32) {
    %c0_i32 = arith.constant 0 : i32
    %c0_i32_0 = arith.constant 0 : i32
    %c0_i32_1 = arith.constant 0 : i32
    return %arg1, %c0_i32, %c0_i32_0 : i32, i32, i32
  }
  func.func @transform_16(%arg0: i32, %arg1: i32) -> (i32, i32, i32) {
    %c0_i32 = arith.constant 0 : i32
    %c0_i32_0 = arith.constant 0 : i32
    %c0_i32_1 = arith.constant 0 : i32
    return %arg1, %c0_i32, %c0_i32_0 : i32, i32, i32
  }
  func.func @transform_17(%arg0: i32, %arg1: i32) -> (i32, i32) {
    %c0_i32 = arith.constant 0 : i32
    %c0_i32_0 = arith.constant 0 : i32
    %c0_i32_1 = arith.constant 0 : i32
    return %c0_i32, %c0_i32_0 : i32, i32
  }
  func.func @transform_18(%arg0: i32, %arg1: i32) -> (i32, i32) {
    %c0_i32 = arith.constant 0 : i32
    %c0_i32_0 = arith.constant 0 : i32
    %c0_i32_1 = arith.constant 0 : i32
    return %c0_i32, %c0_i32_0 : i32, i32
  }
  func.func @transform_19(%arg0: i32, %arg1: i32) -> (i32, i32) {
    %c0_i32 = arith.constant 0 : i32
    %c0_i32_0 = arith.constant 0 : i32
    %c0_i32_1 = arith.constant 0 : i32
    return %c0_i32, %c0_i32_0 : i32, i32
  }
  func.func @transform_20(%arg0: i32, %arg1: i32) -> (i32, i32) {
    %c0_i32 = arith.constant 0 : i32
    %c0_i32_0 = arith.constant 0 : i32
    %c0_i32_1 = arith.constant 0 : i32
    return %c0_i32, %c0_i32_0 : i32, i32
  }
  func.func @transform_21(%arg0: i32, %arg1: i32) -> (i32, i32, i32, i32) {
    %c0_i32 = arith.constant 0 : i32
    %c0_i32_0 = arith.constant 0 : i32
    %c0_i32_1 = arith.constant 0 : i32
    return %arg1, %arg0, %c0_i32, %c0_i32_0 : i32, i32, i32, i32
  }
  func.func @transform_22(%arg0: i32, %arg1: i32) -> (i32, i32, i32) {
    %c0_i32 = arith.constant 0 : i32
    %c0_i32_0 = arith.constant 0 : i32
    %c0_i32_1 = arith.constant 0 : i32
    return %arg0, %c0_i32, %c0_i32_0 : i32, i32, i32
  }
}

module attributes {stable_mosaic.version = 11 : i64} {
  func.func @_vit_fused_kernel(%arg0: i32, %arg1: i32, %arg2: memref<1x4x16xbf16, #tpu.memory_space<vmem>>, %arg3: memref<16x32xbf16, #tpu.memory_space<vmem>>, %arg4: memref<1x32xf32, #tpu.memory_space<vmem>>, %arg5: memref<1x32xf32, #tpu.memory_space<vmem>>, %arg6: memref<5x32xf32, #tpu.memory_space<vmem>>, %arg7: memref<1x1x32xf32, #tpu.memory_space<vmem>>, %arg8: memref<1x1x32xf32, #tpu.memory_space<vmem>>, %arg9: memref<1x32x96xbf16, #tpu.memory_space<vmem>>, %arg10: memref<1x1x96xf32, #tpu.memory_space<vmem>>, %arg11: memref<1x32x32xbf16, #tpu.memory_space<vmem>>, %arg12: memref<1x1x32xf32, #tpu.memory_space<vmem>>, %arg13: memref<1x1x32xf32, #tpu.memory_space<vmem>>, %arg14: memref<1x1x32xf32, #tpu.memory_space<vmem>>, %arg15: memref<1x32x128xbf16, #tpu.memory_space<vmem>>, %arg16: memref<1x1x128xf32, #tpu.memory_space<vmem>>, %arg17: memref<1x128x32xbf16, #tpu.memory_space<vmem>>, %arg18: memref<1x1x32xf32, #tpu.memory_space<vmem>>, %arg19: memref<1x32xf32, #tpu.memory_space<vmem>>, %arg20: memref<1x32xf32, #tpu.memory_space<vmem>>, %arg21: memref<32x128xbf16, #tpu.memory_space<vmem>>, %arg22: memref<1x128xf32, #tpu.memory_space<vmem>>, %arg23: memref<4x1x5x128xf32, #tpu.memory_space<vmem>>, %arg24: memref<1x1x128xf32, #tpu.memory_space<vmem>>, %arg25: memref<1x5x32xf32, #tpu.memory_space<vmem>>) attributes {dimension_semantics = [#tpu.dimension_semantics<parallel>, #tpu.dimension_semantics<arbitrary>], iteration_bounds = array<i64: 2, 2>, scalar_prefetch = 0 : i64, scratch_operands = 1 : i64, tpu.core_type = #tpu.core_type<tc>, window_params = [{transform_indices = @transform_0, window_bounds = array<i64: 1, 4, 16>}, {pipeline_mode = #tpu.pipeline_mode<synchronous>, transform_indices = @transform_1, window_bounds = array<i64: 16, 32>}, {pipeline_mode = #tpu.pipeline_mode<synchronous>, transform_indices = @transform_2, window_bounds = array<i64: 1, 32>}, {pipeline_mode = #tpu.pipeline_mode<synchronous>, transform_indices = @transform_3, window_bounds = array<i64: 1, 32>}, {pipeline_mode = #tpu.pipeline_mode<synchronous>, transform_indices = @transform_4, window_bounds = array<i64: 5, 32>}, {transform_indices = @transform_5, window_bounds = array<i64: 1, 1, 32>}, {transform_indices = @transform_6, window_bounds = array<i64: 1, 1, 32>}, {transform_indices = @transform_7, window_bounds = array<i64: 1, 32, 96>}, {transform_indices = @transform_8, window_bounds = array<i64: 1, 1, 96>}, {transform_indices = @transform_9, window_bounds = array<i64: 1, 32, 32>}, {transform_indices = @transform_10, window_bounds = array<i64: 1, 1, 32>}, {transform_indices = @transform_11, window_bounds = array<i64: 1, 1, 32>}, {transform_indices = @transform_12, window_bounds = array<i64: 1, 1, 32>}, {transform_indices = @transform_13, window_bounds = array<i64: 1, 32, 128>}, {transform_indices = @transform_14, window_bounds = array<i64: 1, 1, 128>}, {transform_indices = @transform_15, window_bounds = array<i64: 1, 128, 32>}, {transform_indices = @transform_16, window_bounds = array<i64: 1, 1, 32>}, {pipeline_mode = #tpu.pipeline_mode<synchronous>, transform_indices = @transform_17, window_bounds = array<i64: 1, 32>}, {pipeline_mode = #tpu.pipeline_mode<synchronous>, transform_indices = @transform_18, window_bounds = array<i64: 1, 32>}, {pipeline_mode = #tpu.pipeline_mode<synchronous>, transform_indices = @transform_19, window_bounds = array<i64: 32, 128>}, {pipeline_mode = #tpu.pipeline_mode<synchronous>, transform_indices = @transform_20, window_bounds = array<i64: 1, 128>}, {transform_indices = @transform_21, window_bounds = array<i64: 4, 1, 5, 128>}, {transform_indices = @transform_22, window_bounds = array<i64: 1, 1, 128>}]} {
    %c0_i32 = arith.constant 0 : i32
    %0 = arith.cmpi eq, %arg1, %c0_i32 : i32
    %1 = arith.extui %0 : i1 to i32
    %c0_i32_0 = arith.constant 0 : i32
    %2 = arith.cmpi ne, %1, %c0_i32_0 : i32
    scf.if %2 {
      %c0_94 = arith.constant 0 : index
      %c0_95 = arith.constant 0 : index
      %c0_96 = arith.constant 0 : index
      %214 = vector.load %arg2[%c0_94, %c0_95, %c0_96] : memref<1x4x16xbf16, #tpu.memory_space<vmem>>, vector<1x4x16xbf16>
      %215 = vector.shape_cast %214 : vector<1x4x16xbf16> to vector<4x16xbf16>
      %c0_97 = arith.constant 0 : index
      %c0_98 = arith.constant 0 : index
      %216 = vector.load %arg3[%c0_97, %c0_98] : memref<16x32xbf16, #tpu.memory_space<vmem>>, vector<16x32xbf16>
      %cst_99 = arith.constant dense<0.000000e+00> : vector<4x32xf32>
      %217 = tpu.matmul %215, %216, %cst_99 {dimension_numbers = #tpu.dot_dimension_numbers<[1], [0], [0], [1], [0, 0, 1, 1], [], []>} : vector<4x16xbf16>, vector<16x32xbf16>, vector<4x32xf32> -> vector<4x32xf32>
      %c0_100 = arith.constant 0 : index
      %c0_101 = arith.constant 0 : index
      %218 = vector.load %arg4[%c0_100, %c0_101] : memref<1x32xf32, #tpu.memory_space<vmem>>, vector<1x32xf32>
      %219 = vector.broadcast %218 : vector<1x32xf32> to vector<4x32xf32>
      %220 = arith.addf %217, %219 : vector<4x32xf32>
      %221 = vector.shape_cast %220 : vector<4x32xf32> to vector<1x4x32xf32>
      %c1_102 = arith.constant 1 : index
      %c0_103 = arith.constant 0 : index
      %222 = vector.load %arg6[%c1_102, %c0_103] : memref<5x32xf32, #tpu.memory_space<vmem>>, vector<4x32xf32>
      %223 = vector.shape_cast %222 : vector<4x32xf32> to vector<1x4x32xf32>
      %224 = arith.addf %221, %223 : vector<1x4x32xf32>
      %c0_104 = arith.constant 0 : index
      %c0_105 = arith.constant 0 : index
      %225 = vector.load %arg5[%c0_104, %c0_105] : memref<1x32xf32, #tpu.memory_space<vmem>>, vector<1x32xf32>
      %c0_106 = arith.constant 0 : index
      %c0_107 = arith.constant 0 : index
      %226 = vector.load %arg6[%c0_106, %c0_107] : memref<5x32xf32, #tpu.memory_space<vmem>>, vector<1x32xf32>
      %227 = arith.addf %225, %226 : vector<1x32xf32>
      %228 = vector.shape_cast %227 : vector<1x32xf32> to vector<1x1x32xf32>
      %c0_108 = arith.constant 0 : index
      %c0_109 = arith.constant 0 : index
      %c0_110 = arith.constant 0 : index
      %229 = vector.load %arg25[%c0_108, %c0_109, %c0_110] : memref<1x5x32xf32, #tpu.memory_space<vmem>>, vector<1x1x32xf32>
      tpu.vector_store %arg25[%c0_108, %c0_109, %c0_110], %228 {strides = array<i32>} : memref<1x5x32xf32, #tpu.memory_space<vmem>>, vector<1x1x32xf32>,
      %c0_111 = arith.constant 0 : index
      %c1_112 = arith.constant 1 : index
      %c0_113 = arith.constant 0 : index
      %230 = vector.load %arg25[%c0_111, %c1_112, %c0_113] : memref<1x5x32xf32, #tpu.memory_space<vmem>>, vector<1x4x32xf32>
      tpu.vector_store %arg25[%c0_111, %c1_112, %c0_113], %224 {strides = array<i32>} : memref<1x5x32xf32, #tpu.memory_space<vmem>>, vector<1x4x32xf32>,
    } else {
    }
    %c0 = arith.constant 0 : index
    %c0_1 = arith.constant 0 : index
    %c0_2 = arith.constant 0 : index
    %3 = vector.load %arg25[%c0, %c0_1, %c0_2] : memref<1x5x32xf32, #tpu.memory_space<vmem>>, vector<1x5x32xf32>
    %4 = vector.shape_cast %3 : vector<1x5x32xf32> to vector<5x32xf32>
    %c0_3 = arith.constant 0 : index
    %c0_4 = arith.constant 0 : index
    %c0_5 = arith.constant 0 : index
    %5 = vector.load %arg7[%c0_3, %c0_4, %c0_5] : memref<1x1x32xf32, #tpu.memory_space<vmem>>, vector<1x1x32xf32>
    %6 = vector.shape_cast %5 : vector<1x1x32xf32> to vector<1x32xf32>
    %c0_6 = arith.constant 0 : index
    %c0_7 = arith.constant 0 : index
    %c0_8 = arith.constant 0 : index
    %7 = vector.load %arg8[%c0_6, %c0_7, %c0_8] : memref<1x1x32xf32, #tpu.memory_space<vmem>>, vector<1x1x32xf32>
    %8 = vector.shape_cast %7 : vector<1x1x32xf32> to vector<1x32xf32>
    %cst = arith.constant dense<0.000000e+00> : vector<5xf32>
    %9 = vector.multi_reduction <add>, %4, %cst [1] : vector<5x32xf32> to vector<5xf32>
    %10 = vector.shape_cast %9 : vector<5xf32> to vector<5x1xf32>
    %cst_9 = arith.constant 3.200000e+01 : f32
    %11 = vector.broadcast %cst_9 : f32 to vector<5x1xf32>
    %12 = arith.divf %10, %11 : vector<5x1xf32>
    %13 = vector.broadcast %12 : vector<5x1xf32> to vector<5x32xf32>
    %14 = arith.subf %4, %13 : vector<5x32xf32>
    %15 = arith.mulf %14, %14 : vector<5x32xf32>
    %cst_10 = arith.constant dense<0.000000e+00> : vector<5xf32>
    %16 = vector.multi_reduction <add>, %15, %cst_10 [1] : vector<5x32xf32> to vector<5xf32>
    %17 = vector.shape_cast %16 : vector<5xf32> to vector<5x1xf32>
    %cst_11 = arith.constant 3.200000e+01 : f32
    %18 = vector.broadcast %cst_11 : f32 to vector<5x1xf32>
    %19 = arith.divf %17, %18 : vector<5x1xf32>
    %20 = vector.broadcast %12 : vector<5x1xf32> to vector<5x32xf32>
    %21 = arith.subf %4, %20 : vector<5x32xf32>
    %cst_12 = arith.constant 9.99999974E-6 : f32
    %22 = vector.broadcast %cst_12 : f32 to vector<5x1xf32>
    %23 = arith.addf %19, %22 : vector<5x1xf32>
    %24 = math.rsqrt %23 : vector<5x1xf32>
    %25 = vector.broadcast %24 : vector<5x1xf32> to vector<5x32xf32>
    %26 = arith.mulf %21, %25 : vector<5x32xf32>
    %27 = vector.broadcast %6 : vector<1x32xf32> to vector<5x32xf32>
    %28 = arith.mulf %26, %27 : vector<5x32xf32>
    %29 = vector.broadcast %8 : vector<1x32xf32> to vector<5x32xf32>
    %30 = arith.addf %28, %29 : vector<5x32xf32>
    %31 = arith.truncf %30 : vector<5x32xf32> to vector<5x32xbf16>
    %c0_13 = arith.constant 0 : index
    %c0_14 = arith.constant 0 : index
    %c0_15 = arith.constant 0 : index
    %32 = vector.load %arg9[%c0_13, %c0_14, %c0_15] : memref<1x32x96xbf16, #tpu.memory_space<vmem>>, vector<1x32x96xbf16>
    %33 = vector.shape_cast %32 : vector<1x32x96xbf16> to vector<32x96xbf16>
    %cst_16 = arith.constant dense<0.000000e+00> : vector<5x96xf32>
    %34 = tpu.matmul %31, %33, %cst_16 {dimension_numbers = #tpu.dot_dimension_numbers<[1], [0], [0], [1], [0, 0, 1, 1], [], []>} : vector<5x32xbf16>, vector<32x96xbf16>, vector<5x96xf32> -> vector<5x96xf32>
    %c0_17 = arith.constant 0 : index
    %c0_18 = arith.constant 0 : index
    %c0_19 = arith.constant 0 : index
    %35 = vector.load %arg10[%c0_17, %c0_18, %c0_19] : memref<1x1x96xf32, #tpu.memory_space<vmem>>, vector<1x1x96xf32>
    %36 = vector.shape_cast %35 : vector<1x1x96xf32> to vector<1x96xf32>
    %37 = vector.broadcast %36 : vector<1x96xf32> to vector<5x96xf32>
    %38 = arith.addf %34, %37 : vector<5x96xf32>
    %39 = vector.extract_strided_slice %38 {offsets = [0, 0], sizes = [5, 32], strides = [1, 1]} : vector<5x96xf32> to vector<5x32xf32>
    %cst_20 = arith.constant 0.353553385 : f32
    %40 = vector.broadcast %cst_20 : f32 to vector<5x32xf32>
    %41 = arith.mulf %39, %40 : vector<5x32xf32>
    %42 = arith.truncf %41 : vector<5x32xf32> to vector<5x32xbf16>
    %43 = vector.extract_strided_slice %38 {offsets = [0, 32], sizes = [5, 32], strides = [1, 1]} : vector<5x96xf32> to vector<5x32xf32>
    %44 = arith.truncf %43 : vector<5x32xf32> to vector<5x32xbf16>
    %45 = vector.extract_strided_slice %38 {offsets = [0, 64], sizes = [5, 32], strides = [1, 1]} : vector<5x96xf32> to vector<5x32xf32>
    %46 = arith.truncf %45 : vector<5x32xf32> to vector<5x32xbf16>
    %47 = vector.extract_strided_slice %42 {offsets = [0, 0], sizes = [5, 8], strides = [1, 1]} : vector<5x32xbf16> to vector<5x8xbf16>
    %48 = vector.shape_cast %47 : vector<5x8xbf16> to vector<1x5x8xbf16>
    %49 = vector.extract_strided_slice %44 {offsets = [0, 0], sizes = [5, 8], strides = [1, 1]} : vector<5x32xbf16> to vector<5x8xbf16>
    %50 = vector.shape_cast %49 : vector<5x8xbf16> to vector<1x5x8xbf16>
    %51 = vector.extract_strided_slice %46 {offsets = [0, 0], sizes = [5, 8], strides = [1, 1]} : vector<5x32xbf16> to vector<5x8xbf16>
    %52 = vector.shape_cast %51 : vector<5x8xbf16> to vector<1x5x8xbf16>
    "tpu.trace_start"() <{level = 10 : i32, message = "bqd,bkd->bqk"}> : () -> ()
    %cst_21 = arith.constant dense<0.000000e+00> : vector<1x5x5xf32>
    %53 = tpu.matmul %48, %50, %cst_21 {dimension_numbers = #tpu.dot_dimension_numbers<[2], [2], [1], [1], [0, 0, 0, 1, 1, 1], [0], [0]>} : vector<1x5x8xbf16>, vector<1x5x8xbf16>, vector<1x5x5xf32> -> vector<1x5x5xf32>
    "tpu.trace_stop"() : () -> ()
    %cst_22 = arith.constant dense<0xFF800000> : vector<1x5xf32>
    %54 = vector.multi_reduction <maximumf>, %53, %cst_22 [2] : vector<1x5x5xf32> to vector<1x5xf32>
    %55 = vector.shape_cast %54 : vector<1x5xf32> to vector<1x5x1xf32>
    %56 = vector.broadcast %55 : vector<1x5x1xf32> to vector<1x5x5xf32>
    %57 = arith.subf %53, %56 : vector<1x5x5xf32>
    %58 = math.exp %57 : vector<1x5x5xf32>
    %cst_23 = arith.constant dense<0.000000e+00> : vector<1x5xf32>
    %59 = vector.multi_reduction <add>, %58, %cst_23 [2] : vector<1x5x5xf32> to vector<1x5xf32>
    %60 = vector.shape_cast %59 : vector<1x5xf32> to vector<1x5x1xf32>
    %61 = vector.broadcast %60 : vector<1x5x1xf32> to vector<1x5x5xf32>
    %62 = arith.divf %58, %61 : vector<1x5x5xf32>
    %cst_24 = arith.constant 0.000000e+00 : f32
    %63 = vector.broadcast %cst_24 : f32 to vector<1x5x123xf32>
    %64 = tpu.concatenate %62, %63 in 2 : vector<1x5x5xf32>, vector<1x5x123xf32> -> vector<1x5x128xf32>
    %c0_25 = arith.constant 0 : index
    %c0_26 = arith.constant 0 : index
    %c0_27 = arith.constant 0 : index
    %c0_28 = arith.constant 0 : index
    %65 = vector.load %arg23[%c0_25, %c0_26, %c0_27, %c0_28] : memref<4x1x5x128xf32, #tpu.memory_space<vmem>>, vector<1x1x5x128xf32>
    %66 = vector.shape_cast %65 : vector<1x1x5x128xf32> to vector<1x5x128xf32>
    %67 = vector.shape_cast %64 : vector<1x5x128xf32> to vector<1x1x5x128xf32>
    tpu.vector_store %arg23[%c0_25, %c0_26, %c0_27, %c0_28], %67 {strides = array<i32>} : memref<4x1x5x128xf32, #tpu.memory_space<vmem>>, vector<1x1x5x128xf32>,
    %68 = arith.truncf %62 : vector<1x5x5xf32> to vector<1x5x5xbf16>
    "tpu.trace_start"() <{level = 10 : i32, message = "bqk,bkd->bqd"}> : () -> ()
    %cst_29 = arith.constant dense<0.000000e+00> : vector<1x5x8xf32>
    %69 = tpu.matmul %68, %52, %cst_29 {dimension_numbers = #tpu.dot_dimension_numbers<[2], [1], [1], [2], [0, 0, 0, 1, 1, 2], [0], [0]>} : vector<1x5x5xbf16>, vector<1x5x8xbf16>, vector<1x5x8xf32> -> vector<1x5x8xf32>
    "tpu.trace_stop"() : () -> ()
    %70 = vector.shape_cast %69 : vector<1x5x8xf32> to vector<5x8xf32>
    %71 = vector.extract_strided_slice %42 {offsets = [0, 8], sizes = [5, 8], strides = [1, 1]} : vector<5x32xbf16> to vector<5x8xbf16>
    %72 = vector.shape_cast %71 : vector<5x8xbf16> to vector<1x5x8xbf16>
    %73 = vector.extract_strided_slice %44 {offsets = [0, 8], sizes = [5, 8], strides = [1, 1]} : vector<5x32xbf16> to vector<5x8xbf16>
    %74 = vector.shape_cast %73 : vector<5x8xbf16> to vector<1x5x8xbf16>
    %75 = vector.extract_strided_slice %46 {offsets = [0, 8], sizes = [5, 8], strides = [1, 1]} : vector<5x32xbf16> to vector<5x8xbf16>
    %76 = vector.shape_cast %75 : vector<5x8xbf16> to vector<1x5x8xbf16>
    "tpu.trace_start"() <{level = 10 : i32, message = "bqd,bkd->bqk"}> : () -> ()
    %cst_30 = arith.constant dense<0.000000e+00> : vector<1x5x5xf32>
    %77 = tpu.matmul %72, %74, %cst_30 {dimension_numbers = #tpu.dot_dimension_numbers<[2], [2], [1], [1], [0, 0, 0, 1, 1, 1], [0], [0]>} : vector<1x5x8xbf16>, vector<1x5x8xbf16>, vector<1x5x5xf32> -> vector<1x5x5xf32>
    "tpu.trace_stop"() : () -> ()
    %cst_31 = arith.constant dense<0xFF800000> : vector<1x5xf32>
    %78 = vector.multi_reduction <maximumf>, %77, %cst_31 [2] : vector<1x5x5xf32> to vector<1x5xf32>
    %79 = vector.shape_cast %78 : vector<1x5xf32> to vector<1x5x1xf32>
    %80 = vector.broadcast %79 : vector<1x5x1xf32> to vector<1x5x5xf32>
    %81 = arith.subf %77, %80 : vector<1x5x5xf32>
    %82 = math.exp %81 : vector<1x5x5xf32>
    %cst_32 = arith.constant dense<0.000000e+00> : vector<1x5xf32>
    %83 = vector.multi_reduction <add>, %82, %cst_32 [2] : vector<1x5x5xf32> to vector<1x5xf32>
    %84 = vector.shape_cast %83 : vector<1x5xf32> to vector<1x5x1xf32>
    %85 = vector.broadcast %84 : vector<1x5x1xf32> to vector<1x5x5xf32>
    %86 = arith.divf %82, %85 : vector<1x5x5xf32>
    %cst_33 = arith.constant 0.000000e+00 : f32
    %87 = vector.broadcast %cst_33 : f32 to vector<1x5x123xf32>
    %88 = tpu.concatenate %86, %87 in 2 : vector<1x5x5xf32>, vector<1x5x123xf32> -> vector<1x5x128xf32>
    %c1 = arith.constant 1 : index
    %c0_34 = arith.constant 0 : index
    %c0_35 = arith.constant 0 : index
    %c0_36 = arith.constant 0 : index
    %89 = vector.load %arg23[%c1, %c0_34, %c0_35, %c0_36] : memref<4x1x5x128xf32, #tpu.memory_space<vmem>>, vector<1x1x5x128xf32>
    %90 = vector.shape_cast %89 : vector<1x1x5x128xf32> to vector<1x5x128xf32>
    %91 = vector.shape_cast %88 : vector<1x5x128xf32> to vector<1x1x5x128xf32>
    tpu.vector_store %arg23[%c1, %c0_34, %c0_35, %c0_36], %91 {strides = array<i32>} : memref<4x1x5x128xf32, #tpu.memory_space<vmem>>, vector<1x1x5x128xf32>,
    %92 = arith.truncf %86 : vector<1x5x5xf32> to vector<1x5x5xbf16>
    "tpu.trace_start"() <{level = 10 : i32, message = "bqk,bkd->bqd"}> : () -> ()
    %cst_37 = arith.constant dense<0.000000e+00> : vector<1x5x8xf32>
    %93 = tpu.matmul %92, %76, %cst_37 {dimension_numbers = #tpu.dot_dimension_numbers<[2], [1], [1], [2], [0, 0, 0, 1, 1, 2], [0], [0]>} : vector<1x5x5xbf16>, vector<1x5x8xbf16>, vector<1x5x8xf32> -> vector<1x5x8xf32>
    "tpu.trace_stop"() : () -> ()
    %94 = vector.shape_cast %93 : vector<1x5x8xf32> to vector<5x8xf32>
    %95 = vector.extract_strided_slice %42 {offsets = [0, 16], sizes = [5, 8], strides = [1, 1]} : vector<5x32xbf16> to vector<5x8xbf16>
    %96 = vector.shape_cast %95 : vector<5x8xbf16> to vector<1x5x8xbf16>
    %97 = vector.extract_strided_slice %44 {offsets = [0, 16], sizes = [5, 8], strides = [1, 1]} : vector<5x32xbf16> to vector<5x8xbf16>
    %98 = vector.shape_cast %97 : vector<5x8xbf16> to vector<1x5x8xbf16>
    %99 = vector.extract_strided_slice %46 {offsets = [0, 16], sizes = [5, 8], strides = [1, 1]} : vector<5x32xbf16> to vector<5x8xbf16>
    %100 = vector.shape_cast %99 : vector<5x8xbf16> to vector<1x5x8xbf16>
    "tpu.trace_start"() <{level = 10 : i32, message = "bqd,bkd->bqk"}> : () -> ()
    %cst_38 = arith.constant dense<0.000000e+00> : vector<1x5x5xf32>
    %101 = tpu.matmul %96, %98, %cst_38 {dimension_numbers = #tpu.dot_dimension_numbers<[2], [2], [1], [1], [0, 0, 0, 1, 1, 1], [0], [0]>} : vector<1x5x8xbf16>, vector<1x5x8xbf16>, vector<1x5x5xf32> -> vector<1x5x5xf32>
    "tpu.trace_stop"() : () -> ()
    %cst_39 = arith.constant dense<0xFF800000> : vector<1x5xf32>
    %102 = vector.multi_reduction <maximumf>, %101, %cst_39 [2] : vector<1x5x5xf32> to vector<1x5xf32>
    %103 = vector.shape_cast %102 : vector<1x5xf32> to vector<1x5x1xf32>
    %104 = vector.broadcast %103 : vector<1x5x1xf32> to vector<1x5x5xf32>
    %105 = arith.subf %101, %104 : vector<1x5x5xf32>
    %106 = math.exp %105 : vector<1x5x5xf32>
    %cst_40 = arith.constant dense<0.000000e+00> : vector<1x5xf32>
    %107 = vector.multi_reduction <add>, %106, %cst_40 [2] : vector<1x5x5xf32> to vector<1x5xf32>
    %108 = vector.shape_cast %107 : vector<1x5xf32> to vector<1x5x1xf32>
    %109 = vector.broadcast %108 : vector<1x5x1xf32> to vector<1x5x5xf32>
    %110 = arith.divf %106, %109 : vector<1x5x5xf32>
    %cst_41 = arith.constant 0.000000e+00 : f32
    %111 = vector.broadcast %cst_41 : f32 to vector<1x5x123xf32>
    %112 = tpu.concatenate %110, %111 in 2 : vector<1x5x5xf32>, vector<1x5x123xf32> -> vector<1x5x128xf32>
    %c2 = arith.constant 2 : index
    %c0_42 = arith.constant 0 : index
    %c0_43 = arith.constant 0 : index
    %c0_44 = arith.constant 0 : index
    %113 = vector.load %arg23[%c2, %c0_42, %c0_43, %c0_44] : memref<4x1x5x128xf32, #tpu.memory_space<vmem>>, vector<1x1x5x128xf32>
    %114 = vector.shape_cast %113 : vector<1x1x5x128xf32> to vector<1x5x128xf32>
    %115 = vector.shape_cast %112 : vector<1x5x128xf32> to vector<1x1x5x128xf32>
    tpu.vector_store %arg23[%c2, %c0_42, %c0_43, %c0_44], %115 {strides = array<i32>} : memref<4x1x5x128xf32, #tpu.memory_space<vmem>>, vector<1x1x5x128xf32>,
    %116 = arith.truncf %110 : vector<1x5x5xf32> to vector<1x5x5xbf16>
    "tpu.trace_start"() <{level = 10 : i32, message = "bqk,bkd->bqd"}> : () -> ()
    %cst_45 = arith.constant dense<0.000000e+00> : vector<1x5x8xf32>
    %117 = tpu.matmul %116, %100, %cst_45 {dimension_numbers = #tpu.dot_dimension_numbers<[2], [1], [1], [2], [0, 0, 0, 1, 1, 2], [0], [0]>} : vector<1x5x5xbf16>, vector<1x5x8xbf16>, vector<1x5x8xf32> -> vector<1x5x8xf32>
    "tpu.trace_stop"() : () -> ()
    %118 = vector.shape_cast %117 : vector<1x5x8xf32> to vector<5x8xf32>
    %119 = vector.extract_strided_slice %42 {offsets = [0, 24], sizes = [5, 8], strides = [1, 1]} : vector<5x32xbf16> to vector<5x8xbf16>
    %120 = vector.shape_cast %119 : vector<5x8xbf16> to vector<1x5x8xbf16>
    %121 = vector.extract_strided_slice %44 {offsets = [0, 24], sizes = [5, 8], strides = [1, 1]} : vector<5x32xbf16> to vector<5x8xbf16>
    %122 = vector.shape_cast %121 : vector<5x8xbf16> to vector<1x5x8xbf16>
    %123 = vector.extract_strided_slice %46 {offsets = [0, 24], sizes = [5, 8], strides = [1, 1]} : vector<5x32xbf16> to vector<5x8xbf16>
    %124 = vector.shape_cast %123 : vector<5x8xbf16> to vector<1x5x8xbf16>
    "tpu.trace_start"() <{level = 10 : i32, message = "bqd,bkd->bqk"}> : () -> ()
    %cst_46 = arith.constant dense<0.000000e+00> : vector<1x5x5xf32>
    %125 = tpu.matmul %120, %122, %cst_46 {dimension_numbers = #tpu.dot_dimension_numbers<[2], [2], [1], [1], [0, 0, 0, 1, 1, 1], [0], [0]>} : vector<1x5x8xbf16>, vector<1x5x8xbf16>, vector<1x5x5xf32> -> vector<1x5x5xf32>
    "tpu.trace_stop"() : () -> ()
    %cst_47 = arith.constant dense<0xFF800000> : vector<1x5xf32>
    %126 = vector.multi_reduction <maximumf>, %125, %cst_47 [2] : vector<1x5x5xf32> to vector<1x5xf32>
    %127 = vector.shape_cast %126 : vector<1x5xf32> to vector<1x5x1xf32>
    %128 = vector.broadcast %127 : vector<1x5x1xf32> to vector<1x5x5xf32>
    %129 = arith.subf %125, %128 : vector<1x5x5xf32>
    %130 = math.exp %129 : vector<1x5x5xf32>
    %cst_48 = arith.constant dense<0.000000e+00> : vector<1x5xf32>
    %131 = vector.multi_reduction <add>, %130, %cst_48 [2] : vector<1x5x5xf32> to vector<1x5xf32>
    %132 = vector.shape_cast %131 : vector<1x5xf32> to vector<1x5x1xf32>
    %133 = vector.broadcast %132 : vector<1x5x1xf32> to vector<1x5x5xf32>
    %134 = arith.divf %130, %133 : vector<1x5x5xf32>
    %cst_49 = arith.constant 0.000000e+00 : f32
    %135 = vector.broadcast %cst_49 : f32 to vector<1x5x123xf32>
    %136 = tpu.concatenate %134, %135 in 2 : vector<1x5x5xf32>, vector<1x5x123xf32> -> vector<1x5x128xf32>
    %c3 = arith.constant 3 : index
    %c0_50 = arith.constant 0 : index
    %c0_51 = arith.constant 0 : index
    %c0_52 = arith.constant 0 : index
    %137 = vector.load %arg23[%c3, %c0_50, %c0_51, %c0_52] : memref<4x1x5x128xf32, #tpu.memory_space<vmem>>, vector<1x1x5x128xf32>
    %138 = vector.shape_cast %137 : vector<1x1x5x128xf32> to vector<1x5x128xf32>
    %139 = vector.shape_cast %136 : vector<1x5x128xf32> to vector<1x1x5x128xf32>
    tpu.vector_store %arg23[%c3, %c0_50, %c0_51, %c0_52], %139 {strides = array<i32>} : memref<4x1x5x128xf32, #tpu.memory_space<vmem>>, vector<1x1x5x128xf32>,
    %140 = arith.truncf %134 : vector<1x5x5xf32> to vector<1x5x5xbf16>
    "tpu.trace_start"() <{level = 10 : i32, message = "bqk,bkd->bqd"}> : () -> ()
    %cst_53 = arith.constant dense<0.000000e+00> : vector<1x5x8xf32>
    %141 = tpu.matmul %140, %124, %cst_53 {dimension_numbers = #tpu.dot_dimension_numbers<[2], [1], [1], [2], [0, 0, 0, 1, 1, 2], [0], [0]>} : vector<1x5x5xbf16>, vector<1x5x8xbf16>, vector<1x5x8xf32> -> vector<1x5x8xf32>
    "tpu.trace_stop"() : () -> ()
    %142 = vector.shape_cast %141 : vector<1x5x8xf32> to vector<5x8xf32>
    %143 = tpu.concatenate %70, %94, %118, %142 in 1 : vector<5x8xf32>, vector<5x8xf32>, vector<5x8xf32>, vector<5x8xf32> -> vector<5x32xf32>
    %144 = arith.truncf %143 : vector<5x32xf32> to vector<5x32xbf16>
    %c0_54 = arith.constant 0 : index
    %c0_55 = arith.constant 0 : index
    %c0_56 = arith.constant 0 : index
    %145 = vector.load %arg11[%c0_54, %c0_55, %c0_56] : memref<1x32x32xbf16, #tpu.memory_space<vmem>>, vector<1x32x32xbf16>
    %146 = vector.shape_cast %145 : vector<1x32x32xbf16> to vector<32x32xbf16>
    %cst_57 = arith.constant dense<0.000000e+00> : vector<5x32xf32>
    %147 = tpu.matmul %144, %146, %cst_57 {dimension_numbers = #tpu.dot_dimension_numbers<[1], [0], [0], [1], [0, 0, 1, 1], [], []>} : vector<5x32xbf16>, vector<32x32xbf16>, vector<5x32xf32> -> vector<5x32xf32>
    %c0_58 = arith.constant 0 : index
    %c0_59 = arith.constant 0 : index
    %c0_60 = arith.constant 0 : index
    %148 = vector.load %arg12[%c0_58, %c0_59, %c0_60] : memref<1x1x32xf32, #tpu.memory_space<vmem>>, vector<1x1x32xf32>
    %149 = vector.shape_cast %148 : vector<1x1x32xf32> to vector<1x32xf32>
    %150 = vector.broadcast %149 : vector<1x32xf32> to vector<5x32xf32>
    %151 = arith.addf %147, %150 : vector<5x32xf32>
    %152 = arith.addf %4, %151 : vector<5x32xf32>
    %c0_61 = arith.constant 0 : index
    %c0_62 = arith.constant 0 : index
    %c0_63 = arith.constant 0 : index
    %153 = vector.load %arg13[%c0_61, %c0_62, %c0_63] : memref<1x1x32xf32, #tpu.memory_space<vmem>>, vector<1x1x32xf32>
    %154 = vector.shape_cast %153 : vector<1x1x32xf32> to vector<1x32xf32>
    %c0_64 = arith.constant 0 : index
    %c0_65 = arith.constant 0 : index
    %c0_66 = arith.constant 0 : index
    %155 = vector.load %arg14[%c0_64, %c0_65, %c0_66] : memref<1x1x32xf32, #tpu.memory_space<vmem>>, vector<1x1x32xf32>
    %156 = vector.shape_cast %155 : vector<1x1x32xf32> to vector<1x32xf32>
    %cst_67 = arith.constant dense<0.000000e+00> : vector<5xf32>
    %157 = vector.multi_reduction <add>, %152, %cst_67 [1] : vector<5x32xf32> to vector<5xf32>
    %158 = vector.shape_cast %157 : vector<5xf32> to vector<5x1xf32>
    %cst_68 = arith.constant 3.200000e+01 : f32
    %159 = vector.broadcast %cst_68 : f32 to vector<5x1xf32>
    %160 = arith.divf %158, %159 : vector<5x1xf32>
    %161 = vector.broadcast %160 : vector<5x1xf32> to vector<5x32xf32>
    %162 = arith.subf %152, %161 : vector<5x32xf32>
    %163 = arith.mulf %162, %162 : vector<5x32xf32>
    %cst_69 = arith.constant dense<0.000000e+00> : vector<5xf32>
    %164 = vector.multi_reduction <add>, %163, %cst_69 [1] : vector<5x32xf32> to vector<5xf32>
    %165 = vector.shape_cast %164 : vector<5xf32> to vector<5x1xf32>
    %cst_70 = arith.constant 3.200000e+01 : f32
    %166 = vector.broadcast %cst_70 : f32 to vector<5x1xf32>
    %167 = arith.divf %165, %166 : vector<5x1xf32>
    %168 = vector.broadcast %160 : vector<5x1xf32> to vector<5x32xf32>
    %169 = arith.subf %152, %168 : vector<5x32xf32>
    %cst_71 = arith.constant 9.99999974E-6 : f32
    %170 = vector.broadcast %cst_71 : f32 to vector<5x1xf32>
    %171 = arith.addf %167, %170 : vector<5x1xf32>
    %172 = math.rsqrt %171 : vector<5x1xf32>
    %173 = vector.broadcast %172 : vector<5x1xf32> to vector<5x32xf32>
    %174 = arith.mulf %169, %173 : vector<5x32xf32>
    %175 = vector.broadcast %154 : vector<1x32xf32> to vector<5x32xf32>
    %176 = arith.mulf %174, %175 : vector<5x32xf32>
    %177 = vector.broadcast %156 : vector<1x32xf32> to vector<5x32xf32>
    %178 = arith.addf %176, %177 : vector<5x32xf32>
    %179 = arith.truncf %178 : vector<5x32xf32> to vector<5x32xbf16>
    %c0_72 = arith.constant 0 : index
    %c0_73 = arith.constant 0 : index
    %c0_74 = arith.constant 0 : index
    %180 = vector.load %arg15[%c0_72, %c0_73, %c0_74] : memref<1x32x128xbf16, #tpu.memory_space<vmem>>, vector<1x32x128xbf16>
    %181 = vector.shape_cast %180 : vector<1x32x128xbf16> to vector<32x128xbf16>
    %cst_75 = arith.constant dense<0.000000e+00> : vector<5x128xf32>
    %182 = tpu.matmul %179, %181, %cst_75 {dimension_numbers = #tpu.dot_dimension_numbers<[1], [0], [0], [1], [0, 0, 1, 1], [], []>} : vector<5x32xbf16>, vector<32x128xbf16>, vector<5x128xf32> -> vector<5x128xf32>
    %c0_76 = arith.constant 0 : index
    %c0_77 = arith.constant 0 : index
    %c0_78 = arith.constant 0 : index
    %183 = vector.load %arg16[%c0_76, %c0_77, %c0_78] : memref<1x1x128xf32, #tpu.memory_space<vmem>>, vector<1x1x128xf32>
    %184 = vector.shape_cast %183 : vector<1x1x128xf32> to vector<1x128xf32>
    %185 = vector.broadcast %184 : vector<1x128xf32> to vector<5x128xf32>
    %186 = arith.addf %182, %185 : vector<5x128xf32>
    %187 = arith.mulf %186, %186 : vector<5x128xf32>
    %188 = arith.mulf %186, %187 : vector<5x128xf32>
    %cst_79 = arith.constant 4.471500e-02 : f32
    %189 = vector.broadcast %cst_79 : f32 to vector<5x128xf32>
    %190 = arith.mulf %189, %188 : vector<5x128xf32>
    %191 = arith.addf %186, %190 : vector<5x128xf32>
    %cst_80 = arith.constant 0.797884583 : f32
    %192 = vector.broadcast %cst_80 : f32 to vector<5x128xf32>
    %193 = arith.mulf %192, %191 : vector<5x128xf32>
    %194 = math.tanh %193 : vector<5x128xf32>
    %cst_81 = arith.constant 1.000000e+00 : f32
    %195 = vector.broadcast %cst_81 : f32 to vector<5x128xf32>
    %196 = arith.addf %195, %194 : vector<5x128xf32>
    %cst_82 = arith.constant 5.000000e-01 : f32
    %197 = vector.broadcast %cst_82 : f32 to vector<5x128xf32>
    %198 = arith.mulf %197, %196 : vector<5x128xf32>
    %199 = arith.mulf %186, %198 : vector<5x128xf32>
    %200 = arith.truncf %199 : vector<5x128xf32> to vector<5x128xbf16>
    %c0_83 = arith.constant 0 : index
    %c0_84 = arith.constant 0 : index
    %c0_85 = arith.constant 0 : index
    %201 = vector.load %arg17[%c0_83, %c0_84, %c0_85] : memref<1x128x32xbf16, #tpu.memory_space<vmem>>, vector<1x128x32xbf16>
    %202 = vector.shape_cast %201 : vector<1x128x32xbf16> to vector<128x32xbf16>
    %cst_86 = arith.constant dense<0.000000e+00> : vector<5x32xf32>
    %203 = tpu.matmul %200, %202, %cst_86 {dimension_numbers = #tpu.dot_dimension_numbers<[1], [0], [0], [1], [0, 0, 1, 1], [], []>} : vector<5x128xbf16>, vector<128x32xbf16>, vector<5x32xf32> -> vector<5x32xf32>
    %c0_87 = arith.constant 0 : index
    %c0_88 = arith.constant 0 : index
    %c0_89 = arith.constant 0 : index
    %204 = vector.load %arg18[%c0_87, %c0_88, %c0_89] : memref<1x1x32xf32, #tpu.memory_space<vmem>>, vector<1x1x32xf32>
    %205 = vector.shape_cast %204 : vector<1x1x32xf32> to vector<1x32xf32>
    %206 = vector.broadcast %205 : vector<1x32xf32> to vector<5x32xf32>
    %207 = arith.addf %203, %206 : vector<5x32xf32>
    %208 = arith.addf %152, %207 : vector<5x32xf32>
    %209 = vector.shape_cast %208 : vector<5x32xf32> to vector<1x5x32xf32>
    %c0_90 = arith.constant 0 : index
    %c0_91 = arith.constant 0 : index
    %c0_92 = arith.constant 0 : index
    %210 = vector.load %arg25[%c0_90, %c0_91, %c0_92] : memref<1x5x32xf32, #tpu.memory_space<vmem>>, vector<1x5x32xf32>
    tpu.vector_store %arg25[%c0_90, %c0_91, %c0_92], %209 {strides = array<i32>} : memref<1x5x32xf32, #tpu.memory_space<vmem>>, vector<1x5x32xf32>,
    %c1_i32 = arith.constant 1 : i32
    %211 = arith.cmpi eq, %arg1, %c1_i32 : i32
    %212 = arith.extui %211 : i1 to i32
    %c0_i32_93 = arith.constant 0 : i32
    %213 = arith.cmpi ne, %212, %c0_i32_93 : i32
    scf.if %213 {
      %214 = vector.shape_cast %208 : vector<5x32xf32> to vector<1x5x32xf32>
      %215 = vector.extract_strided_slice %214 {offsets = [0, 0, 0], sizes = [1, 1, 32], strides = [1, 1, 1]} : vector<1x5x32xf32> to vector<1x1x32xf32>
      %216 = vector.shape_cast %215 : vector<1x1x32xf32> to vector<1x32xf32>
      %c0_94 = arith.constant 0 : index
      %c0_95 = arith.constant 0 : index
      %217 = vector.load %arg19[%c0_94, %c0_95] : memref<1x32xf32, #tpu.memory_space<vmem>>, vector<1x32xf32>
      %c0_96 = arith.constant 0 : index
      %c0_97 = arith.constant 0 : index
      %218 = vector.load %arg20[%c0_96, %c0_97] : memref<1x32xf32, #tpu.memory_space<vmem>>, vector<1x32xf32>
      %cst_98 = arith.constant dense<0.000000e+00> : vector<1xf32>
      %219 = vector.multi_reduction <add>, %216, %cst_98 [1] : vector<1x32xf32> to vector<1xf32>
      %220 = vector.shape_cast %219 : vector<1xf32> to vector<1x1xf32>
      %cst_99 = arith.constant 3.200000e+01 : f32
      %221 = vector.broadcast %cst_99 : f32 to vector<1x1xf32>
      %222 = arith.divf %220, %221 : vector<1x1xf32>
      %223 = vector.broadcast %222 : vector<1x1xf32> to vector<1x32xf32>
      %224 = arith.subf %216, %223 : vector<1x32xf32>
      %225 = arith.mulf %224, %224 : vector<1x32xf32>
      %cst_100 = arith.constant dense<0.000000e+00> : vector<1xf32>
      %226 = vector.multi_reduction <add>, %225, %cst_100 [1] : vector<1x32xf32> to vector<1xf32>
      %227 = vector.shape_cast %226 : vector<1xf32> to vector<1x1xf32>
      %cst_101 = arith.constant 3.200000e+01 : f32
      %228 = vector.broadcast %cst_101 : f32 to vector<1x1xf32>
      %229 = arith.divf %227, %228 : vector<1x1xf32>
      %230 = vector.broadcast %222 : vector<1x1xf32> to vector<1x32xf32>
      %231 = arith.subf %216, %230 : vector<1x32xf32>
      %cst_102 = arith.constant 9.99999974E-6 : f32
      %232 = vector.broadcast %cst_102 : f32 to vector<1x1xf32>
      %233 = arith.addf %229, %232 : vector<1x1xf32>
      %234 = math.rsqrt %233 : vector<1x1xf32>
      %235 = vector.broadcast %234 : vector<1x1xf32> to vector<1x32xf32>
      %236 = arith.mulf %231, %235 : vector<1x32xf32>
      %237 = arith.mulf %236, %217 : vector<1x32xf32>
      %238 = arith.addf %237, %218 : vector<1x32xf32>
      %239 = arith.truncf %238 : vector<1x32xf32> to vector<1x32xbf16>
      %c0_103 = arith.constant 0 : index
      %c0_104 = arith.constant 0 : index
      %240 = vector.load %arg21[%c0_103, %c0_104] : memref<32x128xbf16, #tpu.memory_space<vmem>>, vector<32x128xbf16>
      %cst_105 = arith.constant dense<0.000000e+00> : vector<1x128xf32>
      %241 = tpu.matmul %239, %240, %cst_105 {dimension_numbers = #tpu.dot_dimension_numbers<[1], [0], [0], [1], [0, 0, 1, 1], [], []>} : vector<1x32xbf16>, vector<32x128xbf16>, vector<1x128xf32> -> vector<1x128xf32>
      %c0_106 = arith.constant 0 : index
      %c0_107 = arith.constant 0 : index
      %242 = vector.load %arg22[%c0_106, %c0_107] : memref<1x128xf32, #tpu.memory_space<vmem>>, vector<1x128xf32>
      %243 = arith.addf %241, %242 : vector<1x128xf32>
      %244 = vector.shape_cast %243 : vector<1x128xf32> to vector<1x1x128xf32>
      %c0_108 = arith.constant 0 : index
      %c0_109 = arith.constant 0 : index
      %c0_110 = arith.constant 0 : index
      %245 = vector.load %arg24[%c0_108, %c0_109, %c0_110] : memref<1x1x128xf32, #tpu.memory_space<vmem>>, vector<1x1x128xf32>
      tpu.vector_store %arg24[%c0_108, %c0_109, %c0_110], %244 {strides = array<i32>} : memref<1x1x128xf32, #tpu.memory_space<vmem>>, vector<1x1x128xf32>,
    } else {
    }
    return
  }
  func.func @transform_0(%arg0: i32, %arg1: i32) -> (i32, i32, i32) {
    %c0_i32 = arith.constant 0 : i32
    %c0_i32_0 = arith.constant 0 : i32
    %c0_i32_1 = arith.constant 0 : i32
    return %arg0, %c0_i32, %c0_i32_0 : i32, i32, i32
  }
  func.func @transform_1(%arg0: i32, %arg1: i32) -> (i32, i32) {
    %c0_i32 = arith.constant 0 : i32
    %c0_i32_0 = arith.constant 0 : i32
    %c0_i32_1 = arith.constant 0 : i32
    return %c0_i32, %c0_i32_0 : i32, i32
  }
  func.func @transform_2(%arg0: i32, %arg1: i32) -> (i32, i32) {
    %c0_i32 = arith.constant 0 : i32
    %c0_i32_0 = arith.constant 0 : i32
    %c0_i32_1 = arith.constant 0 : i32
    return %c0_i32, %c0_i32_0 : i32, i32
  }
  func.func @transform_3(%arg0: i32, %arg1: i32) -> (i32, i32) {
    %c0_i32 = arith.constant 0 : i32
    %c0_i32_0 = arith.constant 0 : i32
    %c0_i32_1 = arith.constant 0 : i32
    return %c0_i32, %c0_i32_0 : i32, i32
  }
  func.func @transform_4(%arg0: i32, %arg1: i32) -> (i32, i32) {
    %c0_i32 = arith.constant 0 : i32
    %c0_i32_0 = arith.constant 0 : i32
    %c0_i32_1 = arith.constant 0 : i32
    return %c0_i32, %c0_i32_0 : i32, i32
  }
  func.func @transform_5(%arg0: i32, %arg1: i32) -> (i32, i32, i32) {
    %c0_i32 = arith.constant 0 : i32
    %c0_i32_0 = arith.constant 0 : i32
    %c0_i32_1 = arith.constant 0 : i32
    return %arg1, %c0_i32, %c0_i32_0 : i32, i32, i32
  }
  func.func @transform_6(%arg0: i32, %arg1: i32) -> (i32, i32, i32) {
    %c0_i32 = arith.constant 0 : i32
    %c0_i32_0 = arith.constant 0 : i32
    %c0_i32_1 = arith.constant 0 : i32
    return %arg1, %c0_i32, %c0_i32_0 : i32, i32, i32
  }
  func.func @transform_7(%arg0: i32, %arg1: i32) -> (i32, i32, i32) {
    %c0_i32 = arith.constant 0 : i32
    %c0_i32_0 = arith.constant 0 : i32
    %c0_i32_1 = arith.constant 0 : i32
    return %arg1, %c0_i32, %c0_i32_0 : i32, i32, i32
  }
  func.func @transform_8(%arg0: i32, %arg1: i32) -> (i32, i32, i32) {
    %c0_i32 = arith.constant 0 : i32
    %c0_i32_0 = arith.constant 0 : i32
    %c0_i32_1 = arith.constant 0 : i32
    return %arg1, %c0_i32, %c0_i32_0 : i32, i32, i32
  }
  func.func @transform_9(%arg0: i32, %arg1: i32) -> (i32, i32, i32) {
    %c0_i32 = arith.constant 0 : i32
    %c0_i32_0 = arith.constant 0 : i32
    %c0_i32_1 = arith.constant 0 : i32
    return %arg1, %c0_i32, %c0_i32_0 : i32, i32, i32
  }
  func.func @transform_10(%arg0: i32, %arg1: i32) -> (i32, i32, i32) {
    %c0_i32 = arith.constant 0 : i32
    %c0_i32_0 = arith.constant 0 : i32
    %c0_i32_1 = arith.constant 0 : i32
    return %arg1, %c0_i32, %c0_i32_0 : i32, i32, i32
  }
  func.func @transform_11(%arg0: i32, %arg1: i32) -> (i32, i32, i32) {
    %c0_i32 = arith.constant 0 : i32
    %c0_i32_0 = arith.constant 0 : i32
    %c0_i32_1 = arith.constant 0 : i32
    return %arg1, %c0_i32, %c0_i32_0 : i32, i32, i32
  }
  func.func @transform_12(%arg0: i32, %arg1: i32) -> (i32, i32, i32) {
    %c0_i32 = arith.constant 0 : i32
    %c0_i32_0 = arith.constant 0 : i32
    %c0_i32_1 = arith.constant 0 : i32
    return %arg1, %c0_i32, %c0_i32_0 : i32, i32, i32
  }
  func.func @transform_13(%arg0: i32, %arg1: i32) -> (i32, i32, i32) {
    %c0_i32 = arith.constant 0 : i32
    %c0_i32_0 = arith.constant 0 : i32
    %c0_i32_1 = arith.constant 0 : i32
    return %arg1, %c0_i32, %c0_i32_0 : i32, i32, i32
  }
  func.func @transform_14(%arg0: i32, %arg1: i32) -> (i32, i32, i32) {
    %c0_i32 = arith.constant 0 : i32
    %c0_i32_0 = arith.constant 0 : i32
    %c0_i32_1 = arith.constant 0 : i32
    return %arg1, %c0_i32, %c0_i32_0 : i32, i32, i32
  }
  func.func @transform_15(%arg0: i32, %arg1: i32) -> (i32, i32, i32) {
    %c0_i32 = arith.constant 0 : i32
    %c0_i32_0 = arith.constant 0 : i32
    %c0_i32_1 = arith.constant 0 : i32
    return %arg1, %c0_i32, %c0_i32_0 : i32, i32, i32
  }
  func.func @transform_16(%arg0: i32, %arg1: i32) -> (i32, i32, i32) {
    %c0_i32 = arith.constant 0 : i32
    %c0_i32_0 = arith.constant 0 : i32
    %c0_i32_1 = arith.constant 0 : i32
    return %arg1, %c0_i32, %c0_i32_0 : i32, i32, i32
  }
  func.func @transform_17(%arg0: i32, %arg1: i32) -> (i32, i32) {
    %c0_i32 = arith.constant 0 : i32
    %c0_i32_0 = arith.constant 0 : i32
    %c0_i32_1 = arith.constant 0 : i32
    return %c0_i32, %c0_i32_0 : i32, i32
  }
  func.func @transform_18(%arg0: i32, %arg1: i32) -> (i32, i32) {
    %c0_i32 = arith.constant 0 : i32
    %c0_i32_0 = arith.constant 0 : i32
    %c0_i32_1 = arith.constant 0 : i32
    return %c0_i32, %c0_i32_0 : i32, i32
  }
  func.func @transform_19(%arg0: i32, %arg1: i32) -> (i32, i32) {
    %c0_i32 = arith.constant 0 : i32
    %c0_i32_0 = arith.constant 0 : i32
    %c0_i32_1 = arith.constant 0 : i32
    return %c0_i32, %c0_i32_0 : i32, i32
  }
  func.func @transform_20(%arg0: i32, %arg1: i32) -> (i32, i32) {
    %c0_i32 = arith.constant 0 : i32
    %c0_i32_0 = arith.constant 0 : i32
    %c0_i32_1 = arith.constant 0 : i32
    return %c0_i32, %c0_i32_0 : i32, i32
  }
  func.func @transform_21(%arg0: i32, %arg1: i32) -> (i32, i32, i32, i32) {
    %c0_i32 = arith.constant 0 : i32
    %c0_i32_0 = arith.constant 0 : i32
    %c0_i32_1 = arith.constant 0 : i32
    return %arg1, %arg0, %c0_i32, %c0_i32_0 : i32, i32, i32, i32
  }
  func.func @transform_22(%arg0: i32, %arg1: i32) -> (i32, i32, i32) {
    %c0_i32 = arith.constant 0 : i32
    %c0_i32_0 = arith.constant 0 : i32
    %c0_i32_1 = arith.constant 0 : i32
    return %arg0, %c0_i32, %c0_i32_0 : i32, i32, i32
  }
}

</mosaic_0001>

<llo_original>
// kernel: tpu_custom_call.1
$region0: #{tpu_custom_call.1}
  #allocation0 [shape = 'u32[]', space=smem, size = 0x4, offset = 0x4, fixed_abs, tag = 'smem constant byte address 0x4 - core index']
  #allocation1 [shape = 'u32[72,128]{1,0:T(1,128)}', space=vmem, size = 0x9000, scoped, tag = 'internal scratch']
  #allocation2 [shape = 'f32[1,5,32]{2,1,0:T(8,128)}', space=vmem, size = 0x1000, scoped, tag = 'scratch operand']
  %s0 = inlined_call_operand.vmem [shape: bf16[2,4,16], index: 0, kind: input, shape index: {}]
  %s1 = inlined_call_operand.vmem [shape: bf16[16,32], index: 1, kind: input, shape index: {}]
  %s2 = inlined_call_operand.vmem [shape: f32[1,32], index: 2, kind: input, shape index: {}]
  %s3 = inlined_call_operand.vmem [shape: f32[1,32], index: 3, kind: input, shape index: {}]
  %s4 = inlined_call_operand.vmem [shape: f32[5,32], index: 4, kind: input, shape index: {}]
  %s5 = inlined_call_operand.vmem [shape: f32[2,1,32], index: 5, kind: input, shape index: {}]
  %s6 = inlined_call_operand.vmem [shape: f32[2,1,32], index: 6, kind: input, shape index: {}]
  %s7 = inlined_call_operand.vmem [shape: bf16[2,32,96], index: 7, kind: input, shape index: {}]
  %s8 = inlined_call_operand.vmem [shape: f32[2,1,96], index: 8, kind: input, shape index: {}]
  %s9 = inlined_call_operand.vmem [shape: bf16[2,32,32], index: 9, kind: input, shape index: {}]
  %s10 = inlined_call_operand.vmem [shape: f32[2,1,32], index: 10, kind: input, shape index: {}]
  %s11 = inlined_call_operand.vmem [shape: f32[2,1,32], index: 11, kind: input, shape index: {}]
  %s12 = inlined_call_operand.vmem [shape: f32[2,1,32], index: 12, kind: input, shape index: {}]
  %s13 = inlined_call_operand.vmem [shape: bf16[2,32,128], index: 13, kind: input, shape index: {}]
  %s14 = inlined_call_operand.vmem [shape: f32[2,1,128], index: 14, kind: input, shape index: {}]
  %s15 = inlined_call_operand.vmem [shape: bf16[2,128,32], index: 15, kind: input, shape index: {}]
  %s16 = inlined_call_operand.vmem [shape: f32[2,1,32], index: 16, kind: input, shape index: {}]
  %s17 = inlined_call_operand.vmem [shape: f32[1,32], index: 17, kind: input, shape index: {}]
  %s18 = inlined_call_operand.vmem [shape: f32[1,32], index: 18, kind: input, shape index: {}]
  %s19 = inlined_call_operand.vmem [shape: bf16[32,128], index: 19, kind: input, shape index: {}]
  %s20 = inlined_call_operand.vmem [shape: f32[1,128], index: 20, kind: input, shape index: {}]
  %s21 = inlined_call_operand.vmem [shape: f32[8,2,5,128], index: 21, kind: output, shape index: {0}]
  %s22 = inlined_call_operand.hbm [shape: f32[2,1,128], index: 22, kind: output, shape index: {1}]
  %23 = xla_tuple %s21, %s22
  %s24 = sld [smem:[#allocation0]]
  $region167: #{tpu_custom_call.1} parent=0
    _
  %s26 = ssub.s32 1, %s24
  %s27 = scalar_select 0, %s26, %s24
  $region1: #{tpu_custom_call.1} parent=0
    #allocation3 [shape = 'u8[32768]{0}', space=vmem, size = 0x8000, scoped, tag = 'output window, operand 0']
    #allocation4 [shape = 'u8[1024]{0}', space=vmem, size = 0x400, scoped, tag = 'output window, operand 1']
    #allocation5 [shape = 's32[2]{0}', space=sflag, size = 0x8, scoped, tag = 'scoped memory for tpu_custom_call.1']
    %28 = vsyncpa [#allocation5], 0
    %s29 = scalar_lea.sflag [#allocation5], 1
    %30 = vsyncpa %s29, 0
    loop: start=0, step=1, limit=6
    $region2: #{tpu_custom_call.1} parent=1 // loop_pre_header
      _
    $region3: #{tpu_custom_call.1} parent=1 // loop_header
      %s32 = sphi 0, %s36
      %p33 = scmp.ge.s32.totalorder %s32, 6
      %s39 = sphi 0, %s51
      %s40 = sphi 0, %s47
      %s41 = sphi 0, %s39
      %s42 = sphi 0, %s40
      %s43 = sphi 0, %s41
      %s44 = sphi 0, %s42
      %s54 = sphi 0, %s56
      %s57 = sphi 0, %s54
      %s58 = sphi 0, %s57
      %s74 = sphi 0, %s58
      %s78 = sphi 0, %s78
      %s80 = sphi 0, %s78
      %s81 = sphi 0, %s80
      %s95 = sphi 0, %s81
      %s99 = sphi 0, %s99
      %s101 = sphi 0, %s99
      %s102 = sphi 0, %s101
      %s116 = sphi 0, %s102
      %s120 = sphi 0, %s120
      %s122 = sphi 0, %s120
      %s123 = sphi 0, %s122
      %s137 = sphi 0, %s123
      %s141 = sphi 0, %s141
      %s143 = sphi 0, %s141
      %s144 = sphi 0, %s143
      %s158 = sphi 0, %s144
      %s164 = sphi 0, %s166
      %s167 = sphi 0, %s164
      %s168 = sphi 0, %s167
      %s184 = sphi 0, %s168
      %s190 = sphi 0, %s192
      %s193 = sphi 0, %s190
      %s194 = sphi 0, %s193
      %s210 = sphi 0, %s194
      %s216 = sphi 0, %s218
      %s219 = sphi 0, %s216
      %s220 = sphi 0, %s219
      %s236 = sphi 0, %s220
      %s242 = sphi 0, %s244
      %s245 = sphi 0, %s242
      %s246 = sphi 0, %s245
      %s262 = sphi 0, %s246
      %s268 = sphi 0, %s270
      %s271 = sphi 0, %s268
      %s272 = sphi 0, %s271
      %s288 = sphi 0, %s272
      %s294 = sphi 0, %s296
      %s297 = sphi 0, %s294
      %s298 = sphi 0, %s297
      %s314 = sphi 0, %s298
      %s320 = sphi 0, %s322
      %s323 = sphi 0, %s320
      %s324 = sphi 0, %s323
      %s340 = sphi 0, %s324
      %s346 = sphi 0, %s348
      %s349 = sphi 0, %s346
      %s350 = sphi 0, %s349
      %s366 = sphi 0, %s350
      %s372 = sphi 0, %s374
      %s375 = sphi 0, %s372
      %s376 = sphi 0, %s375
      %s392 = sphi 0, %s376
      %s398 = sphi 0, %s400
      %s401 = sphi 0, %s398
      %s402 = sphi 0, %s401
      %s418 = sphi 0, %s402
      %s424 = sphi 0, %s426
      %s427 = sphi 0, %s424
      %s428 = sphi 0, %s427
      %s444 = sphi 0, %s428
      %s450 = sphi 0, %s452
      %s453 = sphi 0, %s450
      %s454 = sphi 0, %s453
      %s470 = sphi 0, %s454
      %s474 = sphi 0, %s474
      %s476 = sphi 0, %s474
      %s477 = sphi 0, %s476
      %s491 = sphi 0, %s477
      %s495 = sphi 0, %s495
      %s497 = sphi 0, %s495
      %s498 = sphi 0, %s497
      %s512 = sphi 0, %s498
      %s516 = sphi 0, %s516
      %s518 = sphi 0, %s516
      %s519 = sphi 0, %s518
      %s533 = sphi 0, %s519
      %s537 = sphi 0, %s537
      %s539 = sphi 0, %s537
      %s540 = sphi 0, %s539
      %s554 = sphi 0, %s540
      %s562 = sphi 0, %s564
      %s565 = sphi 0, %s562
      %s566 = sphi 0, %s565
      %s582 = sphi 0, %s566
      %s588 = sphi 0, %s590
      %s591 = sphi 0, %s588
      %s592 = sphi 0, %s591
      %s608 = sphi 0, %s592
    $region4: #{tpu_custom_call.1} parent=1 // loop_header_branch
      %35 = sbr.rel (%p33) target = $region8
    $region5: #{tpu_custom_call.1} parent=1 // loop_body
      %s37 = ssub.s32 %s32, 1
      %s38 = ssub.s32 %s32, 2
      %s45 = sadd.s32 1, %s40
      %p46 = scmp.ge.s32.totalorder %s45, 2
      %s47 = scalar_select %p46, 0, %s45
      %s48 = sadd.s32 1, %s39
      %s49 = scalar_select %p46, %s48, %s39
      %p50 = scmp.ge.s32.totalorder %s49, 2
      %s51 = scalar_select %p50, 0, %s49
      %s52 = ssub.s32 %s39, %s51
      %p53 = scmp.eq.s32.totalorder %s52, 0
      %s55 = sadd.s32 %s54, 1
      %s56 = scalar_select %p53, %s54, %s55
      %p59 = pneg %p53
      %p60 = scmp.eq.s32.totalorder %s32, 3
      %p61 = por %p59, %p60
      %p62 = scmp.ne.s32.totalorder %s54, %s57
      %p63 = scmp.eq.s32.totalorder %s32, 0
      %p64 = por %p62, %p63
      %p65 = scmp.ne.s32.totalorder %s54, %s57
      %p66 = scmp.eq.s32.totalorder %s37, 3
      %p67 = por %p65, %p66
      %p68 = scmp.ne.s32.totalorder %s57, %s58
      %p69 = scmp.eq.s32.totalorder %s37, 0
      %p70 = por %p68, %p69
      %p71 = scmp.ne.s32.totalorder %s57, %s58
      %p72 = scmp.eq.s32.totalorder %s38, 3
      %p73 = por %p71, %p72
      %p75 = scmp.ne.s32.totalorder %s58, %s74
      %p76 = scmp.eq.s32.totalorder %s38, 0
      %p77 = por %p75, %p76
      %s79 = sadd.s32 %s78, 1
      %p82 = scmp.eq.s32.totalorder %s32, 3
      %p83 = scmp.ne.s32.totalorder %s78, %s80
      %p84 = scmp.eq.s32.totalorder %s32, 0
      %p85 = por %p83, %p84
      %p86 = scmp.ne.s32.totalorder %s78, %s80
      %p87 = scmp.eq.s32.totalorder %s37, 3
      %p88 = por %p86, %p87
      %p89 = scmp.ne.s32.totalorder %s80, %s81
      %p90 = scmp.eq.s32.totalorder %s37, 0
      %p91 = por %p89, %p90
      %p92 = scmp.ne.s32.totalorder %s80, %s81
      %p93 = scmp.eq.s32.totalorder %s38, 3
      %p94 = por %p92, %p93
      %p96 = scmp.ne.s32.totalorder %s81, %s95
      %p97 = scmp.eq.s32.totalorder %s38, 0
      %p98 = por %p96, %p97
      %s100 = sadd.s32 %s99, 1
      %p103 = scmp.eq.s32.totalorder %s32, 3
      %p104 = scmp.ne.s32.totalorder %s99, %s101
      %p105 = scmp.eq.s32.totalorder %s32, 0
      %p106 = por %p104, %p105
      %p107 = scmp.ne.s32.totalorder %s99, %s101
      %p108 = scmp.eq.s32.totalorder %s37, 3
      %p109 = por %p107, %p108
      %p110 = scmp.ne.s32.totalorder %s101, %s102
      %p111 = scmp.eq.s32.totalorder %s37, 0
      %p112 = por %p110, %p111
      %p113 = scmp.ne.s32.totalorder %s101, %s102
      %p114 = scmp.eq.s32.totalorder %s38, 3
      %p115 = por %p113, %p114
      %p117 = scmp.ne.s32.totalorder %s102, %s116
      %p118 = scmp.eq.s32.totalorder %s38, 0
      %p119 = por %p117, %p118
      %s121 = sadd.s32 %s120, 1
      %p124 = scmp.eq.s32.totalorder %s32, 3
      %p125 = scmp.ne.s32.totalorder %s120, %s122
      %p126 = scmp.eq.s32.totalorder %s32, 0
      %p127 = por %p125, %p126
      %p128 = scmp.ne.s32.totalorder %s120, %s122
      %p129 = scmp.eq.s32.totalorder %s37, 3
      %p130 = por %p128, %p129
      %p131 = scmp.ne.s32.totalorder %s122, %s123
      %p132 = scmp.eq.s32.totalorder %s37, 0
      %p133 = por %p131, %p132
      %p134 = scmp.ne.s32.totalorder %s122, %s123
      %p135 = scmp.eq.s32.totalorder %s38, 3
      %p136 = por %p134, %p135
      %p138 = scmp.ne.s32.totalorder %s123, %s137
      %p139 = scmp.eq.s32.totalorder %s38, 0
      %p140 = por %p138, %p139
      %s142 = sadd.s32 %s141, 1
      %p145 = scmp.eq.s32.totalorder %s32, 3
      %p146 = scmp.ne.s32.totalorder %s141, %s143
      %p147 = scmp.eq.s32.totalorder %s32, 0
      %p148 = por %p146, %p147
      %p149 = scmp.ne.s32.totalorder %s141, %s143
      %p150 = scmp.eq.s32.totalorder %s37, 3
      %p151 = por %p149, %p150
      %p152 = scmp.ne.s32.totalorder %s143, %s144
      %p153 = scmp.eq.s32.totalorder %s37, 0
      %p154 = por %p152, %p153
      %p155 = scmp.ne.s32.totalorder %s143, %s144
      %p156 = scmp.eq.s32.totalorder %s38, 3
      %p157 = por %p155, %p156
      %p159 = scmp.ne.s32.totalorder %s144, %s158
      %p160 = scmp.eq.s32.totalorder %s38, 0
      %p161 = por %p159, %p160
      %s162 = ssub.s32 %s40, %s47
      %p163 = scmp.eq.s32.totalorder %s162, 0
      %s165 = sadd.s32 %s164, 1
      %s166 = scalar_select %p163, %s164, %s165
      %p169 = pneg %p163
      %p170 = scmp.eq.s32.totalorder %s32, 3
      %p171 = por %p169, %p170
      %p172 = scmp.ne.s32.totalorder %s164, %s167
      %p173 = scmp.eq.s32.totalorder %s32, 0
      %p174 = por %p172, %p173
      %p175 = scmp.ne.s32.totalorder %s164, %s167
      %p176 = scmp.eq.s32.totalorder %s37, 3
      %p177 = por %p175, %p176
      %p178 = scmp.ne.s32.totalorder %s167, %s168
      %p179 = scmp.eq.s32.totalorder %s37, 0
      %p180 = por %p178, %p179
      %p181 = scmp.ne.s32.totalorder %s167, %s168
      %p182 = scmp.eq.s32.totalorder %s38, 3
      %p183 = por %p181, %p182
      %p185 = scmp.ne.s32.totalorder %s168, %s184
      %p186 = scmp.eq.s32.totalorder %s38, 0
      %p187 = por %p185, %p186
      %s188 = ssub.s32 %s40, %s47
      %p189 = scmp.eq.s32.totalorder %s188, 0
      %s191 = sadd.s32 %s190, 1
      %s192 = scalar_select %p189, %s190, %s191
      %p195 = pneg %p189
      %p196 = scmp.eq.s32.totalorder %s32, 3
      %p197 = por %p195, %p196
      %p198 = scmp.ne.s32.totalorder %s190, %s193
      %p199 = scmp.eq.s32.totalorder %s32, 0
      %p200 = por %p198, %p199
      %p201 = scmp.ne.s32.totalorder %s190, %s193
      %p202 = scmp.eq.s32.totalorder %s37, 3
      %p203 = por %p201, %p202
      %p204 = scmp.ne.s32.totalorder %s193, %s194
      %p205 = scmp.eq.s32.totalorder %s37, 0
      %p206 = por %p204, %p205
      %p207 = scmp.ne.s32.totalorder %s193, %s194
      %p208 = scmp.eq.s32.totalorder %s38, 3
      %p209 = por %p207, %p208
      %p211 = scmp.ne.s32.totalorder %s194, %s210
      %p212 = scmp.eq.s32.totalorder %s38, 0
      %p213 = por %p211, %p212
      %s214 = ssub.s32 %s40, %s47
      %p215 = scmp.eq.s32.totalorder %s214, 0
      %s217 = sadd.s32 %s216, 1
      %s218 = scalar_select %p215, %s216, %s217
      %p221 = pneg %p215
      %p222 = scmp.eq.s32.totalorder %s32, 3
      %p223 = por %p221, %p222
      %p224 = scmp.ne.s32.totalorder %s216, %s219
      %p225 = scmp.eq.s32.totalorder %s32, 0
      %p226 = por %p224, %p225
      %p227 = scmp.ne.s32.totalorder %s216, %s219
      %p228 = scmp.eq.s32.totalorder %s37, 3
      %p229 = por %p227, %p228
      %p230 = scmp.ne.s32.totalorder %s219, %s220
      %p231 = scmp.eq.s32.totalorder %s37, 0
      %p232 = por %p230, %p231
      %p233 = scmp.ne.s32.totalorder %s219, %s220
      %p234 = scmp.eq.s32.totalorder %s38, 3
      %p235 = por %p233, %p234
      %p237 = scmp.ne.s32.totalorder %s220, %s236
      %p238 = scmp.eq.s32.totalorder %s38, 0
      %p239 = por %p237, %p238
      %s240 = ssub.s32 %s40, %s47
      %p241 = scmp.eq.s32.totalorder %s240, 0
      %s243 = sadd.s32 %s242, 1
      %s244 = scalar_select %p241, %s242, %s243
      %p247 = pneg %p241
      %p248 = scmp.eq.s32.totalorder %s32, 3
      %p249 = por %p247, %p248
      %p250 = scmp.ne.s32.totalorder %s242, %s245
      %p251 = scmp.eq.s32.totalorder %s32, 0
      %p252 = por %p250, %p251
      %p253 = scmp.ne.s32.totalorder %s242, %s245
      %p254 = scmp.eq.s32.totalorder %s37, 3
      %p255 = por %p253, %p254
      %p256 = scmp.ne.s32.totalorder %s245, %s246
      %p257 = scmp.eq.s32.totalorder %s37, 0
      %p258 = por %p256, %p257
      %p259 = scmp.ne.s32.totalorder %s245, %s246
      %p260 = scmp.eq.s32.totalorder %s38, 3
      %p261 = por %p259, %p260
      %p263 = scmp.ne.s32.totalorder %s246, %s262
      %p264 = scmp.eq.s32.totalorder %s38, 0
      %p265 = por %p263, %p264
      %s266 = ssub.s32 %s40, %s47
      %p267 = scmp.eq.s32.totalorder %s266, 0
      %s269 = sadd.s32 %s268, 1
      %s270 = scalar_select %p267, %s268, %s269
      %p273 = pneg %p267
      %p274 = scmp.eq.s32.totalorder %s32, 3
      %p275 = por %p273, %p274
      %p276 = scmp.ne.s32.totalorder %s268, %s271
      %p277 = scmp.eq.s32.totalorder %s32, 0
      %p278 = por %p276, %p277
      %p279 = scmp.ne.s32.totalorder %s268, %s271
      %p280 = scmp.eq.s32.totalorder %s37, 3
      %p281 = por %p279, %p280
      %p282 = scmp.ne.s32.totalorder %s271, %s272
      %p283 = scmp.eq.s32.totalorder %s37, 0
      %p284 = por %p282, %p283
      %p285 = scmp.ne.s32.totalorder %s271, %s272
      %p286 = scmp.eq.s32.totalorder %s38, 3
      %p287 = por %p285, %p286
      %p289 = scmp.ne.s32.totalorder %s272, %s288
      %p290 = scmp.eq.s32.totalorder %s38, 0
      %p291 = por %p289, %p290
      %s292 = ssub.s32 %s40, %s47
      %p293 = scmp.eq.s32.totalorder %s292, 0
      %s295 = sadd.s32 %s294, 1
      %s296 = scalar_select %p293, %s294, %s295
      %p299 = pneg %p293
      %p300 = scmp.eq.s32.totalorder %s32, 3
      %p301 = por %p299, %p300
      %p302 = scmp.ne.s32.totalorder %s294, %s297
      %p303 = scmp.eq.s32.totalorder %s32, 0
      %p304 = por %p302, %p303
      %p305 = scmp.ne.s32.totalorder %s294, %s297
      %p306 = scmp.eq.s32.totalorder %s37, 3
      %p307 = por %p305, %p306
      %p308 = scmp.ne.s32.totalorder %s297, %s298
      %p309 = scmp.eq.s32.totalorder %s37, 0
      %p310 = por %p308, %p309
      %p311 = scmp.ne.s32.totalorder %s297, %s298
      %p312 = scmp.eq.s32.totalorder %s38, 3
      %p313 = por %p311, %p312
      %p315 = scmp.ne.s32.totalorder %s298, %s314
      %p316 = scmp.eq.s32.totalorder %s38, 0
      %p317 = por %p315, %p316
      %s318 = ssub.s32 %s40, %s47
      %p319 = scmp.eq.s32.totalorder %s318, 0
      %s321 = sadd.s32 %s320, 1
      %s322 = scalar_select %p319, %s320, %s321
      %p325 = pneg %p319
      %p326 = scmp.eq.s32.totalorder %s32, 3
      %p327 = por %p325, %p326
      %p328 = scmp.ne.s32.totalorder %s320, %s323
      %p329 = scmp.eq.s32.totalorder %s32, 0
      %p330 = por %p328, %p329
      %p331 = scmp.ne.s32.totalorder %s320, %s323
      %p332 = scmp.eq.s32.totalorder %s37, 3
      %p333 = por %p331, %p332
      %p334 = scmp.ne.s32.totalorder %s323, %s324
      %p335 = scmp.eq.s32.totalorder %s37, 0
      %p336 = por %p334, %p335
      %p337 = scmp.ne.s32.totalorder %s323, %s324
      %p338 = scmp.eq.s32.totalorder %s38, 3
      %p339 = por %p337, %p338
      %p341 = scmp.ne.s32.totalorder %s324, %s340
      %p342 = scmp.eq.s32.totalorder %s38, 0
      %p343 = por %p341, %p342
      %s344 = ssub.s32 %s40, %s47
      %p345 = scmp.eq.s32.totalorder %s344, 0
      %s347 = sadd.s32 %s346, 1
      %s348 = scalar_select %p345, %s346, %s347
      %p351 = pneg %p345
      %p352 = scmp.eq.s32.totalorder %s32, 3
      %p353 = por %p351, %p352
      %p354 = scmp.ne.s32.totalorder %s346, %s349
      %p355 = scmp.eq.s32.totalorder %s32, 0
      %p356 = por %p354, %p355
      %p357 = scmp.ne.s32.totalorder %s346, %s349
      %p358 = scmp.eq.s32.totalorder %s37, 3
      %p359 = por %p357, %p358
      %p360 = scmp.ne.s32.totalorder %s349, %s350
      %p361 = scmp.eq.s32.totalorder %s37, 0
      %p362 = por %p360, %p361
      %p363 = scmp.ne.s32.totalorder %s349, %s350
      %p364 = scmp.eq.s32.totalorder %s38, 3
      %p365 = por %p363, %p364
      %p367 = scmp.ne.s32.totalorder %s350, %s366
      %p368 = scmp.eq.s32.totalorder %s38, 0
      %p369 = por %p367, %p368
      %s370 = ssub.s32 %s40, %s47
      %p371 = scmp.eq.s32.totalorder %s370, 0
      %s373 = sadd.s32 %s372, 1
      %s374 = scalar_select %p371, %s372, %s373
      %p377 = pneg %p371
      %p378 = scmp.eq.s32.totalorder %s32, 3
      %p379 = por %p377, %p378
      %p380 = scmp.ne.s32.totalorder %s372, %s375
      %p381 = scmp.eq.s32.totalorder %s32, 0
      %p382 = por %p380, %p381
      %p383 = scmp.ne.s32.totalorder %s372, %s375
      %p384 = scmp.eq.s32.totalorder %s37, 3
      %p385 = por %p383, %p384
      %p386 = scmp.ne.s32.totalorder %s375, %s376
      %p387 = scmp.eq.s32.totalorder %s37, 0
      %p388 = por %p386, %p387
      %p389 = scmp.ne.s32.totalorder %s375, %s376
      %p390 = scmp.eq.s32.totalorder %s38, 3
      %p391 = por %p389, %p390
      %p393 = scmp.ne.s32.totalorder %s376, %s392
      %p394 = scmp.eq.s32.totalorder %s38, 0
      %p395 = por %p393, %p394
      %s396 = ssub.s32 %s40, %s47
      %p397 = scmp.eq.s32.totalorder %s396, 0
      %s399 = sadd.s32 %s398, 1
      %s400 = scalar_select %p397, %s398, %s399
      %p403 = pneg %p397
      %p404 = scmp.eq.s32.totalorder %s32, 3
      %p405 = por %p403, %p404
      %p406 = scmp.ne.s32.totalorder %s398, %s401
      %p407 = scmp.eq.s32.totalorder %s32, 0
      %p408 = por %p406, %p407
      %p409 = scmp.ne.s32.totalorder %s398, %s401
      %p410 = scmp.eq.s32.totalorder %s37, 3
      %p411 = por %p409, %p410
      %p412 = scmp.ne.s32.totalorder %s401, %s402
      %p413 = scmp.eq.s32.totalorder %s37, 0
      %p414 = por %p412, %p413
      %p415 = scmp.ne.s32.totalorder %s401, %s402
      %p416 = scmp.eq.s32.totalorder %s38, 3
      %p417 = por %p415, %p416
      %p419 = scmp.ne.s32.totalorder %s402, %s418
      %p420 = scmp.eq.s32.totalorder %s38, 0
      %p421 = por %p419, %p420
      %s422 = ssub.s32 %s40, %s47
      %p423 = scmp.eq.s32.totalorder %s422, 0
      %s425 = sadd.s32 %s424, 1
      %s426 = scalar_select %p423, %s424, %s425
      %p429 = pneg %p423
      %p430 = scmp.eq.s32.totalorder %s32, 3
      %p431 = por %p429, %p430
      %p432 = scmp.ne.s32.totalorder %s424, %s427
      %p433 = scmp.eq.s32.totalorder %s32, 0
      %p434 = por %p432, %p433
      %p435 = scmp.ne.s32.totalorder %s424, %s427
      %p436 = scmp.eq.s32.totalorder %s37, 3
      %p437 = por %p435, %p436
      %p438 = scmp.ne.s32.totalorder %s427, %s428
      %p439 = scmp.eq.s32.totalorder %s37, 0
      %p440 = por %p438, %p439
      %p441 = scmp.ne.s32.totalorder %s427, %s428
      %p442 = scmp.eq.s32.totalorder %s38, 3
      %p443 = por %p441, %p442
      %p445 = scmp.ne.s32.totalorder %s428, %s444
      %p446 = scmp.eq.s32.totalorder %s38, 0
      %p447 = por %p445, %p446
      %s448 = ssub.s32 %s40, %s47
      %p449 = scmp.eq.s32.totalorder %s448, 0
      %s451 = sadd.s32 %s450, 1
      %s452 = scalar_select %p449, %s450, %s451
      %p455 = pneg %p449
      %p456 = scmp.eq.s32.totalorder %s32, 3
      %p457 = por %p455, %p456
      %p458 = scmp.ne.s32.totalorder %s450, %s453
      %p459 = scmp.eq.s32.totalorder %s32, 0
      %p460 = por %p458, %p459
      %p461 = scmp.ne.s32.totalorder %s450, %s453
      %p462 = scmp.eq.s32.totalorder %s37, 3
      %p463 = por %p461, %p462
      %p464 = scmp.ne.s32.totalorder %s453, %s454
      %p465 = scmp.eq.s32.totalorder %s37, 0
      %p466 = por %p464, %p465
      %p467 = scmp.ne.s32.totalorder %s453, %s454
      %p468 = scmp.eq.s32.totalorder %s38, 3
      %p469 = por %p467, %p468
      %p471 = scmp.ne.s32.totalorder %s454, %s470
      %p472 = scmp.eq.s32.totalorder %s38, 0
      %p473 = por %p471, %p472
      %s475 = sadd.s32 %s474, 1
      %p478 = scmp.eq.s32.totalorder %s32, 3
      %p479 = scmp.ne.s32.totalorder %s474, %s476
      %p480 = scmp.eq.s32.totalorder %s32, 0
      %p481 = por %p479, %p480
      %p482 = scmp.ne.s32.totalorder %s474, %s476
      %p483 = scmp.eq.s32.totalorder %s37, 3
      %p484 = por %p482, %p483
      %p485 = scmp.ne.s32.totalorder %s476, %s477
      %p486 = scmp.eq.s32.totalorder %s37, 0
      %p487 = por %p485, %p486
      %p488 = scmp.ne.s32.totalorder %s476, %s477
      %p489 = scmp.eq.s32.totalorder %s38, 3
      %p490 = por %p488, %p489
      %p492 = scmp.ne.s32.totalorder %s477, %s491
      %p493 = scmp.eq.s32.totalorder %s38, 0
      %p494 = por %p492, %p493
      %s496 = sadd.s32 %s495, 1
      %p499 = scmp.eq.s32.totalorder %s32, 3
      %p500 = scmp.ne.s32.totalorder %s495, %s497
      %p501 = scmp.eq.s32.totalorder %s32, 0
      %p502 = por %p500, %p501
      %p503 = scmp.ne.s32.totalorder %s495, %s497
      %p504 = scmp.eq.s32.totalorder %s37, 3
      %p505 = por %p503, %p504
      %p506 = scmp.ne.s32.totalorder %s497, %s498
      %p507 = scmp.eq.s32.totalorder %s37, 0
      %p508 = por %p506, %p507
      %p509 = scmp.ne.s32.totalorder %s497, %s498
      %p510 = scmp.eq.s32.totalorder %s38, 3
      %p511 = por %p509, %p510
      %p513 = scmp.ne.s32.totalorder %s498, %s512
      %p514 = scmp.eq.s32.totalorder %s38, 0
      %p515 = por %p513, %p514
      %s517 = sadd.s32 %s516, 1
      %p520 = scmp.eq.s32.totalorder %s32, 3
      %p521 = scmp.ne.s32.totalorder %s516, %s518
      %p522 = scmp.eq.s32.totalorder %s32, 0
      %p523 = por %p521, %p522
      %p524 = scmp.ne.s32.totalorder %s516, %s518
      %p525 = scmp.eq.s32.totalorder %s37, 3
      %p526 = por %p524, %p525
      %p527 = scmp.ne.s32.totalorder %s518, %s519
      %p528 = scmp.eq.s32.totalorder %s37, 0
      %p529 = por %p527, %p528
      %p530 = scmp.ne.s32.totalorder %s518, %s519
      %p531 = scmp.eq.s32.totalorder %s38, 3
      %p532 = por %p530, %p531
      %p534 = scmp.ne.s32.totalorder %s519, %s533
      %p535 = scmp.eq.s32.totalorder %s38, 0
      %p536 = por %p534, %p535
      %s538 = sadd.s32 %s537, 1
      %p541 = scmp.eq.s32.totalorder %s32, 3
      %p542 = scmp.ne.s32.totalorder %s537, %s539
      %p543 = scmp.eq.s32.totalorder %s32, 0
      %p544 = por %p542, %p543
      %p545 = scmp.ne.s32.totalorder %s537, %s539
      %p546 = scmp.eq.s32.totalorder %s37, 3
      %p547 = por %p545, %p546
      %p548 = scmp.ne.s32.totalorder %s539, %s540
      %p549 = scmp.eq.s32.totalorder %s37, 0
      %p550 = por %p548, %p549
      %p551 = scmp.ne.s32.totalorder %s539, %s540
      %p552 = scmp.eq.s32.totalorder %s38, 3
      %p553 = por %p551, %p552
      %p555 = scmp.ne.s32.totalorder %s540, %s554
      %p556 = scmp.eq.s32.totalorder %s38, 0
      %p557 = por %p555, %p556
      %s558 = ssub.s32 %s40, %s47
      %s559 = ssub.s32 %s39, %s51
      %s560 = sor.u32 %s558, %s559
      %p561 = scmp.eq.s32.totalorder %s560, 0
      %s563 = sadd.s32 %s562, 1
      %s564 = scalar_select %p561, %s562, %s563
      %p567 = pneg %p561
      %p568 = scmp.eq.s32.totalorder %s32, 3
      %p569 = por %p567, %p568
      %p570 = scmp.ne.s32.totalorder %s562, %s565
      %p571 = scmp.eq.s32.totalorder %s32, 0
      %p572 = por %p570, %p571
      %p573 = scmp.ne.s32.totalorder %s562, %s565
      %p574 = scmp.eq.s32.totalorder %s37, 3
      %p575 = por %p573, %p574
      %p576 = scmp.ne.s32.totalorder %s565, %s566
      %p577 = scmp.eq.s32.totalorder %s37, 0
      %p578 = por %p576, %p577
      %p579 = scmp.ne.s32.totalorder %s565, %s566
      %p580 = scmp.eq.s32.totalorder %s38, 3
      %p581 = por %p579, %p580
      %p583 = scmp.ne.s32.totalorder %s566, %s582
      %p584 = scmp.eq.s32.totalorder %s38, 0
      %p585 = por %p583, %p584
      %s586 = ssub.s32 %s39, %s51
      %p587 = scmp.eq.s32.totalorder %s586, 0
      %s589 = sadd.s32 %s588, 1
      %s590 = scalar_select %p587, %s588, %s589
      %p593 = pneg %p587
      %p594 = scmp.eq.s32.totalorder %s32, 3
      %p595 = por %p593, %p594
      %p596 = scmp.ne.s32.totalorder %s588, %s591
      %p597 = scmp.eq.s32.totalorder %s32, 0
      %p598 = por %p596, %p597
      %p599 = scmp.ne.s32.totalorder %s588, %s591
      %p600 = scmp.eq.s32.totalorder %s37, 3
      %p601 = por %p599, %p600
      %p602 = scmp.ne.s32.totalorder %s591, %s592
      %p603 = scmp.eq.s32.totalorder %s37, 0
      %p604 = por %p602, %p603
      %p605 = scmp.ne.s32.totalorder %s591, %s592
      %p606 = scmp.eq.s32.totalorder %s38, 3
      %p607 = por %p605, %p606
      %p609 = scmp.ne.s32.totalorder %s592, %s608
      %p610 = scmp.eq.s32.totalorder %s38, 0
      %p611 = por %p609, %p610
      %p612 = scmp.le.s32.totalorder 1, %s32
      %p613 = scmp.lt.s32.totalorder %s32, 5
      %p614 = pnand %p612, %p613
      %p615 = pneg %p614
      // Predicated region
      $region9: #{tpu_custom_call.1} parent=5 // pred_check
        _
      $region10: #{tpu_custom_call.1} parent=5 // pred_check_branch
        %617 = sbr.rel (%p614) target = $region12
      $region11: #{tpu_custom_call.1} parent=5 // pred_region
        %s618 = ssub.s32 %s32, 1
        // Predicated region
        $region13: #{tpu_custom_call.1} parent=11 // pred_check
          %p619 = pneg %p91
        $region14: #{tpu_custom_call.1} parent=11 // pred_check_branch
          %621 = sbr.rel (%p619) target = $region16
        $region15: #{tpu_custom_call.1} parent=11 // pred_region
          _
        $region16: #{tpu_custom_call.1} parent=11 // pred_fallthru
          _
        // Predicated region
        $region17: #{tpu_custom_call.1} parent=11 // pred_check
          %p622 = pneg %p112
        $region18: #{tpu_custom_call.1} parent=11 // pred_check_branch
          %624 = sbr.rel (%p622) target = $region20
        $region19: #{tpu_custom_call.1} parent=11 // pred_region
          _
        $region20: #{tpu_custom_call.1} parent=11 // pred_fallthru
          _
        // Predicated region
        $region21: #{tpu_custom_call.1} parent=11 // pred_check
          %p625 = pneg %p133
        $region22: #{tpu_custom_call.1} parent=11 // pred_check_branch
          %627 = sbr.rel (%p625) target = $region24
        $region23: #{tpu_custom_call.1} parent=11 // pred_region
          _
        $region24: #{tpu_custom_call.1} parent=11 // pred_fallthru
          _
        // Predicated region
        $region25: #{tpu_custom_call.1} parent=11 // pred_check
          %p628 = pneg %p154
        $region26: #{tpu_custom_call.1} parent=11 // pred_check_branch
          %630 = sbr.rel (%p628) target = $region28
        $region27: #{tpu_custom_call.1} parent=11 // pred_region
          _
        $region28: #{tpu_custom_call.1} parent=11 // pred_fallthru
          _
        // Predicated region
        $region29: #{tpu_custom_call.1} parent=11 // pred_check
          %p631 = pneg %p487
        $region30: #{tpu_custom_call.1} parent=11 // pred_check_branch
          %633 = sbr.rel (%p631) target = $region32
        $region31: #{tpu_custom_call.1} parent=11 // pred_region
          _
        $region32: #{tpu_custom_call.1} parent=11 // pred_fallthru
          _
        // Predicated region
        $region33: #{tpu_custom_call.1} parent=11 // pred_check
          %p634 = pneg %p508
        $region34: #{tpu_custom_call.1} parent=11 // pred_check_branch
          %636 = sbr.rel (%p634) target = $region36
        $region35: #{tpu_custom_call.1} parent=11 // pred_region
          _
        $region36: #{tpu_custom_call.1} parent=11 // pred_fallthru
          _
        // Predicated region
        $region37: #{tpu_custom_call.1} parent=11 // pred_check
          %p637 = pneg %p529
        $region38: #{tpu_custom_call.1} parent=11 // pred_check_branch
          %639 = sbr.rel (%p637) target = $region40
        $region39: #{tpu_custom_call.1} parent=11 // pred_region
          _
        $region40: #{tpu_custom_call.1} parent=11 // pred_fallthru
          _
        // Predicated region
        $region41: #{tpu_custom_call.1} parent=11 // pred_check
          %p640 = pneg %p550
        $region42: #{tpu_custom_call.1} parent=11 // pred_check_branch
          %642 = sbr.rel (%p640) target = $region44
        $region43: #{tpu_custom_call.1} parent=11 // pred_region
          _
        $region44: #{tpu_custom_call.1} parent=11 // pred_fallthru
          _
      $region12: #{tpu_custom_call.1} parent=5 // pred_fallthru
        _
      %p643 = scmp.lt.s32.totalorder %s32, 4
      // Predicated region
      $region45: #{tpu_custom_call.1} parent=5 // pred_check
        %p644 = pneg %p643
      $region46: #{tpu_custom_call.1} parent=5 // pred_check_branch
        %646 = sbr.rel (%p644) target = $region48
      $region47: #{tpu_custom_call.1} parent=5 // pred_region
        // Predicated region
        $region49: #{tpu_custom_call.1} parent=47 // pred_check
          %p647 = pneg %p64
        $region50: #{tpu_custom_call.1} parent=47 // pred_check_branch
          %649 = sbr.rel (%p647) target = $region52
        $region51: #{tpu_custom_call.1} parent=47 // pred_region
          %p650 = scmp.lt.s32.totalorder %s39, 1
          %s651 = scalar_select %p650, %s39, 1
          %s652 = smul.addr %s651, 2
          %s653 = scalar_lea.vmem %s0, %s652
        $region52: #{tpu_custom_call.1} parent=47 // pred_fallthru
          _
        // Predicated region
        $region53: #{tpu_custom_call.1} parent=47 // pred_check
          %p654 = pneg %p174
        $region54: #{tpu_custom_call.1} parent=47 // pred_check_branch
          %656 = sbr.rel (%p654) target = $region56
        $region55: #{tpu_custom_call.1} parent=47 // pred_region
          %p657 = scmp.lt.s32.totalorder %s40, 1
          %s658 = scalar_select %p657, %s40, 1
          %s659 = scalar_lea.vmem %s5, %s658
        $region56: #{tpu_custom_call.1} parent=47 // pred_fallthru
          _
        // Predicated region
        $region57: #{tpu_custom_call.1} parent=47 // pred_check
          %p660 = pneg %p200
        $region58: #{tpu_custom_call.1} parent=47 // pred_check_branch
          %662 = sbr.rel (%p660) target = $region60
        $region59: #{tpu_custom_call.1} parent=47 // pred_region
          %p663 = scmp.lt.s32.totalorder %s40, 1
          %s664 = scalar_select %p663, %s40, 1
          %s665 = scalar_lea.vmem %s6, %s664
        $region60: #{tpu_custom_call.1} parent=47 // pred_fallthru
          _
        // Predicated region
        $region61: #{tpu_custom_call.1} parent=47 // pred_check
          %p666 = pneg %p226
        $region62: #{tpu_custom_call.1} parent=47 // pred_check_branch
          %668 = sbr.rel (%p666) target = $region64
        $region63: #{tpu_custom_call.1} parent=47 // pred_region
          %p669 = scmp.lt.s32.totalorder %s40, 1
          %s670 = scalar_select %p669, %s40, 1
          %s671 = smul.addr %s670, 4
          %s672 = smul.addr %s671, 4
          %s673 = scalar_lea.vmem %s7, %s672
        $region64: #{tpu_custom_call.1} parent=47 // pred_fallthru
          _
        // Predicated region
        $region65: #{tpu_custom_call.1} parent=47 // pred_check
          %p674 = pneg %p252
        $region66: #{tpu_custom_call.1} parent=47 // pred_check_branch
          %676 = sbr.rel (%p674) target = $region68
        $region67: #{tpu_custom_call.1} parent=47 // pred_region
          %p677 = scmp.lt.s32.totalorder %s40, 1
          %s678 = scalar_select %p677, %s40, 1
          %s679 = scalar_lea.vmem %s8, %s678
        $region68: #{tpu_custom_call.1} parent=47 // pred_fallthru
          _
        // Predicated region
        $region69: #{tpu_custom_call.1} parent=47 // pred_check
          %p680 = pneg %p278
        $region70: #{tpu_custom_call.1} parent=47 // pred_check_branch
          %682 = sbr.rel (%p680) target = $region72
        $region71: #{tpu_custom_call.1} parent=47 // pred_region
          %p683 = scmp.lt.s32.totalorder %s40, 1
          %s684 = scalar_select %p683, %s40, 1
          %s685 = smul.addr %s684, 4
          %s686 = smul.addr %s685, 4
          %s687 = scalar_lea.vmem %s9, %s686
        $region72: #{tpu_custom_call.1} parent=47 // pred_fallthru
          _
        // Predicated region
        $region73: #{tpu_custom_call.1} parent=47 // pred_check
          %p688 = pneg %p304
        $region74: #{tpu_custom_call.1} parent=47 // pred_check_branch
          %690 = sbr.rel (%p688) target = $region76
        $region75: #{tpu_custom_call.1} parent=47 // pred_region
          %p691 = scmp.lt.s32.totalorder %s40, 1
          %s692 = scalar_select %p691, %s40, 1
          %s693 = scalar_lea.vmem %s10, %s692
        $region76: #{tpu_custom_call.1} parent=47 // pred_fallthru
          _
        // Predicated region
        $region77: #{tpu_custom_call.1} parent=47 // pred_check
          %p694 = pneg %p330
        $region78: #{tpu_custom_call.1} parent=47 // pred_check_branch
          %696 = sbr.rel (%p694) target = $region80
        $region79: #{tpu_custom_call.1} parent=47 // pred_region
          %p697 = scmp.lt.s32.totalorder %s40, 1
          %s698 = scalar_select %p697, %s40, 1
          %s699 = scalar_lea.vmem %s11, %s698
        $region80: #{tpu_custom_call.1} parent=47 // pred_fallthru
          _
        // Predicated region
        $region81: #{tpu_custom_call.1} parent=47 // pred_check
          %p700 = pneg %p356
        $region82: #{tpu_custom_call.1} parent=47 // pred_check_branch
          %702 = sbr.rel (%p700) target = $region84
        $region83: #{tpu_custom_call.1} parent=47 // pred_region
          %p703 = scmp.lt.s32.totalorder %s40, 1
          %s704 = scalar_select %p703, %s40, 1
          %s705 = scalar_lea.vmem %s12, %s704
        $region84: #{tpu_custom_call.1} parent=47 // pred_fallthru
          _
        // Predicated region
        $region85: #{tpu_custom_call.1} parent=47 // pred_check
          %p706 = pneg %p382
        $region86: #{tpu_custom_call.1} parent=47 // pred_check_branch
          %708 = sbr.rel (%p706) target = $region88
        $region87: #{tpu_custom_call.1} parent=47 // pred_region
          %p709 = scmp.lt.s32.totalorder %s40, 1
          %s710 = scalar_select %p709, %s40, 1
          %s711 = smul.addr %s710, 4
          %s712 = smul.addr %s711, 4
          %s713 = scalar_lea.vmem %s13, %s712
        $region88: #{tpu_custom_call.1} parent=47 // pred_fallthru
          _
        // Predicated region
        $region89: #{tpu_custom_call.1} parent=47 // pred_check
          %p714 = pneg %p408
        $region90: #{tpu_custom_call.1} parent=47 // pred_check_branch
          %716 = sbr.rel (%p714) target = $region92
        $region91: #{tpu_custom_call.1} parent=47 // pred_region
          %p717 = scmp.lt.s32.totalorder %s40, 1
          %s718 = scalar_select %p717, %s40, 1
          %s719 = scalar_lea.vmem %s14, %s718
        $region92: #{tpu_custom_call.1} parent=47 // pred_fallthru
          _
        // Predicated region
        $region93: #{tpu_custom_call.1} parent=47 // pred_check
          %p720 = pneg %p434
        $region94: #{tpu_custom_call.1} parent=47 // pred_check_branch
          %722 = sbr.rel (%p720) target = $region96
        $region95: #{tpu_custom_call.1} parent=47 // pred_region
          %p723 = scmp.lt.s32.totalorder %s40, 1
          %s724 = scalar_select %p723, %s40, 1
          %s725 = smul.addr %s724, 16
          %s726 = smul.addr %s725, 4
          %s727 = scalar_lea.vmem %s15, %s726
        $region96: #{tpu_custom_call.1} parent=47 // pred_fallthru
          _
        // Predicated region
        $region97: #{tpu_custom_call.1} parent=47 // pred_check
          %p728 = pneg %p460
        $region98: #{tpu_custom_call.1} parent=47 // pred_check_branch
          %730 = sbr.rel (%p728) target = $region100
        $region99: #{tpu_custom_call.1} parent=47 // pred_region
          %p731 = scmp.lt.s32.totalorder %s40, 1
          %s732 = scalar_select %p731, %s40, 1
          %s733 = scalar_lea.vmem %s16, %s732
        $region100: #{tpu_custom_call.1} parent=47 // pred_fallthru
          _
      $region48: #{tpu_custom_call.1} parent=5 // pred_fallthru
        _
      %p734 = scmp.le.s32.totalorder 1, %s32
      %p735 = scmp.lt.s32.totalorder %s32, 5
      %p736 = pnand %p734, %p735
      %p737 = pneg %p736
      // Predicated region
      $region101: #{tpu_custom_call.1} parent=5 // pred_check
        _
      $region102: #{tpu_custom_call.1} parent=5 // pred_check_branch
        %739 = sbr.rel (%p736) target = $region104
      $region103: #{tpu_custom_call.1} parent=5 // pred_region
        %s740 = ssub.s32 %s32, 1
        %p741 = scmp.lt.s32.totalorder %s41, 1
        %s742 = scalar_select %p741, %s41, 1
        %s743 = smul.addr %s742, 2
        %s744 = scalar_lea.vmem %s0, %s743
        %p745 = pneg %p70
        %p746 = pneg %p67
        %p747 = pneg %p91
        %p748 = pneg %p88
        %p749 = pneg %p112
        %p750 = pneg %p109
        %p751 = pneg %p133
        %p752 = pneg %p130
        %p753 = pneg %p154
        %p754 = pneg %p151
        %p755 = scmp.lt.s32.totalorder %s42, 1
        %s756 = scalar_select %p755, %s42, 1
        %s757 = scalar_lea.vmem %s5, %s756
        %p758 = pneg %p180
        %p759 = pneg %p177
        %p760 = scmp.lt.s32.totalorder %s42, 1
        %s761 = scalar_select %p760, %s42, 1
        %s762 = scalar_lea.vmem %s6, %s761
        %p763 = pneg %p206
        %p764 = pneg %p203
        %p765 = scmp.lt.s32.totalorder %s42, 1
        %s766 = scalar_select %p765, %s42, 1
        %s767 = smul.addr %s766, 4
        %s768 = smul.addr %s767, 4
        %s769 = scalar_lea.vmem %s7, %s768
        %p770 = pneg %p232
        %p771 = pneg %p229
        %p772 = scmp.lt.s32.totalorder %s42, 1
        %s773 = scalar_select %p772, %s42, 1
        %s774 = scalar_lea.vmem %s8, %s773
        %p775 = pneg %p258
        %p776 = pneg %p255
        %p777 = scmp.lt.s32.totalorder %s42, 1
        %s778 = scalar_select %p777, %s42, 1
        %s779 = smul.addr %s778, 4
        %s780 = smul.addr %s779, 4
        %s781 = scalar_lea.vmem %s9, %s780
        %p782 = pneg %p284
        %p783 = pneg %p281
        %p784 = scmp.lt.s32.totalorder %s42, 1
        %s785 = scalar_select %p784, %s42, 1
        %s786 = scalar_lea.vmem %s10, %s785
        %p787 = pneg %p310
        %p788 = pneg %p307
        %p789 = scmp.lt.s32.totalorder %s42, 1
        %s790 = scalar_select %p789, %s42, 1
        %s791 = scalar_lea.vmem %s11, %s790
        %p792 = pneg %p336
        %p793 = pneg %p333
        %p794 = scmp.lt.s32.totalorder %s42, 1
        %s795 = scalar_select %p794, %s42, 1
        %s796 = scalar_lea.vmem %s12, %s795
        %p797 = pneg %p362
        %p798 = pneg %p359
        %p799 = scmp.lt.s32.totalorder %s42, 1
        %s800 = scalar_select %p799, %s42, 1
        %s801 = smul.addr %s800, 4
        %s802 = smul.addr %s801, 4
        %s803 = scalar_lea.vmem %s13, %s802
        %p804 = pneg %p388
        %p805 = pneg %p385
        %p806 = scmp.lt.s32.totalorder %s42, 1
        %s807 = scalar_select %p806, %s42, 1
        %s808 = scalar_lea.vmem %s14, %s807
        %p809 = pneg %p414
        %p810 = pneg %p411
        %p811 = scmp.lt.s32.totalorder %s42, 1
        %s812 = scalar_select %p811, %s42, 1
        %s813 = smul.addr %s812, 16
        %s814 = smul.addr %s813, 4
        %s815 = scalar_lea.vmem %s15, %s814
        %p816 = pneg %p440
        %p817 = pneg %p437
        %p818 = scmp.lt.s32.totalorder %s42, 1
        %s819 = scalar_select %p818, %s42, 1
        %s820 = scalar_lea.vmem %s16, %s819
        %p821 = pneg %p466
        %p822 = pneg %p463
        %p823 = pneg %p487
        %p824 = pneg %p484
        %p825 = pneg %p508
        %p826 = pneg %p505
        %p827 = pneg %p529
        %p828 = pneg %p526
        %p829 = pneg %p550
        %p830 = pneg %p547
        %p831 = pneg %p578
        %p832 = pneg %p575
        %s833 = sand.u32 %s565, 1
        %s834 = sand.u32 %s565, 1
        %s835 = smul.addr %s834, 32
        %s836 = scalar_lea.vmem [#allocation3], %s835
        %p837 = pneg %p604
        %p838 = pneg %p601
        %s839 = sand.u32 %s591, 1
        %s840 = scalar_lea.sflag [#allocation5], %s839
        %s841 = sand.u32 %s591, 1
        %s842 = scalar_lea.vmem [#allocation4], %s841
        %p843 = scmp.lt.s32.totalorder %s41, 1
        %s844 = scalar_select %p843, %s41, 1
        %s845 = smul.addr %s844, 2
        %s846 = scalar_lea.vmem %s0, %s845
        %p847 = scmp.lt.s32.totalorder %s42, 1
        %s848 = scalar_select %p847, %s42, 1
        %s849 = scalar_lea.vmem %s5, %s848
        %p850 = scmp.lt.s32.totalorder %s42, 1
        %s851 = scalar_select %p850, %s42, 1
        %s852 = scalar_lea.vmem %s6, %s851
        %p853 = scmp.lt.s32.totalorder %s42, 1
        %s854 = scalar_select %p853, %s42, 1
        %s855 = smul.addr %s854, 4
        %s856 = smul.addr %s855, 4
        %s857 = scalar_lea.vmem %s7, %s856
        %p858 = scmp.lt.s32.totalorder %s42, 1
        %s859 = scalar_select %p858, %s42, 1
        %s860 = scalar_lea.vmem %s8, %s859
        %p861 = scmp.lt.s32.totalorder %s42, 1
        %s862 = scalar_select %p861, %s42, 1
        %s863 = smul.addr %s862, 4
        %s864 = smul.addr %s863, 4
        %s865 = scalar_lea.vmem %s9, %s864
        %p866 = scmp.lt.s32.totalorder %s42, 1
        %s867 = scalar_select %p866, %s42, 1
        %s868 = scalar_lea.vmem %s10, %s867
        %p869 = scmp.lt.s32.totalorder %s42, 1
        %s870 = scalar_select %p869, %s42, 1
        %s871 = scalar_lea.vmem %s11, %s870
        %p872 = scmp.lt.s32.totalorder %s42, 1
        %s873 = scalar_select %p872, %s42, 1
        %s874 = scalar_lea.vmem %s12, %s873
        %p875 = scmp.lt.s32.totalorder %s42, 1
        %s876 = scalar_select %p875, %s42, 1
        %s877 = smul.addr %s876, 4
        %s878 = smul.addr %s877, 4
        %s879 = scalar_lea.vmem %s13, %s878
        %p880 = scmp.lt.s32.totalorder %s42, 1
        %s881 = scalar_select %p880, %s42, 1
        %s882 = scalar_lea.vmem %s14, %s881
        %p883 = scmp.lt.s32.totalorder %s42, 1
        %s884 = scalar_select %p883, %s42, 1
        %s885 = smul.addr %s884, 16
        %s886 = smul.addr %s885, 4
        %s887 = scalar_lea.vmem %s15, %s886
        %p888 = scmp.lt.s32.totalorder %s42, 1
        %s889 = scalar_select %p888, %s42, 1
        %s890 = scalar_lea.vmem %s16, %s889
        %s891 = smul.u32 4, %s42
        %p893 = scmp.eq.s32.totalorder %s42, 0
        // Predicated region
        $region105: #{tpu_custom_call.1} parent=103 // pred_check
          %p894 = pneg %p893
        $region106: #{tpu_custom_call.1} parent=103 // pred_check_branch
          %896 = sbr.rel (%p894) target = $region108
        $region107: #{tpu_custom_call.1} parent=103 // pred_region
          %v897 = vld [vmem:[%s846] sm:$0x3]
          %v898 = vld [vmem:[%s1] sm:$0xf]
          %v899 = vld [vmem:[%s1 + $0x4] sm:$0xf]
          %v900 = vld [vmem:[%s2] sm:$0x1]
          %v902 = vperm.slane %v900, 0
          %v906 = vunpack.c.l.b16 %v898
          %v907 = vunpack.c.l.b16 %v899
          %v908 = vpack.c.b16 %v907, %v906
          %vm910 = vcmask 130048
          %v912 = vsel %vm910, %v897, 0
          %914 = vmatpush.bf16.msra.mxu0 0
          %915 = vmatpush.bf16.msra.mxu0 0
          %916 = vmatpush.bf16.msra.mxu0 0
          %917 = vmatpush.bf16.msra.mxu0 0
          %918 = vmatpush.bf16.msra.mxu0 0
          %919 = vmatpush.bf16.msra.mxu0 0
          %920 = vmatpush.bf16.msra.mxu0 0
          %921 = vmatpush.bf16.msra.mxu0 %v908
          %922 = vmatmul.bf16.gmra.mxu0 %v912
          %v923 = vpop.f32.mrf.mxu0
          %v924 = vadd.f32 %v902, %v923
          %v925 = vpop.f32.mrf.mxu0
          %926 = vdwg.mxu0
          %v927 = vld [vmem:[%s4 + $0x1] sm:$0xf]
          %v928 = vadd.f32 %v924, %v927
          %v929 = vld [vmem:[%s3] sm:$0x1]
          %v930 = vld [vmem:[%s4] sm:$0x1]
          %v931 = vadd.f32 %v929, %v930
          %vm932 = vcmask 253952
          %933 = vst.msk [vmem:[#allocation2] sm:$0x1] %vm932, %v931
          %vm934 = vcmask 257024
          %935 = vst.msk [vmem:[#allocation2 + $0x1] sm:$0xf] %vm934, %v928
        $region108: #{tpu_custom_call.1} parent=103 // pred_fallthru
          _
        %v936 = vld [vmem:[#allocation2] sm:$0x1f]
        %v937 = vld [vmem:[%s849] sm:$0x1]
        %v938 = vld [vmem:[%s852] sm:$0x1]
        %vm939 = vcmask 258048
        %v940 = vsel %vm939, %v936, 0.0
        %941 = vadd.xlane.f32.xlu0 %v940
        %v942 = vpop.xlane.xlu0 %941
        %v943 = vrcp.pop 32.0
        %v944 = vmul.f32 32.0, %v943
        %v945 = vsub.f32 1.0, %v944
        %v946 = vmul.f32 %v943, %v945
        %v947 = vadd.f32 %v943, %v946
        %vm948 = vweird.f32 %v943
        %v949 = vsel %vm948, %v943, %v947
        %v950 = vmul.f32 %v942, %v949
        %v951 = vsub.f32 %v936, %v950
        %v952 = vmul.f32 %v951, %v951
        %v953 = vsel %vm939, %v952, 0.0
        %954 = vadd.xlane.f32.xlu0 %v953
        %v955 = vpop.xlane.xlu0 %954
        %v956 = vmul.f32 %v955, %v949
        %v957 = vadd.f32 %v956, 1e-05
        %v958 = vrsqrt.pop %v957
        %v959 = vmul.f32 %v958, %v957
        %v960 = vmul.f32 %v959, %v958
        %v961 = vmul.f32 0.5, %v960
        %v962 = vsub.f32 1.5, %v961
        %v963 = vmul.f32 %v958, %v962
        %vm964 = vweird.f32 %v957
        %vm965 = vweird.f32 %v958
        %vm966 = vmor %vm964, %vm965
        %v967 = vsel %vm966, %v958, %v963
        %v968 = vmul.f32 %v951, %v967
        %v970 = vperm.slane %v937, 0
        %v972 = vmul.f32 %v968, %v970
        %v974 = vperm.slane %v938, 0
        %v976 = vadd.f32 %v972, %v974
        %v977 = vpack.c.bf16 %v976, %v976
        %v978 = vld [vmem:[%s857] sm:$0xf]
        %v979 = vld [vmem:[%s857 + $0x4] sm:$0xf]
        %v980 = vld [vmem:[%s857 + $0x8] sm:$0xf]
        %v981 = vld [vmem:[%s857 + $0xc] sm:$0xf]
        %v982 = vld [vmem:[%s860] sm:$0x1]
        %v984 = vperm.slane %v982, 0
        %v990 = vunpack.c.l.b16 %v978
        %v991 = vunpack.c.l.b16 %v979
        %v992 = vunpack.c.l.b16 %v980
        %v993 = vunpack.c.l.b16 %v981
        %v994 = vpack.c.b16 %v991, %v990
        %v995 = vpack.c.b16 %v993, %v992
        %vm998 = vcmask 261120
        %v1000 = vsel %vm998, %v977, 0
        %1002 = vmatpush.bf16.msra.mxu0 0
        %1003 = vmatpush.bf16.msra.mxu0 0
        %1004 = vmatpush.bf16.msra.mxu0 0
        %1005 = vmatpush.bf16.msra.mxu0 0
        %1006 = vmatpush.bf16.msra.mxu0 0
        %1007 = vmatpush.bf16.msra.mxu0 0
        %1008 = vmatpush.bf16.msra.mxu0 %v995
        %1009 = vmatpush.bf16.msra.mxu0 %v994
        %1010 = vmatmul.bf16.gmra.mxu0 %v1000
        %v1011 = vpop.f32.mrf.mxu0
        %v1012 = vadd.f32 %v984, %v1011
        %v1013 = vpop.f32.mrf.mxu0
        %1014 = vdwg.mxu0
        %v1015 = vmul.f32 %v1012, 0.35355338
        %v1016 = vpack.c.bf16 %v1015, %v1015
        %v1017 = vpack.c.bf16 %v1012, %v1012
        %v1019 = vunpack.c.l.b16 %v1017
        %v1020 = vpack.c.b16 %v1019, %v1019
        %1021 = vrot.lane.b32.xlu0 %v1020, 96
        %v1022 = vpop.permute.xlu0 %1021
        %vm1023 = vcmask 64512
        %v1025 = vsel %vm1023, %v1016, 0
        %v1028 = vsel %vm1023, %v1022, 0
        %1030 = vmatpush.bf16.xpose.msra.mxu0 0
        %1031 = vmatpush.bf16.xpose.msra.mxu0 0
        %1032 = vmatpush.bf16.xpose.msra.mxu0 0
        %1033 = vmatpush.bf16.xpose.msra.mxu0 0
        %1034 = vmatpush.bf16.xpose.msra.mxu0 0
        %1035 = vmatpush.bf16.xpose.msra.mxu0 0
        %1036 = vmatpush.bf16.xpose.msra.mxu0 0
        %1037 = vmatpush.bf16.xpose.msra.mxu0 %v1028
        %1038 = vmatmul.bf16.gmra.mxu0 %v1025
        %v1039 = vpop.f32.mrf.mxu0
        %v1040 = vadd.f32 0.0, %v1039
        %v1041 = vpop.f32.mrf.mxu0
        %1042 = vdwg.mxu0
        %vm1043 = vcmask 36864
        %v1044 = vsel %vm1043, %v1040, -inf
        %1045 = vmax.xlane.f32.xlu0 %v1044
        %v1046 = vpop.xlane.xlu0 %1045
        %v1047 = vsub.f32 %v1040, %v1046
        %v1048 = vmul.f32 %v1047, 1.442695
        %v1049 = vpow.pop %v1048
        %v1050 = vsel %vm1043, %v1049, 0.0
        %1051 = vadd.xlane.f32.xlu0 %v1050
        %v1052 = vpop.xlane.xlu0 %1051
        %v1053 = vrcp.pop %v1052
        %v1054 = vmul.f32 %v1052, %v1053
        %v1055 = vsub.f32 1.0, %v1054
        %v1056 = vmul.f32 %v1053, %v1055
        %v1057 = vadd.f32 %v1053, %v1056
        %vm1058 = vweird.f32 %v1052
        %vm1059 = vweird.f32 %v1053
        %vm1060 = vmor %vm1058, %vm1059
        %v1061 = vsel %vm1060, %v1053, %v1057
        %v1062 = vand.u32 2147483647, %v1052
        %vm1063 = vcmp.eq.f32.partialorder %v1062, 8.507059e+37
        %v1064 = vand.u32 %v1052, 2147483648
        %v1065 = vor.u32 1.1754944e-38, %v1064
        %v1066 = vsel %vm1063, %v1065, %v1061
        %v1067 = vmul.f32 %v1049, %v1066
        %vm1068 = vcmask 39936
        %v1069 = vsel %vm1068, %v1067, 0.0
        %1070 = vst [vmem:[%s836] sm:$0x1f] %v1069
        %v1071 = vpack.c.bf16 %v1067, %v1067
        %1072 = vrot.lane.b32.xlu0 %v1020, 64
        %v1073 = vpop.permute.xlu0 %1072
        %v1075 = vsel %vm1068, %v1071, 0
        %vm1077 = vcmask 1041408
        %vm1078 = vcmask 1042432
        %v1079 = vsel %vm1077, 4294967295, 65535
        %v1080 = vsel %vm1078, %v1079, 0
        %v1082 = vand.u32 %v1073, %v1080
        %1084 = vmatpush.bf16.msra.mxu0 0
        %1085 = vmatpush.bf16.msra.mxu0 0
        %1086 = vmatpush.bf16.msra.mxu0 0
        %1087 = vmatpush.bf16.msra.mxu0 0
        %1088 = vmatpush.bf16.msra.mxu0 0
        %1089 = vmatpush.bf16.msra.mxu0 0
        %1090 = vmatpush.bf16.msra.mxu0 0
        %1091 = vmatpush.bf16.msra.mxu0 %v1082
        %1092 = vmatmul.bf16.gmra.mxu0 %v1075
        %v1093 = vpop.f32.mrf.mxu0
        %v1094 = vadd.f32 0.0, %v1093
        %v1095 = vpop.f32.mrf.mxu0
        %1096 = vdwg.mxu0
        %v1098 = vunpack.c.l.b16 %v1016
        %v1099 = vpack.c.b16 %v1098, %v1098
        %1100 = vrot.lane.b32.xlu0 %v1099, 120
        %v1101 = vpop.permute.xlu0 %1100
        %1102 = vrot.lane.b32.xlu0 %v1020, 88
        %v1103 = vpop.permute.xlu0 %1102
        %v1105 = vsel %vm1023, %v1101, 0
        %v1108 = vsel %vm1023, %v1103, 0
        %1110 = vmatpush.bf16.xpose.msra.mxu0 0
        %1111 = vmatpush.bf16.xpose.msra.mxu0 0
        %1112 = vmatpush.bf16.xpose.msra.mxu0 0
        %1113 = vmatpush.bf16.xpose.msra.mxu0 0
        %1114 = vmatpush.bf16.xpose.msra.mxu0 0
        %1115 = vmatpush.bf16.xpose.msra.mxu0 0
        %1116 = vmatpush.bf16.xpose.msra.mxu0 0
        %1117 = vmatpush.bf16.xpose.msra.mxu0 %v1108
        %1118 = vmatmul.bf16.gmra.mxu0 %v1105
        %v1119 = vpop.f32.mrf.mxu0
        %v1120 = vadd.f32 0.0, %v1119
        %v1121 = vpop.f32.mrf.mxu0
        %1122 = vdwg.mxu0
        %v1123 = vsel %vm1043, %v1120, -inf
        %1124 = vmax.xlane.f32.xlu0 %v1123
        %v1125 = vpop.xlane.xlu0 %1124
        %v1126 = vsub.f32 %v1120, %v1125
        %v1127 = vmul.f32 %v1126, 1.442695
        %v1128 = vpow.pop %v1127
        %v1129 = vsel %vm1043, %v1128, 0.0
        %1130 = vadd.xlane.f32.xlu0 %v1129
        %v1131 = vpop.xlane.xlu0 %1130
        %v1132 = vrcp.pop %v1131
        %v1133 = vmul.f32 %v1131, %v1132
        %v1134 = vsub.f32 1.0, %v1133
        %v1135 = vmul.f32 %v1132, %v1134
        %v1136 = vadd.f32 %v1132, %v1135
        %vm1137 = vweird.f32 %v1131
        %vm1138 = vweird.f32 %v1132
        %vm1139 = vmor %vm1137, %vm1138
        %v1140 = vsel %vm1139, %v1132, %v1136
        %v1141 = vand.u32 2147483647, %v1131
        %vm1142 = vcmp.eq.f32.partialorder %v1141, 8.507059e+37
        %v1143 = vand.u32 %v1131, 2147483648
        %v1144 = vor.u32 1.1754944e-38, %v1143
        %v1145 = vsel %vm1142, %v1144, %v1140
        %v1146 = vmul.f32 %v1128, %v1145
        %v1147 = vsel %vm1068, %v1146, 0.0
        %s1148 = scalar_lea.vmem %s836, 8 [#allocation3]
        %1149 = vst [vmem:[%s1148] sm:$0x1f] %v1147
        %v1150 = vpack.c.bf16 %v1146, %v1146
        %1151 = vrot.lane.b32.xlu0 %v1020, 56
        %v1152 = vpop.permute.xlu0 %1151
        %v1154 = vsel %vm1068, %v1150, 0
        %v1157 = vand.u32 %v1152, %v1080
        %1159 = vmatpush.bf16.msra.mxu0 0
        %1160 = vmatpush.bf16.msra.mxu0 0
        %1161 = vmatpush.bf16.msra.mxu0 0
        %1162 = vmatpush.bf16.msra.mxu0 0
        %1163 = vmatpush.bf16.msra.mxu0 0
        %1164 = vmatpush.bf16.msra.mxu0 0
        %1165 = vmatpush.bf16.msra.mxu0 0
        %1166 = vmatpush.bf16.msra.mxu0 %v1157
        %1167 = vmatmul.bf16.gmra.mxu0 %v1154
        %v1168 = vpop.f32.mrf.mxu0
        %v1169 = vadd.f32 0.0, %v1168
        %v1170 = vpop.f32.mrf.mxu0
        %1171 = vdwg.mxu0
        %1172 = vrot.lane.b32.xlu0 %v1099, 112
        %v1173 = vpop.permute.xlu0 %1172
        %1174 = vrot.lane.b32.xlu0 %v1020, 80
        %v1175 = vpop.permute.xlu0 %1174
        %v1177 = vsel %vm1023, %v1173, 0
        %v1180 = vsel %vm1023, %v1175, 0
        %1182 = vmatpush.bf16.xpose.msra.mxu0 0
        %1183 = vmatpush.bf16.xpose.msra.mxu0 0
        %1184 = vmatpush.bf16.xpose.msra.mxu0 0
        %1185 = vmatpush.bf16.xpose.msra.mxu0 0
        %1186 = vmatpush.bf16.xpose.msra.mxu0 0
        %1187 = vmatpush.bf16.xpose.msra.mxu0 0
        %1188 = vmatpush.bf16.xpose.msra.mxu0 0
        %1189 = vmatpush.bf16.xpose.msra.mxu0 %v1180
        %1190 = vmatmul.bf16.gmra.mxu0 %v1177
        %v1191 = vpop.f32.mrf.mxu0
        %v1192 = vadd.f32 0.0, %v1191
        %v1193 = vpop.f32.mrf.mxu0
        %1194 = vdwg.mxu0
        %v1195 = vsel %vm1043, %v1192, -inf
        %1196 = vmax.xlane.f32.xlu0 %v1195
        %v1197 = vpop.xlane.xlu0 %1196
        %v1198 = vsub.f32 %v1192, %v1197
        %v1199 = vmul.f32 %v1198, 1.442695
        %v1200 = vpow.pop %v1199
        %v1201 = vsel %vm1043, %v1200, 0.0
        %1202 = vadd.xlane.f32.xlu0 %v1201
        %v1203 = vpop.xlane.xlu0 %1202
        %v1204 = vrcp.pop %v1203
        %v1205 = vmul.f32 %v1203, %v1204
        %v1206 = vsub.f32 1.0, %v1205
        %v1207 = vmul.f32 %v1204, %v1206
        %v1208 = vadd.f32 %v1204, %v1207
        %vm1209 = vweird.f32 %v1203
        %vm1210 = vweird.f32 %v1204
        %vm1211 = vmor %vm1209, %vm1210
        %v1212 = vsel %vm1211, %v1204, %v1208
        %v1213 = vand.u32 2147483647, %v1203
        %vm1214 = vcmp.eq.f32.partialorder %v1213, 8.507059e+37
        %v1215 = vand.u32 %v1203, 2147483648
        %v1216 = vor.u32 1.1754944e-38, %v1215
        %v1217 = vsel %vm1214, %v1216, %v1212
        %v1218 = vmul.f32 %v1200, %v1217
        %v1219 = vsel %vm1068, %v1218, 0.0
        %s1220 = scalar_lea.vmem %s836, 16 [#allocation3]
        %1221 = vst [vmem:[%s1220] sm:$0x1f] %v1219
        %v1222 = vpack.c.bf16 %v1218, %v1218
        %1223 = vrot.lane.b32.xlu0 %v1020, 48
        %v1224 = vpop.permute.xlu0 %1223
        %v1226 = vsel %vm1068, %v1222, 0
        %v1229 = vand.u32 %v1224, %v1080
        %1231 = vmatpush.bf16.msra.mxu0 0
        %1232 = vmatpush.bf16.msra.mxu0 0
        %1233 = vmatpush.bf16.msra.mxu0 0
        %1234 = vmatpush.bf16.msra.mxu0 0
        %1235 = vmatpush.bf16.msra.mxu0 0
        %1236 = vmatpush.bf16.msra.mxu0 0
        %1237 = vmatpush.bf16.msra.mxu0 0
        %1238 = vmatpush.bf16.msra.mxu0 %v1229
        %1239 = vmatmul.bf16.gmra.mxu0 %v1226
        %v1240 = vpop.f32.mrf.mxu0
        %v1241 = vadd.f32 0.0, %v1240
        %v1242 = vpop.f32.mrf.mxu0
        %1243 = vdwg.mxu0
        %1244 = vrot.lane.b32.xlu0 %v1099, 104
        %v1245 = vpop.permute.xlu0 %1244
        %1246 = vrot.lane.b32.xlu0 %v1020, 72
        %v1247 = vpop.permute.xlu0 %1246
        %v1249 = vsel %vm1023, %v1245, 0
        %v1252 = vsel %vm1023, %v1247, 0
        %1254 = vmatpush.bf16.xpose.msra.mxu0 0
        %1255 = vmatpush.bf16.xpose.msra.mxu0 0
        %1256 = vmatpush.bf16.xpose.msra.mxu0 0
        %1257 = vmatpush.bf16.xpose.msra.mxu0 0
        %1258 = vmatpush.bf16.xpose.msra.mxu0 0
        %1259 = vmatpush.bf16.xpose.msra.mxu0 0
        %1260 = vmatpush.bf16.xpose.msra.mxu0 0
        %1261 = vmatpush.bf16.xpose.msra.mxu0 %v1252
        %1262 = vmatmul.bf16.gmra.mxu0 %v1249
        %v1263 = vpop.f32.mrf.mxu0
        %v1264 = vadd.f32 0.0, %v1263
        %v1265 = vpop.f32.mrf.mxu0
        %1266 = vdwg.mxu0
        %v1267 = vsel %vm1043, %v1264, -inf
        %1268 = vmax.xlane.f32.xlu0 %v1267
        %v1269 = vpop.xlane.xlu0 %1268
        %v1270 = vsub.f32 %v1264, %v1269
        %v1271 = vmul.f32 %v1270, 1.442695
        %v1272 = vpow.pop %v1271
        %v1273 = vsel %vm1043, %v1272, 0.0
        %1274 = vadd.xlane.f32.xlu0 %v1273
        %v1275 = vpop.xlane.xlu0 %1274
        %v1276 = vrcp.pop %v1275
        %v1277 = vmul.f32 %v1275, %v1276
        %v1278 = vsub.f32 1.0, %v1277
        %v1279 = vmul.f32 %v1276, %v1278
        %v1280 = vadd.f32 %v1276, %v1279
        %vm1281 = vweird.f32 %v1275
        %vm1282 = vweird.f32 %v1276
        %vm1283 = vmor %vm1281, %vm1282
        %v1284 = vsel %vm1283, %v1276, %v1280
        %v1285 = vand.u32 2147483647, %v1275
        %vm1286 = vcmp.eq.f32.partialorder %v1285, 8.507059e+37
        %v1287 = vand.u32 %v1275, 2147483648
        %v1288 = vor.u32 1.1754944e-38, %v1287
        %v1289 = vsel %vm1286, %v1288, %v1284
        %v1290 = vmul.f32 %v1272, %v1289
        %v1291 = vsel %vm1068, %v1290, 0.0
        %s1292 = scalar_lea.vmem %s836, 24 [#allocation3]
        %1293 = vst [vmem:[%s1292] sm:$0x1f] %v1291
        %v1294 = vpack.c.bf16 %v1290, %v1290
        %1295 = vrot.lane.b32.xlu0 %v1020, 40
        %v1296 = vpop.permute.xlu0 %1295
        %v1298 = vsel %vm1068, %v1294, 0
        %v1301 = vand.u32 %v1296, %v1080
        %1303 = vmatpush.bf16.msra.mxu0 0
        %1304 = vmatpush.bf16.msra.mxu0 0
        %1305 = vmatpush.bf16.msra.mxu0 0
        %1306 = vmatpush.bf16.msra.mxu0 0
        %1307 = vmatpush.bf16.msra.mxu0 0
        %1308 = vmatpush.bf16.msra.mxu0 0
        %1309 = vmatpush.bf16.msra.mxu0 0
        %1310 = vmatpush.bf16.msra.mxu0 %v1301
        %1311 = vmatmul.bf16.gmra.mxu0 %v1298
        %v1312 = vpop.f32.mrf.mxu0
        %v1313 = vadd.f32 0.0, %v1312
        %v1314 = vpop.f32.mrf.mxu0
        %1315 = vdwg.mxu0
        %1317 = vrot.lane.b32.xlu0 %v1169, 8
        %v1318 = vpop.permute.xlu0 %1317
        %1321 = vrot.lane.b32.xlu0 %v1241, 16
        %v1322 = vpop.permute.xlu0 %1321
        %1325 = vrot.lane.b32.xlu0 %v1313, 24
        %v1326 = vpop.permute.xlu0 %1325
        %v1328 = vsel %vm1023, %v1094, %v1318
        %vm1329 = vcmask 130048
        %v1330 = vsel %vm1329, %v1328, %v1322
        %vm1331 = vcmask 195584
        %v1332 = vsel %vm1331, %v1330, %v1326
        %v1333 = vpack.c.bf16 %v1332, %v1332
        %v1334 = vld [vmem:[%s865] sm:$0xf]
        %v1335 = vld [vmem:[%s865 + $0x4] sm:$0xf]
        %v1336 = vld [vmem:[%s865 + $0x8] sm:$0xf]
        %v1337 = vld [vmem:[%s865 + $0xc] sm:$0xf]
        %v1338 = vld [vmem:[%s868] sm:$0x1]
        %v1340 = vperm.slane %v1338, 0
        %v1346 = vunpack.c.l.b16 %v1334
        %v1347 = vunpack.c.l.b16 %v1335
        %v1348 = vunpack.c.l.b16 %v1336
        %v1349 = vunpack.c.l.b16 %v1337
        %v1350 = vpack.c.b16 %v1347, %v1346
        %v1351 = vpack.c.b16 %v1349, %v1348
        %v1355 = vsel %vm998, %v1333, 0
        %1357 = vmatpush.bf16.msra.mxu0 0
        %1358 = vmatpush.bf16.msra.mxu0 0
        %1359 = vmatpush.bf16.msra.mxu0 0
        %1360 = vmatpush.bf16.msra.mxu0 0
        %1361 = vmatpush.bf16.msra.mxu0 0
        %1362 = vmatpush.bf16.msra.mxu0 0
        %1363 = vmatpush.bf16.msra.mxu0 %v1351
        %1364 = vmatpush.bf16.msra.mxu0 %v1350
        %1365 = vmatmul.bf16.gmra.mxu0 %v1355
        %v1366 = vpop.f32.mrf.mxu0
        %v1367 = vadd.f32 %v1340, %v1366
        %v1368 = vpop.f32.mrf.mxu0
        %1369 = vdwg.mxu0
        %v1370 = vadd.f32 %v936, %v1367
        %v1371 = vld [vmem:[%s871] sm:$0x1]
        %v1372 = vld [vmem:[%s874] sm:$0x1]
        %v1373 = vsel %vm939, %v1370, 0.0
        %1374 = vadd.xlane.f32.xlu0 %v1373
        %v1375 = vpop.xlane.xlu0 %1374
        %v1376 = vmul.f32 %v1375, %v949
        %v1377 = vsub.f32 %v1370, %v1376
        %v1378 = vmul.f32 %v1377, %v1377
        %v1379 = vsel %vm939, %v1378, 0.0
        %1380 = vadd.xlane.f32.xlu0 %v1379
        %v1381 = vpop.xlane.xlu0 %1380
        %v1382 = vmul.f32 %v1381, %v949
        %v1383 = vadd.f32 %v1382, 1e-05
        %v1384 = vrsqrt.pop %v1383
        %v1385 = vmul.f32 %v1384, %v1383
        %v1386 = vmul.f32 %v1385, %v1384
        %v1387 = vmul.f32 0.5, %v1386
        %v1388 = vsub.f32 1.5, %v1387
        %v1389 = vmul.f32 %v1384, %v1388
        %vm1390 = vweird.f32 %v1383
        %vm1391 = vweird.f32 %v1384
        %vm1392 = vmor %vm1390, %vm1391
        %v1393 = vsel %vm1392, %v1384, %v1389
        %v1394 = vmul.f32 %v1377, %v1393
        %v1396 = vperm.slane %v1371, 0
        %v1398 = vmul.f32 %v1394, %v1396
        %v1400 = vperm.slane %v1372, 0
        %v1402 = vadd.f32 %v1398, %v1400
        %v1403 = vpack.c.bf16 %v1402, %v1402
        %v1404 = vld [vmem:[%s879] sm:$0xf]
        %v1405 = vld [vmem:[%s879 + $0x4] sm:$0xf]
        %v1406 = vld [vmem:[%s879 + $0x8] sm:$0xf]
        %v1407 = vld [vmem:[%s879 + $0xc] sm:$0xf]
        %v1408 = vld [vmem:[%s882] sm:$0x1]
        %v1410 = vperm.slane %v1408, 0
        %v1416 = vunpack.c.l.b16 %v1404
        %v1417 = vunpack.c.l.b16 %v1405
        %v1418 = vunpack.c.l.b16 %v1406
        %v1419 = vunpack.c.l.b16 %v1407
        %v1420 = vpack.c.b16 %v1417, %v1416
        %v1421 = vpack.c.b16 %v1419, %v1418
        %v1425 = vsel %vm998, %v1403, 0
        %1427 = vmatpush.bf16.msra.mxu0 0
        %1428 = vmatpush.bf16.msra.mxu0 0
        %1429 = vmatpush.bf16.msra.mxu0 0
        %1430 = vmatpush.bf16.msra.mxu0 0
        %1431 = vmatpush.bf16.msra.mxu0 0
        %1432 = vmatpush.bf16.msra.mxu0 0
        %1433 = vmatpush.bf16.msra.mxu0 %v1421
        %1434 = vmatpush.bf16.msra.mxu0 %v1420
        %1435 = vmatmul.bf16.gmra.mxu0 %v1425
        %v1436 = vpop.f32.mrf.mxu0
        %v1437 = vadd.f32 %v1410, %v1436
        %v1438 = vpop.f32.mrf.mxu0
        %1439 = vdwg.mxu0
        %v1440 = vmul.f32 %v1437, %v1437
        %v1441 = vmul.f32 %v1437, %v1440
        %v1442 = vmul.f32 %v1441, 0.044715
        %v1443 = vadd.f32 %v1437, %v1442
        %v1444 = vmul.f32 %v1443, 0.7978846
        %v1445 = vtanh.pop %v1444
        %v1446 = vadd.f32 %v1445, 1.0
        %v1447 = vmul.f32 %v1446, 0.5
        %v1448 = vmul.f32 %v1437, %v1447
        %v1449 = vpack.c.bf16 %v1448, %v1448
        %v1450 = vld [vmem:[%s887] sm:$0xf]
        %v1451 = vld [vmem:[%s887 + $0x4] sm:$0xf]
        %v1452 = vld [vmem:[%s887 + $0x8] sm:$0xf]
        %v1453 = vld [vmem:[%s887 + $0xc] sm:$0xf]
        %v1454 = vld [vmem:[%s887 + $0x10] sm:$0xf]
        %v1455 = vld [vmem:[%s887 + $0x14] sm:$0xf]
        %v1456 = vld [vmem:[%s887 + $0x18] sm:$0xf]
        %v1457 = vld [vmem:[%s887 + $0x1c] sm:$0xf]
        %v1458 = vld [vmem:[%s887 + $0x20] sm:$0xf]
        %v1459 = vld [vmem:[%s887 + $0x24] sm:$0xf]
        %v1460 = vld [vmem:[%s887 + $0x28] sm:$0xf]
        %v1461 = vld [vmem:[%s887 + $0x2c] sm:$0xf]
        %v1462 = vld [vmem:[%s887 + $0x30] sm:$0xf]
        %v1463 = vld [vmem:[%s887 + $0x34] sm:$0xf]
        %v1464 = vld [vmem:[%s887 + $0x38] sm:$0xf]
        %v1465 = vld [vmem:[%s887 + $0x3c] sm:$0xf]
        %v1466 = vld [vmem:[%s890] sm:$0x1]
        %v1468 = vperm.slane %v1466, 0
        %v1486 = vunpack.c.l.b16 %v1450
        %v1487 = vunpack.c.l.b16 %v1451
        %v1488 = vunpack.c.l.b16 %v1452
        %v1489 = vunpack.c.l.b16 %v1453
        %v1490 = vunpack.c.l.b16 %v1454
        %v1491 = vunpack.c.l.b16 %v1455
        %v1492 = vunpack.c.l.b16 %v1456
        %v1493 = vunpack.c.l.b16 %v1457
        %v1494 = vunpack.c.l.b16 %v1458
        %v1495 = vunpack.c.l.b16 %v1459
        %v1496 = vunpack.c.l.b16 %v1460
        %v1497 = vunpack.c.l.b16 %v1461
        %v1498 = vunpack.c.l.b16 %v1462
        %v1499 = vunpack.c.l.b16 %v1463
        %v1500 = vunpack.c.l.b16 %v1464
        %v1501 = vunpack.c.l.b16 %v1465
        %v1502 = vpack.c.b16 %v1487, %v1486
        %v1503 = vpack.c.b16 %v1489, %v1488
        %v1504 = vpack.c.b16 %v1491, %v1490
        %v1505 = vpack.c.b16 %v1493, %v1492
        %v1506 = vpack.c.b16 %v1495, %v1494
        %v1507 = vpack.c.b16 %v1497, %v1496
        %v1508 = vpack.c.b16 %v1499, %v1498
        %v1509 = vpack.c.b16 %v1501, %v1500
        %1518 = vmatpush.bf16.msra.mxu0 %v1509
        %1519 = vmatpush.bf16.msra.mxu0 %v1508
        %1520 = vmatpush.bf16.msra.mxu0 %v1507
        %1521 = vmatpush.bf16.msra.mxu0 %v1506
        %1522 = vmatpush.bf16.msra.mxu0 %v1505
        %1523 = vmatpush.bf16.msra.mxu0 %v1504
        %1524 = vmatpush.bf16.msra.mxu0 %v1503
        %1525 = vmatpush.bf16.msra.mxu0 %v1502
        %1526 = vmatmul.bf16.gmra.mxu0 %v1449
        %v1527 = vpop.f32.mrf.mxu0
        %v1528 = vadd.f32 %v1468, %v1527
        %v1529 = vpop.f32.mrf.mxu0
        %1530 = vdwg.mxu0
        %v1531 = vadd.f32 %v1370, %v1528
        %1532 = vst.msk [vmem:[#allocation2] sm:$0x1f] %vm939, %v1531
        %p1533 = scmp.eq.s32.totalorder %s42, 1
        // Predicated region
        $region109: #{tpu_custom_call.1} parent=103 // pred_check
          %p1534 = pneg %p1533
        $region110: #{tpu_custom_call.1} parent=103 // pred_check_branch
          %1536 = sbr.rel (%p1534) target = $region112
        $region111: #{tpu_custom_call.1} parent=103 // pred_region
          %v1537 = vld [vmem:[%s17] sm:$0x1]
          %v1538 = vld [vmem:[%s18] sm:$0x1]
          %vm1539 = vcmask 253952
          %v1540 = vsel %vm1539, %v1531, 0.0
          %1541 = vadd.xlane.f32.xlu0 %v1540
          %v1542 = vpop.xlane.xlu0 %1541
          %v1543 = vmul.f32 %v1542, %v949
          %v1544 = vsub.f32 %v1531, %v1543
          %v1545 = vmul.f32 %v1544, %v1544
          %v1546 = vsel %vm1539, %v1545, 0.0
          %1547 = vadd.xlane.f32.xlu0 %v1546
          %v1548 = vpop.xlane.xlu0 %1547
          %v1549 = vmul.f32 %v1548, %v949
          %v1550 = vadd.f32 %v1549, 1e-05
          %v1551 = vrsqrt.pop %v1550
          %v1552 = vmul.f32 %v1551, %v1550
          %v1553 = vmul.f32 %v1552, %v1551
          %v1554 = vmul.f32 0.5, %v1553
          %v1555 = vsub.f32 1.5, %v1554
          %v1556 = vmul.f32 %v1551, %v1555
          %vm1557 = vweird.f32 %v1550
          %vm1558 = vweird.f32 %v1551
          %vm1559 = vmor %vm1557, %vm1558
          %v1560 = vsel %vm1559, %v1551, %v1556
          %v1561 = vmul.f32 %v1544, %v1560
          %v1562 = vmul.f32 %v1561, %v1537
          %v1563 = vadd.f32 %v1562, %v1538
          %v1564 = vpack.c.bf16 %v1563, %v1563
          %v1565 = vld [vmem:[%s19] sm:$0xf]
          %v1566 = vld [vmem:[%s19 + $0x4] sm:$0xf]
          %v1567 = vld [vmem:[%s19 + $0x8] sm:$0xf]
          %v1568 = vld [vmem:[%s19 + $0xc] sm:$0xf]
          %v1569 = vld [vmem:[%s20] sm:$0x1]
          %v1574 = vunpack.c.l.b16 %v1565
          %v1575 = vunpack.c.l.b16 %v1566
          %v1576 = vunpack.c.l.b16 %v1567
          %v1577 = vunpack.c.l.b16 %v1568
          %v1578 = vpack.c.b16 %v1575, %v1574
          %v1579 = vpack.c.b16 %v1577, %v1576
          %v1583 = vsel %vm998, %v1564, 0
          %1585 = vmatpush.bf16.msra.mxu0 0
          %1586 = vmatpush.bf16.msra.mxu0 0
          %1587 = vmatpush.bf16.msra.mxu0 0
          %1588 = vmatpush.bf16.msra.mxu0 0
          %1589 = vmatpush.bf16.msra.mxu0 0
          %1590 = vmatpush.bf16.msra.mxu0 0
          %1591 = vmatpush.bf16.msra.mxu0 %v1579
          %1592 = vmatpush.bf16.msra.mxu0 %v1578
          %1593 = vmatmul.bf16.gmra.mxu0 %v1583
          %v1594 = vpop.f32.mrf.mxu0
          %v1595 = vadd.f32 %v1569, %v1594
          %v1596 = vpop.f32.mrf.mxu0
          %1597 = vdwg.mxu0
          %1598 = vst [vmem:[%s842] sm:$0x1] %v1595
        $region112: #{tpu_custom_call.1} parent=103 // pred_fallthru
          _
        %s1599 = sand.u32 %s565, 1
        %s1600 = sand.u32 %s565, 1
        %s1601 = smul.addr %s1600, 32
        %s1602 = scalar_lea.vmem [#allocation3], %s1601
        %s1603 = sand.u32 %s591, 1
        %s1604 = scalar_lea.sflag [#allocation5], %s1603
        %s1605 = sand.u32 %s591, 1
        %s1606 = scalar_lea.vmem [#allocation4], %s1605
        // Predicated region
        $region113: #{tpu_custom_call.1} parent=103 // pred_check
          %p1607 = pneg %p575
        $region114: #{tpu_custom_call.1} parent=103 // pred_check_branch
          %1609 = sbr.rel (%p1607) target = $region116
        $region115: #{tpu_custom_call.1} parent=103 // pred_region
          %s1610 = smul.u32 4, %s42
          %s1611 = smul.addr %s1610, 2
          %s1612 = sadd.s32 %s41, %s1611
          %s1613 = smul.addr %s1612, 8
          %s1614 = scalar_lea.vmem %s21, %s1613
          // Predicated region
          $region117: #{tpu_custom_call.1} parent=115 // pred_check
            _
          $region118: #{tpu_custom_call.1} parent=115 // pred_check_branch
            %1616 = sbr.rel (0) target = $region120
          $region119: #{tpu_custom_call.1} parent=115 // pred_region
            // Predicated region
            $region121: #{tpu_custom_call.1} parent=119 // pred_check
              _
            $region122: #{tpu_custom_call.1} parent=119 // pred_check_branch
              %1618 = sbr.rel (0) target = $region124
            $region123: #{tpu_custom_call.1} parent=119 // pred_region
              // Predicated region
              $region136: #{tpu_custom_call.1} parent=123 // pred_check
                _
              $region137: #{tpu_custom_call.1} parent=123 // pred_check_branch
                %1640 = sbr.rel (0) target = $region139
              $region138: #{tpu_custom_call.1} parent=123 // pred_region
                loop: start=0, step=1, limit=1
                $region140: #{tpu_custom_call.1} parent=138 // loop_pre_header
                  _
                $region141: #{tpu_custom_call.1} parent=138 // loop_header
                  %s1642 = sphi 0, %s1646
                  %p1643 = scmp.ge.s32.totalorder %s1642, 1
                  %s1647 = sphi %s1602, %s1602
                  %s1648 = sphi %s1614, %s1614
                $region142: #{tpu_custom_call.1} parent=138 // loop_header_branch
                  %1645 = sbr.rel (%p1643) target = $region146
                $region143: #{tpu_custom_call.1} parent=138 // loop_body
                  %v1649 = vld [vmem:[%s1647] sm:$0xff]
                  %1650 = vst [vmem:[%s1648] sm:$0xff] %v1649
                  %v1651 = vld [vmem:[%s1647 + $0x8] sm:$0xff]
                  %1652 = vst [vmem:[%s1648 + $0x10] sm:$0xff] %v1651
                  %v1653 = vld [vmem:[%s1647 + $0x10] sm:$0xff]
                  %1654 = vst [vmem:[%s1648 + $0x20] sm:$0xff] %v1653
                  %v1655 = vld [vmem:[%s1647 + $0x18] sm:$0xff]
                  %1656 = vst [vmem:[%s1648 + $0x30] sm:$0xff] %v1655
                $region144: #{tpu_custom_call.1} parent=138 // loop_footer
                  %s1646 = sadd.s32 1, %s1642
                $region145: #{tpu_custom_call.1} parent=138 // loop_footer_branch
                  %1641 = sbr.rel target = $region141
                $region146: #{tpu_custom_call.1} parent=138 // loop_exit
                  _
              $region139: #{tpu_custom_call.1} parent=123 // pred_fallthru
                _
              // Predicated region
              $region147: #{tpu_custom_call.1} parent=123 // pred_check
                _
              $region148: #{tpu_custom_call.1} parent=123 // pred_check_branch
                %1658 = sbr.rel target = $region150
              $region149: #{tpu_custom_call.1} parent=123 // pred_region
                _
              $region150: #{tpu_custom_call.1} parent=123 // pred_fallthru
                _
            $region124: #{tpu_custom_call.1} parent=119 // pred_fallthru
              _
            // Predicated region
            $region125: #{tpu_custom_call.1} parent=119 // pred_check
              _
            $region126: #{tpu_custom_call.1} parent=119 // pred_check_branch
              %1620 = sbr.rel target = $region128
            $region127: #{tpu_custom_call.1} parent=119 // pred_region
              %s1622 = ssub.s32 256, 1
              loop: start=0, step=1, limit=1
              $region129: #{tpu_custom_call.1} parent=127 // loop_pre_header
                _
              $region130: #{tpu_custom_call.1} parent=127 // loop_header
                %s1624 = sphi 0, %s1628
                %p1625 = scmp.ge.s32.totalorder %s1624, 1
                %s1629 = sphi %s1602, %s1602
                %s1630 = sphi %s1614, %s1614
              $region131: #{tpu_custom_call.1} parent=127 // loop_header_branch
                %1627 = sbr.rel (%p1625) target = $region135
              $region132: #{tpu_custom_call.1} parent=127 // loop_body
                %v1631 = vld [vmem:[%s1629] sm:%s1622]
                %1632 = vst [vmem:[%s1630] sm:%s1622] %v1631
                %v1633 = vld [vmem:[%s1629 + $0x8] sm:%s1622]
                %1634 = vst [vmem:[%s1630 + $0x10] sm:%s1622] %v1633
                %v1635 = vld [vmem:[%s1629 + $0x10] sm:%s1622]
                %1636 = vst [vmem:[%s1630 + $0x20] sm:%s1622] %v1635
                %v1637 = vld [vmem:[%s1629 + $0x18] sm:%s1622]
                %1638 = vst [vmem:[%s1630 + $0x30] sm:%s1622] %v1637
              $region133: #{tpu_custom_call.1} parent=127 // loop_footer
                %s1628 = sadd.s32 1, %s1624
              $region134: #{tpu_custom_call.1} parent=127 // loop_footer_branch
                %1623 = sbr.rel target = $region130
              $region135: #{tpu_custom_call.1} parent=127 // loop_exit
                _
            $region128: #{tpu_custom_call.1} parent=119 // pred_fallthru
              _
          $region120: #{tpu_custom_call.1} parent=115 // pred_fallthru
            _
          %1659 = vnop
        $region116: #{tpu_custom_call.1} parent=103 // pred_fallthru
          _
        // Predicated region
        $region151: #{tpu_custom_call.1} parent=103 // pred_check
          %p1660 = pneg %p601
        $region152: #{tpu_custom_call.1} parent=103 // pred_check_branch
          %1662 = sbr.rel (%p1660) target = $region154
        $region153: #{tpu_custom_call.1} parent=103 // pred_region
          %1664 = vsyncadd %s1604, 0
          %s1665 = scalar_lea.hbm %s22, %s41
          %s1667 = sshll.u32 %s1606, 4
          %s1668 = int_to_ptr.vmem [resolvable:$true] %s1667
          %s1669 = sshll.u32 %s1665, 4
          %s1670 = int_to_ptr.hbm [resolvable:$true] %s1669
          %1672 = dma.vmem_to_hbm [thread:$0]  %s1668, 16, %s1670, %s1604
        $region154: #{tpu_custom_call.1} parent=103 // pred_fallthru
          _
      $region104: #{tpu_custom_call.1} parent=5 // pred_fallthru
        _
      %p1673 = scmp.le.s32.totalorder 2, %s32
      // Predicated region
      $region155: #{tpu_custom_call.1} parent=5 // pred_check
        %p1674 = pneg %p1673
      $region156: #{tpu_custom_call.1} parent=5 // pred_check_branch
        %1676 = sbr.rel (%p1674) target = $region158
      $region157: #{tpu_custom_call.1} parent=5 // pred_region
        %s1677 = ssub.s32 %s32, 2
        // Predicated region
        $region159: #{tpu_custom_call.1} parent=157 // pred_check
          %p1678 = pneg %p581
        $region160: #{tpu_custom_call.1} parent=157 // pred_check_branch
          %1680 = sbr.rel (%p1678) target = $region162
        $region161: #{tpu_custom_call.1} parent=157 // pred_region
          %s1681 = sand.u32 %s566, 1
          %s1682 = sand.u32 %s566, 1
          %s1683 = smul.addr %s1682, 32
          %s1684 = scalar_lea.vmem [#allocation3], %s1683
        $region162: #{tpu_custom_call.1} parent=157 // pred_fallthru
          _
        // Predicated region
        $region163: #{tpu_custom_call.1} parent=157 // pred_check
          %p1685 = pneg %p607
        $region164: #{tpu_custom_call.1} parent=157 // pred_check_branch
          %1687 = sbr.rel (%p1685) target = $region166
        $region165: #{tpu_custom_call.1} parent=157 // pred_region
          %s1688 = sand.u32 %s592, 1
          %s1689 = scalar_lea.sflag [#allocation5], %s1688
          %s1690 = sand.u32 %s592, 1
          %s1691 = scalar_lea.vmem [#allocation4], %s1690
          %1693 = dma.done %s1689, 16
        $region166: #{tpu_custom_call.1} parent=157 // pred_fallthru
          _
      $region158: #{tpu_custom_call.1} parent=5 // pred_fallthru
        _
    $region6: #{tpu_custom_call.1} parent=1 // loop_footer
      %s36 = sadd.s32 1, %s32
    $region7: #{tpu_custom_call.1} parent=1 // loop_footer_branch
      %31 = sbr.rel target = $region3
    $region8: #{tpu_custom_call.1} parent=1 // loop_exit
      _
    %1694 = vsyncpa [#allocation5], 1
    %s1695 = scalar_lea.sflag [#allocation5], 1
    %1696 = vsyncpa %s1695, 1

// kernel: tpu_custom_call.1
$region0: #{tpu_custom_call.1}
  #allocation0 [shape = 'u32[]', space=smem, size = 0x4, offset = 0x4, fixed_abs, tag = 'smem constant byte address 0x4 - core index']
  #allocation1 [shape = 'u32[72,128]{1,0:T(1,128)}', space=vmem, size = 0x9000, scoped, tag = 'internal scratch']
  #allocation2 [shape = 'f32[1,5,32]{2,1,0:T(8,128)}', space=vmem, size = 0x1000, scoped, tag = 'scratch operand']
  %s0 = inlined_call_operand.vmem [shape: bf16[2,4,16], index: 0, kind: input, shape index: {}]
  %s1 = inlined_call_operand.vmem [shape: bf16[16,32], index: 1, kind: input, shape index: {}]
  %s2 = inlined_call_operand.vmem [shape: f32[1,32], index: 2, kind: input, shape index: {}]
  %s3 = inlined_call_operand.vmem [shape: f32[1,32], index: 3, kind: input, shape index: {}]
  %s4 = inlined_call_operand.vmem [shape: f32[5,32], index: 4, kind: input, shape index: {}]
  %s5 = inlined_call_operand.vmem [shape: f32[2,1,32], index: 5, kind: input, shape index: {}]
  %s6 = inlined_call_operand.vmem [shape: f32[2,1,32], index: 6, kind: input, shape index: {}]
  %s7 = inlined_call_operand.vmem [shape: bf16[2,32,96], index: 7, kind: input, shape index: {}]
  %s8 = inlined_call_operand.vmem [shape: f32[2,1,96], index: 8, kind: input, shape index: {}]
  %s9 = inlined_call_operand.vmem [shape: bf16[2,32,32], index: 9, kind: input, shape index: {}]
  %s10 = inlined_call_operand.vmem [shape: f32[2,1,32], index: 10, kind: input, shape index: {}]
  %s11 = inlined_call_operand.vmem [shape: f32[2,1,32], index: 11, kind: input, shape index: {}]
  %s12 = inlined_call_operand.vmem [shape: f32[2,1,32], index: 12, kind: input, shape index: {}]
  %s13 = inlined_call_operand.vmem [shape: bf16[2,32,128], index: 13, kind: input, shape index: {}]
  %s14 = inlined_call_operand.vmem [shape: f32[2,1,128], index: 14, kind: input, shape index: {}]
  %s15 = inlined_call_operand.vmem [shape: bf16[2,128,32], index: 15, kind: input, shape index: {}]
  %s16 = inlined_call_operand.vmem [shape: f32[2,1,32], index: 16, kind: input, shape index: {}]
  %s17 = inlined_call_operand.vmem [shape: f32[1,32], index: 17, kind: input, shape index: {}]
  %s18 = inlined_call_operand.vmem [shape: f32[1,32], index: 18, kind: input, shape index: {}]
  %s19 = inlined_call_operand.vmem [shape: bf16[32,128], index: 19, kind: input, shape index: {}]
  %s20 = inlined_call_operand.vmem [shape: f32[1,128], index: 20, kind: input, shape index: {}]
  %s21 = inlined_call_operand.vmem [shape: f32[8,2,5,128], index: 21, kind: output, shape index: {0}]
  %s22 = inlined_call_operand.hbm [shape: f32[2,1,128], index: 22, kind: output, shape index: {1}]
  %23 = xla_tuple %s21, %s22
  %s24 = sld [smem:[#allocation0]]
  $region167: #{tpu_custom_call.1} parent=0
    _
  %s26 = ssub.s32 1, %s24
  %s27 = scalar_select 0, %s26, %s24
  $region1: #{tpu_custom_call.1} parent=0
    #allocation3 [shape = 'u8[32768]{0}', space=vmem, size = 0x8000, scoped, tag = 'output window, operand 0']
    #allocation4 [shape = 'u8[1024]{0}', space=vmem, size = 0x400, scoped, tag = 'output window, operand 1']
    #allocation5 [shape = 's32[2]{0}', space=sflag, size = 0x8, scoped, tag = 'scoped memory for tpu_custom_call.1']
    %28 = vsyncpa [#allocation5], 0
    %s29 = scalar_lea.sflag [#allocation5], 1
    %30 = vsyncpa %s29, 0
    loop: start=0, step=1, limit=6
    $region2: #{tpu_custom_call.1} parent=1 // loop_pre_header
      _
    $region3: #{tpu_custom_call.1} parent=1 // loop_header
      %s32 = sphi 0, %s36
      %p33 = scmp.ge.s32.totalorder %s32, 6
      %s39 = sphi 0, %s51
      %s40 = sphi 0, %s47
      %s41 = sphi 0, %s39
      %s42 = sphi 0, %s40
      %s43 = sphi 0, %s41
      %s44 = sphi 0, %s42
      %s54 = sphi 0, %s56
      %s57 = sphi 0, %s54
      %s58 = sphi 0, %s57
      %s74 = sphi 0, %s58
      %s78 = sphi 0, %s78
      %s80 = sphi 0, %s78
      %s81 = sphi 0, %s80
      %s95 = sphi 0, %s81
      %s99 = sphi 0, %s99
      %s101 = sphi 0, %s99
      %s102 = sphi 0, %s101
      %s116 = sphi 0, %s102
      %s120 = sphi 0, %s120
      %s122 = sphi 0, %s120
      %s123 = sphi 0, %s122
      %s137 = sphi 0, %s123
      %s141 = sphi 0, %s141
      %s143 = sphi 0, %s141
      %s144 = sphi 0, %s143
      %s158 = sphi 0, %s144
      %s164 = sphi 0, %s166
      %s167 = sphi 0, %s164
      %s168 = sphi 0, %s167
      %s184 = sphi 0, %s168
      %s190 = sphi 0, %s192
      %s193 = sphi 0, %s190
      %s194 = sphi 0, %s193
      %s210 = sphi 0, %s194
      %s216 = sphi 0, %s218
      %s219 = sphi 0, %s216
      %s220 = sphi 0, %s219
      %s236 = sphi 0, %s220
      %s242 = sphi 0, %s244
      %s245 = sphi 0, %s242
      %s246 = sphi 0, %s245
      %s262 = sphi 0, %s246
      %s268 = sphi 0, %s270
      %s271 = sphi 0, %s268
      %s272 = sphi 0, %s271
      %s288 = sphi 0, %s272
      %s294 = sphi 0, %s296
      %s297 = sphi 0, %s294
      %s298 = sphi 0, %s297
      %s314 = sphi 0, %s298
      %s320 = sphi 0, %s322
      %s323 = sphi 0, %s320
      %s324 = sphi 0, %s323
      %s340 = sphi 0, %s324
      %s346 = sphi 0, %s348
      %s349 = sphi 0, %s346
      %s350 = sphi 0, %s349
      %s366 = sphi 0, %s350
      %s372 = sphi 0, %s374
      %s375 = sphi 0, %s372
      %s376 = sphi 0, %s375
      %s392 = sphi 0, %s376
      %s398 = sphi 0, %s400
      %s401 = sphi 0, %s398
      %s402 = sphi 0, %s401
      %s418 = sphi 0, %s402
      %s424 = sphi 0, %s426
      %s427 = sphi 0, %s424
      %s428 = sphi 0, %s427
      %s444 = sphi 0, %s428
      %s450 = sphi 0, %s452
      %s453 = sphi 0, %s450
      %s454 = sphi 0, %s453
      %s470 = sphi 0, %s454
      %s474 = sphi 0, %s474
      %s476 = sphi 0, %s474
      %s477 = sphi 0, %s476
      %s491 = sphi 0, %s477
      %s495 = sphi 0, %s495
      %s497 = sphi 0, %s495
      %s498 = sphi 0, %s497
      %s512 = sphi 0, %s498
      %s516 = sphi 0, %s516
      %s518 = sphi 0, %s516
      %s519 = sphi 0, %s518
      %s533 = sphi 0, %s519
      %s537 = sphi 0, %s537
      %s539 = sphi 0, %s537
      %s540 = sphi 0, %s539
      %s554 = sphi 0, %s540
      %s562 = sphi 0, %s564
      %s565 = sphi 0, %s562
      %s566 = sphi 0, %s565
      %s582 = sphi 0, %s566
      %s588 = sphi 0, %s590
      %s591 = sphi 0, %s588
      %s592 = sphi 0, %s591
      %s608 = sphi 0, %s592
    $region4: #{tpu_custom_call.1} parent=1 // loop_header_branch
      %35 = sbr.rel (%p33) target = $region8
    $region5: #{tpu_custom_call.1} parent=1 // loop_body
      %s37 = ssub.s32 %s32, 1
      %s38 = ssub.s32 %s32, 2
      %s45 = sadd.s32 1, %s40
      %p46 = scmp.ge.s32.totalorder %s45, 2
      %s47 = scalar_select %p46, 0, %s45
      %s48 = sadd.s32 1, %s39
      %s49 = scalar_select %p46, %s48, %s39
      %p50 = scmp.ge.s32.totalorder %s49, 2
      %s51 = scalar_select %p50, 0, %s49
      %s52 = ssub.s32 %s39, %s51
      %p53 = scmp.eq.s32.totalorder %s52, 0
      %s55 = sadd.s32 %s54, 1
      %s56 = scalar_select %p53, %s54, %s55
      %p59 = pneg %p53
      %p60 = scmp.eq.s32.totalorder %s32, 3
      %p61 = por %p59, %p60
      %p62 = scmp.ne.s32.totalorder %s54, %s57
      %p63 = scmp.eq.s32.totalorder %s32, 0
      %p64 = por %p62, %p63
      %p65 = scmp.ne.s32.totalorder %s54, %s57
      %p66 = scmp.eq.s32.totalorder %s37, 3
      %p67 = por %p65, %p66
      %p68 = scmp.ne.s32.totalorder %s57, %s58
      %p69 = scmp.eq.s32.totalorder %s37, 0
      %p70 = por %p68, %p69
      %p71 = scmp.ne.s32.totalorder %s57, %s58
      %p72 = scmp.eq.s32.totalorder %s38, 3
      %p73 = por %p71, %p72
      %p75 = scmp.ne.s32.totalorder %s58, %s74
      %p76 = scmp.eq.s32.totalorder %s38, 0
      %p77 = por %p75, %p76
      %s79 = sadd.s32 %s78, 1
      %p82 = scmp.eq.s32.totalorder %s32, 3
      %p83 = scmp.ne.s32.totalorder %s78, %s80
      %p84 = scmp.eq.s32.totalorder %s32, 0
      %p85 = por %p83, %p84
      %p86 = scmp.ne.s32.totalorder %s78, %s80
      %p87 = scmp.eq.s32.totalorder %s37, 3
      %p88 = por %p86, %p87
      %p89 = scmp.ne.s32.totalorder %s80, %s81
      %p90 = scmp.eq.s32.totalorder %s37, 0
      %p91 = por %p89, %p90
      %p92 = scmp.ne.s32.totalorder %s80, %s81
      %p93 = scmp.eq.s32.totalorder %s38, 3
      %p94 = por %p92, %p93
      %p96 = scmp.ne.s32.totalorder %s81, %s95
      %p97 = scmp.eq.s32.totalorder %s38, 0
      %p98 = por %p96, %p97
      %s100 = sadd.s32 %s99, 1
      %p103 = scmp.eq.s32.totalorder %s32, 3
      %p104 = scmp.ne.s32.totalorder %s99, %s101
      %p105 = scmp.eq.s32.totalorder %s32, 0
      %p106 = por %p104, %p105
      %p107 = scmp.ne.s32.totalorder %s99, %s101
      %p108 = scmp.eq.s32.totalorder %s37, 3
      %p109 = por %p107, %p108
      %p110 = scmp.ne.s32.totalorder %s101, %s102
      %p111 = scmp.eq.s32.totalorder %s37, 0
      %p112 = por %p110, %p111
      %p113 = scmp.ne.s32.totalorder %s101, %s102
      %p114 = scmp.eq.s32.totalorder %s38, 3
      %p115 = por %p113, %p114
      %p117 = scmp.ne.s32.totalorder %s102, %s116
      %p118 = scmp.eq.s32.totalorder %s38, 0
      %p119 = por %p117, %p118
      %s121 = sadd.s32 %s120, 1
      %p124 = scmp.eq.s32.totalorder %s32, 3
      %p125 = scmp.ne.s32.totalorder %s120, %s122
      %p126 = scmp.eq.s32.totalorder %s32, 0
      %p127 = por %p125, %p126
      %p128 = scmp.ne.s32.totalorder %s120, %s122
      %p129 = scmp.eq.s32.totalorder %s37, 3
      %p130 = por %p128, %p129
      %p131 = scmp.ne.s32.totalorder %s122, %s123
      %p132 = scmp.eq.s32.totalorder %s37, 0
      %p133 = por %p131, %p132
      %p134 = scmp.ne.s32.totalorder %s122, %s123
      %p135 = scmp.eq.s32.totalorder %s38, 3
      %p136 = por %p134, %p135
      %p138 = scmp.ne.s32.totalorder %s123, %s137
      %p139 = scmp.eq.s32.totalorder %s38, 0
      %p140 = por %p138, %p139
      %s142 = sadd.s32 %s141, 1
      %p145 = scmp.eq.s32.totalorder %s32, 3
      %p146 = scmp.ne.s32.totalorder %s141, %s143
      %p147 = scmp.eq.s32.totalorder %s32, 0
      %p148 = por %p146, %p147
      %p149 = scmp.ne.s32.totalorder %s141, %s143
      %p150 = scmp.eq.s32.totalorder %s37, 3
      %p151 = por %p149, %p150
      %p152 = scmp.ne.s32.totalorder %s143, %s144
      %p153 = scmp.eq.s32.totalorder %s37, 0
      %p154 = por %p152, %p153
      %p155 = scmp.ne.s32.totalorder %s143, %s144
      %p156 = scmp.eq.s32.totalorder %s38, 3
      %p157 = por %p155, %p156
      %p159 = scmp.ne.s32.totalorder %s144, %s158
      %p160 = scmp.eq.s32.totalorder %s38, 0
      %p161 = por %p159, %p160
      %s162 = ssub.s32 %s40, %s47
      %p163 = scmp.eq.s32.totalorder %s162, 0
      %s165 = sadd.s32 %s164, 1
      %s166 = scalar_select %p163, %s164, %s165
      %p169 = pneg %p163
      %p170 = scmp.eq.s32.totalorder %s32, 3
      %p171 = por %p169, %p170
      %p172 = scmp.ne.s32.totalorder %s164, %s167
      %p173 = scmp.eq.s32.totalorder %s32, 0
      %p174 = por %p172, %p173
      %p175 = scmp.ne.s32.totalorder %s164, %s167
      %p176 = scmp.eq.s32.totalorder %s37, 3
      %p177 = por %p175, %p176
      %p178 = scmp.ne.s32.totalorder %s167, %s168
      %p179 = scmp.eq.s32.totalorder %s37, 0
      %p180 = por %p178, %p179
      %p181 = scmp.ne.s32.totalorder %s167, %s168
      %p182 = scmp.eq.s32.totalorder %s38, 3
      %p183 = por %p181, %p182
      %p185 = scmp.ne.s32.totalorder %s168, %s184
      %p186 = scmp.eq.s32.totalorder %s38, 0
      %p187 = por %p185, %p186
      %s188 = ssub.s32 %s40, %s47
      %p189 = scmp.eq.s32.totalorder %s188, 0
      %s191 = sadd.s32 %s190, 1
      %s192 = scalar_select %p189, %s190, %s191
      %p195 = pneg %p189
      %p196 = scmp.eq.s32.totalorder %s32, 3
      %p197 = por %p195, %p196
      %p198 = scmp.ne.s32.totalorder %s190, %s193
      %p199 = scmp.eq.s32.totalorder %s32, 0
      %p200 = por %p198, %p199
      %p201 = scmp.ne.s32.totalorder %s190, %s193
      %p202 = scmp.eq.s32.totalorder %s37, 3
      %p203 = por %p201, %p202
      %p204 = scmp.ne.s32.totalorder %s193, %s194
      %p205 = scmp.eq.s32.totalorder %s37, 0
      %p206 = por %p204, %p205
      %p207 = scmp.ne.s32.totalorder %s193, %s194
      %p208 = scmp.eq.s32.totalorder %s38, 3
      %p209 = por %p207, %p208
      %p211 = scmp.ne.s32.totalorder %s194, %s210
      %p212 = scmp.eq.s32.totalorder %s38, 0
      %p213 = por %p211, %p212
      %s214 = ssub.s32 %s40, %s47
      %p215 = scmp.eq.s32.totalorder %s214, 0
      %s217 = sadd.s32 %s216, 1
      %s218 = scalar_select %p215, %s216, %s217
      %p221 = pneg %p215
      %p222 = scmp.eq.s32.totalorder %s32, 3
      %p223 = por %p221, %p222
      %p224 = scmp.ne.s32.totalorder %s216, %s219
      %p225 = scmp.eq.s32.totalorder %s32, 0
      %p226 = por %p224, %p225
      %p227 = scmp.ne.s32.totalorder %s216, %s219
      %p228 = scmp.eq.s32.totalorder %s37, 3
      %p229 = por %p227, %p228
      %p230 = scmp.ne.s32.totalorder %s219, %s220
      %p231 = scmp.eq.s32.totalorder %s37, 0
      %p232 = por %p230, %p231
      %p233 = scmp.ne.s32.totalorder %s219, %s220
      %p234 = scmp.eq.s32.totalorder %s38, 3
      %p235 = por %p233, %p234
      %p237 = scmp.ne.s32.totalorder %s220, %s236
      %p238 = scmp.eq.s32.totalorder %s38, 0
      %p239 = por %p237, %p238
      %s240 = ssub.s32 %s40, %s47
      %p241 = scmp.eq.s32.totalorder %s240, 0
      %s243 = sadd.s32 %s242, 1
      %s244 = scalar_select %p241, %s242, %s243
      %p247 = pneg %p241
      %p248 = scmp.eq.s32.totalorder %s32, 3
      %p249 = por %p247, %p248
      %p250 = scmp.ne.s32.totalorder %s242, %s245
      %p251 = scmp.eq.s32.totalorder %s32, 0
      %p252 = por %p250, %p251
      %p253 = scmp.ne.s32.totalorder %s242, %s245
      %p254 = scmp.eq.s32.totalorder %s37, 3
      %p255 = por %p253, %p254
      %p256 = scmp.ne.s32.totalorder %s245, %s246
      %p257 = scmp.eq.s32.totalorder %s37, 0
      %p258 = por %p256, %p257
      %p259 = scmp.ne.s32.totalorder %s245, %s246
      %p260 = scmp.eq.s32.totalorder %s38, 3
      %p261 = por %p259, %p260
      %p263 = scmp.ne.s32.totalorder %s246, %s262
      %p264 = scmp.eq.s32.totalorder %s38, 0
      %p265 = por %p263, %p264
      %s266 = ssub.s32 %s40, %s47
      %p267 = scmp.eq.s32.totalorder %s266, 0
      %s269 = sadd.s32 %s268, 1
      %s270 = scalar_select %p267, %s268, %s269
      %p273 = pneg %p267
      %p274 = scmp.eq.s32.totalorder %s32, 3
      %p275 = por %p273, %p274
      %p276 = scmp.ne.s32.totalorder %s268, %s271
      %p277 = scmp.eq.s32.totalorder %s32, 0
      %p278 = por %p276, %p277
      %p279 = scmp.ne.s32.totalorder %s268, %s271
      %p280 = scmp.eq.s32.totalorder %s37, 3
      %p281 = por %p279, %p280
      %p282 = scmp.ne.s32.totalorder %s271, %s272
      %p283 = scmp.eq.s32.totalorder %s37, 0
      %p284 = por %p282, %p283
      %p285 = scmp.ne.s32.totalorder %s271, %s272
      %p286 = scmp.eq.s32.totalorder %s38, 3
      %p287 = por %p285, %p286
      %p289 = scmp.ne.s32.totalorder %s272, %s288
      %p290 = scmp.eq.s32.totalorder %s38, 0
      %p291 = por %p289, %p290
      %s292 = ssub.s32 %s40, %s47
      %p293 = scmp.eq.s32.totalorder %s292, 0
      %s295 = sadd.s32 %s294, 1
      %s296 = scalar_select %p293, %s294, %s295
      %p299 = pneg %p293
      %p300 = scmp.eq.s32.totalorder %s32, 3
      %p301 = por %p299, %p300
      %p302 = scmp.ne.s32.totalorder %s294, %s297
      %p303 = scmp.eq.s32.totalorder %s32, 0
      %p304 = por %p302, %p303
      %p305 = scmp.ne.s32.totalorder %s294, %s297
      %p306 = scmp.eq.s32.totalorder %s37, 3
      %p307 = por %p305, %p306
      %p308 = scmp.ne.s32.totalorder %s297, %s298
      %p309 = scmp.eq.s32.totalorder %s37, 0
      %p310 = por %p308, %p309
      %p311 = scmp.ne.s32.totalorder %s297, %s298
      %p312 = scmp.eq.s32.totalorder %s38, 3
      %p313 = por %p311, %p312
      %p315 = scmp.ne.s32.totalorder %s298, %s314
      %p316 = scmp.eq.s32.totalorder %s38, 0
      %p317 = por %p315, %p316
      %s318 = ssub.s32 %s40, %s47
      %p319 = scmp.eq.s32.totalorder %s318, 0
      %s321 = sadd.s32 %s320, 1
      %s322 = scalar_select %p319, %s320, %s321
      %p325 = pneg %p319
      %p326 = scmp.eq.s32.totalorder %s32, 3
      %p327 = por %p325, %p326
      %p328 = scmp.ne.s32.totalorder %s320, %s323
      %p329 = scmp.eq.s32.totalorder %s32, 0
      %p330 = por %p328, %p329
      %p331 = scmp.ne.s32.totalorder %s320, %s323
      %p332 = scmp.eq.s32.totalorder %s37, 3
      %p333 = por %p331, %p332
      %p334 = scmp.ne.s32.totalorder %s323, %s324
      %p335 = scmp.eq.s32.totalorder %s37, 0
      %p336 = por %p334, %p335
      %p337 = scmp.ne.s32.totalorder %s323, %s324
      %p338 = scmp.eq.s32.totalorder %s38, 3
      %p339 = por %p337, %p338
      %p341 = scmp.ne.s32.totalorder %s324, %s340
      %p342 = scmp.eq.s32.totalorder %s38, 0
      %p343 = por %p341, %p342
      %s344 = ssub.s32 %s40, %s47
      %p345 = scmp.eq.s32.totalorder %s344, 0
      %s347 = sadd.s32 %s346, 1
      %s348 = scalar_select %p345, %s346, %s347
      %p351 = pneg %p345
      %p352 = scmp.eq.s32.totalorder %s32, 3
      %p353 = por %p351, %p352
      %p354 = scmp.ne.s32.totalorder %s346, %s349
      %p355 = scmp.eq.s32.totalorder %s32, 0
      %p356 = por %p354, %p355
      %p357 = scmp.ne.s32.totalorder %s346, %s349
      %p358 = scmp.eq.s32.totalorder %s37, 3
      %p359 = por %p357, %p358
      %p360 = scmp.ne.s32.totalorder %s349, %s350
      %p361 = scmp.eq.s32.totalorder %s37, 0
      %p362 = por %p360, %p361
      %p363 = scmp.ne.s32.totalorder %s349, %s350
      %p364 = scmp.eq.s32.totalorder %s38, 3
      %p365 = por %p363, %p364
      %p367 = scmp.ne.s32.totalorder %s350, %s366
      %p368 = scmp.eq.s32.totalorder %s38, 0
      %p369 = por %p367, %p368
      %s370 = ssub.s32 %s40, %s47
      %p371 = scmp.eq.s32.totalorder %s370, 0
      %s373 = sadd.s32 %s372, 1
      %s374 = scalar_select %p371, %s372, %s373
      %p377 = pneg %p371
      %p378 = scmp.eq.s32.totalorder %s32, 3
      %p379 = por %p377, %p378
      %p380 = scmp.ne.s32.totalorder %s372, %s375
      %p381 = scmp.eq.s32.totalorder %s32, 0
      %p382 = por %p380, %p381
      %p383 = scmp.ne.s32.totalorder %s372, %s375
      %p384 = scmp.eq.s32.totalorder %s37, 3
      %p385 = por %p383, %p384
      %p386 = scmp.ne.s32.totalorder %s375, %s376
      %p387 = scmp.eq.s32.totalorder %s37, 0
      %p388 = por %p386, %p387
      %p389 = scmp.ne.s32.totalorder %s375, %s376
      %p390 = scmp.eq.s32.totalorder %s38, 3
      %p391 = por %p389, %p390
      %p393 = scmp.ne.s32.totalorder %s376, %s392
      %p394 = scmp.eq.s32.totalorder %s38, 0
      %p395 = por %p393, %p394
      %s396 = ssub.s32 %s40, %s47
      %p397 = scmp.eq.s32.totalorder %s396, 0
      %s399 = sadd.s32 %s398, 1
      %s400 = scalar_select %p397, %s398, %s399
      %p403 = pneg %p397
      %p404 = scmp.eq.s32.totalorder %s32, 3
      %p405 = por %p403, %p404
      %p406 = scmp.ne.s32.totalorder %s398, %s401
      %p407 = scmp.eq.s32.totalorder %s32, 0
      %p408 = por %p406, %p407
      %p409 = scmp.ne.s32.totalorder %s398, %s401
      %p410 = scmp.eq.s32.totalorder %s37, 3
      %p411 = por %p409, %p410
      %p412 = scmp.ne.s32.totalorder %s401, %s402
      %p413 = scmp.eq.s32.totalorder %s37, 0
      %p414 = por %p412, %p413
      %p415 = scmp.ne.s32.totalorder %s401, %s402
      %p416 = scmp.eq.s32.totalorder %s38, 3
      %p417 = por %p415, %p416
      %p419 = scmp.ne.s32.totalorder %s402, %s418
      %p420 = scmp.eq.s32.totalorder %s38, 0
      %p421 = por %p419, %p420
      %s422 = ssub.s32 %s40, %s47
      %p423 = scmp.eq.s32.totalorder %s422, 0
      %s425 = sadd.s32 %s424, 1
      %s426 = scalar_select %p423, %s424, %s425
      %p429 = pneg %p423
      %p430 = scmp.eq.s32.totalorder %s32, 3
      %p431 = por %p429, %p430
      %p432 = scmp.ne.s32.totalorder %s424, %s427
      %p433 = scmp.eq.s32.totalorder %s32, 0
      %p434 = por %p432, %p433
      %p435 = scmp.ne.s32.totalorder %s424, %s427
      %p436 = scmp.eq.s32.totalorder %s37, 3
      %p437 = por %p435, %p436
      %p438 = scmp.ne.s32.totalorder %s427, %s428
      %p439 = scmp.eq.s32.totalorder %s37, 0
      %p440 = por %p438, %p439
      %p441 = scmp.ne.s32.totalorder %s427, %s428
      %p442 = scmp.eq.s32.totalorder %s38, 3
      %p443 = por %p441, %p442
      %p445 = scmp.ne.s32.totalorder %s428, %s444
      %p446 = scmp.eq.s32.totalorder %s38, 0
      %p447 = por %p445, %p446
      %s448 = ssub.s32 %s40, %s47
      %p449 = scmp.eq.s32.totalorder %s448, 0
      %s451 = sadd.s32 %s450, 1
      %s452 = scalar_select %p449, %s450, %s451
      %p455 = pneg %p449
      %p456 = scmp.eq.s32.totalorder %s32, 3
      %p457 = por %p455, %p456
      %p458 = scmp.ne.s32.totalorder %s450, %s453
      %p459 = scmp.eq.s32.totalorder %s32, 0
      %p460 = por %p458, %p459
      %p461 = scmp.ne.s32.totalorder %s450, %s453
      %p462 = scmp.eq.s32.totalorder %s37, 3
      %p463 = por %p461, %p462
      %p464 = scmp.ne.s32.totalorder %s453, %s454
      %p465 = scmp.eq.s32.totalorder %s37, 0
      %p466 = por %p464, %p465
      %p467 = scmp.ne.s32.totalorder %s453, %s454
      %p468 = scmp.eq.s32.totalorder %s38, 3
      %p469 = por %p467, %p468
      %p471 = scmp.ne.s32.totalorder %s454, %s470
      %p472 = scmp.eq.s32.totalorder %s38, 0
      %p473 = por %p471, %p472
      %s475 = sadd.s32 %s474, 1
      %p478 = scmp.eq.s32.totalorder %s32, 3
      %p479 = scmp.ne.s32.totalorder %s474, %s476
      %p480 = scmp.eq.s32.totalorder %s32, 0
      %p481 = por %p479, %p480
      %p482 = scmp.ne.s32.totalorder %s474, %s476
      %p483 = scmp.eq.s32.totalorder %s37, 3
      %p484 = por %p482, %p483
      %p485 = scmp.ne.s32.totalorder %s476, %s477
      %p486 = scmp.eq.s32.totalorder %s37, 0
      %p487 = por %p485, %p486
      %p488 = scmp.ne.s32.totalorder %s476, %s477
      %p489 = scmp.eq.s32.totalorder %s38, 3
      %p490 = por %p488, %p489
      %p492 = scmp.ne.s32.totalorder %s477, %s491
      %p493 = scmp.eq.s32.totalorder %s38, 0
      %p494 = por %p492, %p493
      %s496 = sadd.s32 %s495, 1
      %p499 = scmp.eq.s32.totalorder %s32, 3
      %p500 = scmp.ne.s32.totalorder %s495, %s497
      %p501 = scmp.eq.s32.totalorder %s32, 0
      %p502 = por %p500, %p501
      %p503 = scmp.ne.s32.totalorder %s495, %s497
      %p504 = scmp.eq.s32.totalorder %s37, 3
      %p505 = por %p503, %p504
      %p506 = scmp.ne.s32.totalorder %s497, %s498
      %p507 = scmp.eq.s32.totalorder %s37, 0
      %p508 = por %p506, %p507
      %p509 = scmp.ne.s32.totalorder %s497, %s498
      %p510 = scmp.eq.s32.totalorder %s38, 3
      %p511 = por %p509, %p510
      %p513 = scmp.ne.s32.totalorder %s498, %s512
      %p514 = scmp.eq.s32.totalorder %s38, 0
      %p515 = por %p513, %p514
      %s517 = sadd.s32 %s516, 1
      %p520 = scmp.eq.s32.totalorder %s32, 3
      %p521 = scmp.ne.s32.totalorder %s516, %s518
      %p522 = scmp.eq.s32.totalorder %s32, 0
      %p523 = por %p521, %p522
      %p524 = scmp.ne.s32.totalorder %s516, %s518
      %p525 = scmp.eq.s32.totalorder %s37, 3
      %p526 = por %p524, %p525
      %p527 = scmp.ne.s32.totalorder %s518, %s519
      %p528 = scmp.eq.s32.totalorder %s37, 0
      %p529 = por %p527, %p528
      %p530 = scmp.ne.s32.totalorder %s518, %s519
      %p531 = scmp.eq.s32.totalorder %s38, 3
      %p532 = por %p530, %p531
      %p534 = scmp.ne.s32.totalorder %s519, %s533
      %p535 = scmp.eq.s32.totalorder %s38, 0
      %p536 = por %p534, %p535
      %s538 = sadd.s32 %s537, 1
      %p541 = scmp.eq.s32.totalorder %s32, 3
      %p542 = scmp.ne.s32.totalorder %s537, %s539
      %p543 = scmp.eq.s32.totalorder %s32, 0
      %p544 = por %p542, %p543
      %p545 = scmp.ne.s32.totalorder %s537, %s539
      %p546 = scmp.eq.s32.totalorder %s37, 3
      %p547 = por %p545, %p546
      %p548 = scmp.ne.s32.totalorder %s539, %s540
      %p549 = scmp.eq.s32.totalorder %s37, 0
      %p550 = por %p548, %p549
      %p551 = scmp.ne.s32.totalorder %s539, %s540
      %p552 = scmp.eq.s32.totalorder %s38, 3
      %p553 = por %p551, %p552
      %p555 = scmp.ne.s32.totalorder %s540, %s554
      %p556 = scmp.eq.s32.totalorder %s38, 0
      %p557 = por %p555, %p556
      %s558 = ssub.s32 %s40, %s47
      %s559 = ssub.s32 %s39, %s51
      %s560 = sor.u32 %s558, %s559
      %p561 = scmp.eq.s32.totalorder %s560, 0
      %s563 = sadd.s32 %s562, 1
      %s564 = scalar_select %p561, %s562, %s563
      %p567 = pneg %p561
      %p568 = scmp.eq.s32.totalorder %s32, 3
      %p569 = por %p567, %p568
      %p570 = scmp.ne.s32.totalorder %s562, %s565
      %p571 = scmp.eq.s32.totalorder %s32, 0
      %p572 = por %p570, %p571
      %p573 = scmp.ne.s32.totalorder %s562, %s565
      %p574 = scmp.eq.s32.totalorder %s37, 3
      %p575 = por %p573, %p574
      %p576 = scmp.ne.s32.totalorder %s565, %s566
      %p577 = scmp.eq.s32.totalorder %s37, 0
      %p578 = por %p576, %p577
      %p579 = scmp.ne.s32.totalorder %s565, %s566
      %p580 = scmp.eq.s32.totalorder %s38, 3
      %p581 = por %p579, %p580
      %p583 = scmp.ne.s32.totalorder %s566, %s582
      %p584 = scmp.eq.s32.totalorder %s38, 0
      %p585 = por %p583, %p584
      %s586 = ssub.s32 %s39, %s51
      %p587 = scmp.eq.s32.totalorder %s586, 0
      %s589 = sadd.s32 %s588, 1
      %s590 = scalar_select %p587, %s588, %s589
      %p593 = pneg %p587
      %p594 = scmp.eq.s32.totalorder %s32, 3
      %p595 = por %p593, %p594
      %p596 = scmp.ne.s32.totalorder %s588, %s591
      %p597 = scmp.eq.s32.totalorder %s32, 0
      %p598 = por %p596, %p597
      %p599 = scmp.ne.s32.totalorder %s588, %s591
      %p600 = scmp.eq.s32.totalorder %s37, 3
      %p601 = por %p599, %p600
      %p602 = scmp.ne.s32.totalorder %s591, %s592
      %p603 = scmp.eq.s32.totalorder %s37, 0
      %p604 = por %p602, %p603
      %p605 = scmp.ne.s32.totalorder %s591, %s592
      %p606 = scmp.eq.s32.totalorder %s38, 3
      %p607 = por %p605, %p606
      %p609 = scmp.ne.s32.totalorder %s592, %s608
      %p610 = scmp.eq.s32.totalorder %s38, 0
      %p611 = por %p609, %p610
      %p612 = scmp.le.s32.totalorder 1, %s32
      %p613 = scmp.lt.s32.totalorder %s32, 5
      %p614 = pnand %p612, %p613
      %p615 = pneg %p614
      // Predicated region
      $region9: #{tpu_custom_call.1} parent=5 // pred_check
        _
      $region10: #{tpu_custom_call.1} parent=5 // pred_check_branch
        %617 = sbr.rel (%p614) target = $region12
      $region11: #{tpu_custom_call.1} parent=5 // pred_region
        %s618 = ssub.s32 %s32, 1
        // Predicated region
        $region13: #{tpu_custom_call.1} parent=11 // pred_check
          %p619 = pneg %p91
        $region14: #{tpu_custom_call.1} parent=11 // pred_check_branch
          %621 = sbr.rel (%p619) target = $region16
        $region15: #{tpu_custom_call.1} parent=11 // pred_region
          _
        $region16: #{tpu_custom_call.1} parent=11 // pred_fallthru
          _
        // Predicated region
        $region17: #{tpu_custom_call.1} parent=11 // pred_check
          %p622 = pneg %p112
        $region18: #{tpu_custom_call.1} parent=11 // pred_check_branch
          %624 = sbr.rel (%p622) target = $region20
        $region19: #{tpu_custom_call.1} parent=11 // pred_region
          _
        $region20: #{tpu_custom_call.1} parent=11 // pred_fallthru
          _
        // Predicated region
        $region21: #{tpu_custom_call.1} parent=11 // pred_check
          %p625 = pneg %p133
        $region22: #{tpu_custom_call.1} parent=11 // pred_check_branch
          %627 = sbr.rel (%p625) target = $region24
        $region23: #{tpu_custom_call.1} parent=11 // pred_region
          _
        $region24: #{tpu_custom_call.1} parent=11 // pred_fallthru
          _
        // Predicated region
        $region25: #{tpu_custom_call.1} parent=11 // pred_check
          %p628 = pneg %p154
        $region26: #{tpu_custom_call.1} parent=11 // pred_check_branch
          %630 = sbr.rel (%p628) target = $region28
        $region27: #{tpu_custom_call.1} parent=11 // pred_region
          _
        $region28: #{tpu_custom_call.1} parent=11 // pred_fallthru
          _
        // Predicated region
        $region29: #{tpu_custom_call.1} parent=11 // pred_check
          %p631 = pneg %p487
        $region30: #{tpu_custom_call.1} parent=11 // pred_check_branch
          %633 = sbr.rel (%p631) target = $region32
        $region31: #{tpu_custom_call.1} parent=11 // pred_region
          _
        $region32: #{tpu_custom_call.1} parent=11 // pred_fallthru
          _
        // Predicated region
        $region33: #{tpu_custom_call.1} parent=11 // pred_check
          %p634 = pneg %p508
        $region34: #{tpu_custom_call.1} parent=11 // pred_check_branch
          %636 = sbr.rel (%p634) target = $region36
        $region35: #{tpu_custom_call.1} parent=11 // pred_region
          _
        $region36: #{tpu_custom_call.1} parent=11 // pred_fallthru
          _
        // Predicated region
        $region37: #{tpu_custom_call.1} parent=11 // pred_check
          %p637 = pneg %p529
        $region38: #{tpu_custom_call.1} parent=11 // pred_check_branch
          %639 = sbr.rel (%p637) target = $region40
        $region39: #{tpu_custom_call.1} parent=11 // pred_region
          _
        $region40: #{tpu_custom_call.1} parent=11 // pred_fallthru
          _
        // Predicated region
        $region41: #{tpu_custom_call.1} parent=11 // pred_check
          %p640 = pneg %p550
        $region42: #{tpu_custom_call.1} parent=11 // pred_check_branch
          %642 = sbr.rel (%p640) target = $region44
        $region43: #{tpu_custom_call.1} parent=11 // pred_region
          _
        $region44: #{tpu_custom_call.1} parent=11 // pred_fallthru
          _
      $region12: #{tpu_custom_call.1} parent=5 // pred_fallthru
        _
      %p643 = scmp.lt.s32.totalorder %s32, 4
      // Predicated region
      $region45: #{tpu_custom_call.1} parent=5 // pred_check
        %p644 = pneg %p643
      $region46: #{tpu_custom_call.1} parent=5 // pred_check_branch
        %646 = sbr.rel (%p644) target = $region48
      $region47: #{tpu_custom_call.1} parent=5 // pred_region
        // Predicated region
        $region49: #{tpu_custom_call.1} parent=47 // pred_check
          %p647 = pneg %p64
        $region50: #{tpu_custom_call.1} parent=47 // pred_check_branch
          %649 = sbr.rel (%p647) target = $region52
        $region51: #{tpu_custom_call.1} parent=47 // pred_region
          %p650 = scmp.lt.s32.totalorder %s39, 1
          %s651 = scalar_select %p650, %s39, 1
          %s652 = smul.addr %s651, 2
          %s653 = scalar_lea.vmem %s0, %s652
        $region52: #{tpu_custom_call.1} parent=47 // pred_fallthru
          _
        // Predicated region
        $region53: #{tpu_custom_call.1} parent=47 // pred_check
          %p654 = pneg %p174
        $region54: #{tpu_custom_call.1} parent=47 // pred_check_branch
          %656 = sbr.rel (%p654) target = $region56
        $region55: #{tpu_custom_call.1} parent=47 // pred_region
          %p657 = scmp.lt.s32.totalorder %s40, 1
          %s658 = scalar_select %p657, %s40, 1
          %s659 = scalar_lea.vmem %s5, %s658
        $region56: #{tpu_custom_call.1} parent=47 // pred_fallthru
          _
        // Predicated region
        $region57: #{tpu_custom_call.1} parent=47 // pred_check
          %p660 = pneg %p200
        $region58: #{tpu_custom_call.1} parent=47 // pred_check_branch
          %662 = sbr.rel (%p660) target = $region60
        $region59: #{tpu_custom_call.1} parent=47 // pred_region
          %p663 = scmp.lt.s32.totalorder %s40, 1
          %s664 = scalar_select %p663, %s40, 1
          %s665 = scalar_lea.vmem %s6, %s664
        $region60: #{tpu_custom_call.1} parent=47 // pred_fallthru
          _
        // Predicated region
        $region61: #{tpu_custom_call.1} parent=47 // pred_check
          %p666 = pneg %p226
        $region62: #{tpu_custom_call.1} parent=47 // pred_check_branch
          %668 = sbr.rel (%p666) target = $region64
        $region63: #{tpu_custom_call.1} parent=47 // pred_region
          %p669 = scmp.lt.s32.totalorder %s40, 1
          %s670 = scalar_select %p669, %s40, 1
          %s671 = smul.addr %s670, 4
          %s672 = smul.addr %s671, 4
          %s673 = scalar_lea.vmem %s7, %s672
        $region64: #{tpu_custom_call.1} parent=47 // pred_fallthru
          _
        // Predicated region
        $region65: #{tpu_custom_call.1} parent=47 // pred_check
          %p674 = pneg %p252
        $region66: #{tpu_custom_call.1} parent=47 // pred_check_branch
          %676 = sbr.rel (%p674) target = $region68
        $region67: #{tpu_custom_call.1} parent=47 // pred_region
          %p677 = scmp.lt.s32.totalorder %s40, 1
          %s678 = scalar_select %p677, %s40, 1
          %s679 = scalar_lea.vmem %s8, %s678
        $region68: #{tpu_custom_call.1} parent=47 // pred_fallthru
          _
        // Predicated region
        $region69: #{tpu_custom_call.1} parent=47 // pred_check
          %p680 = pneg %p278
        $region70: #{tpu_custom_call.1} parent=47 // pred_check_branch
          %682 = sbr.rel (%p680) target = $region72
        $region71: #{tpu_custom_call.1} parent=47 // pred_region
          %p683 = scmp.lt.s32.totalorder %s40, 1
          %s684 = scalar_select %p683, %s40, 1
          %s685 = smul.addr %s684, 4
          %s686 = smul.addr %s685, 4
          %s687 = scalar_lea.vmem %s9, %s686
        $region72: #{tpu_custom_call.1} parent=47 // pred_fallthru
          _
        // Predicated region
        $region73: #{tpu_custom_call.1} parent=47 // pred_check
          %p688 = pneg %p304
        $region74: #{tpu_custom_call.1} parent=47 // pred_check_branch
          %690 = sbr.rel (%p688) target = $region76
        $region75: #{tpu_custom_call.1} parent=47 // pred_region
          %p691 = scmp.lt.s32.totalorder %s40, 1
          %s692 = scalar_select %p691, %s40, 1
          %s693 = scalar_lea.vmem %s10, %s692
        $region76: #{tpu_custom_call.1} parent=47 // pred_fallthru
          _
        // Predicated region
        $region77: #{tpu_custom_call.1} parent=47 // pred_check
          %p694 = pneg %p330
        $region78: #{tpu_custom_call.1} parent=47 // pred_check_branch
          %696 = sbr.rel (%p694) target = $region80
        $region79: #{tpu_custom_call.1} parent=47 // pred_region
          %p697 = scmp.lt.s32.totalorder %s40, 1
          %s698 = scalar_select %p697, %s40, 1
          %s699 = scalar_lea.vmem %s11, %s698
        $region80: #{tpu_custom_call.1} parent=47 // pred_fallthru
          _
        // Predicated region
        $region81: #{tpu_custom_call.1} parent=47 // pred_check
          %p700 = pneg %p356
        $region82: #{tpu_custom_call.1} parent=47 // pred_check_branch
          %702 = sbr.rel (%p700) target = $region84
        $region83: #{tpu_custom_call.1} parent=47 // pred_region
          %p703 = scmp.lt.s32.totalorder %s40, 1
          %s704 = scalar_select %p703, %s40, 1
          %s705 = scalar_lea.vmem %s12, %s704
        $region84: #{tpu_custom_call.1} parent=47 // pred_fallthru
          _
        // Predicated region
        $region85: #{tpu_custom_call.1} parent=47 // pred_check
          %p706 = pneg %p382
        $region86: #{tpu_custom_call.1} parent=47 // pred_check_branch
          %708 = sbr.rel (%p706) target = $region88
        $region87: #{tpu_custom_call.1} parent=47 // pred_region
          %p709 = scmp.lt.s32.totalorder %s40, 1
          %s710 = scalar_select %p709, %s40, 1
          %s711 = smul.addr %s710, 4
          %s712 = smul.addr %s711, 4
          %s713 = scalar_lea.vmem %s13, %s712
        $region88: #{tpu_custom_call.1} parent=47 // pred_fallthru
          _
        // Predicated region
        $region89: #{tpu_custom_call.1} parent=47 // pred_check
          %p714 = pneg %p408
        $region90: #{tpu_custom_call.1} parent=47 // pred_check_branch
          %716 = sbr.rel (%p714) target = $region92
        $region91: #{tpu_custom_call.1} parent=47 // pred_region
          %p717 = scmp.lt.s32.totalorder %s40, 1
          %s718 = scalar_select %p717, %s40, 1
          %s719 = scalar_lea.vmem %s14, %s718
        $region92: #{tpu_custom_call.1} parent=47 // pred_fallthru
          _
        // Predicated region
        $region93: #{tpu_custom_call.1} parent=47 // pred_check
          %p720 = pneg %p434
        $region94: #{tpu_custom_call.1} parent=47 // pred_check_branch
          %722 = sbr.rel (%p720) target = $region96
        $region95: #{tpu_custom_call.1} parent=47 // pred_region
          %p723 = scmp.lt.s32.totalorder %s40, 1
          %s724 = scalar_select %p723, %s40, 1
          %s725 = smul.addr %s724, 16
          %s726 = smul.addr %s725, 4
          %s727 = scalar_lea.vmem %s15, %s726
        $region96: #{tpu_custom_call.1} parent=47 // pred_fallthru
          _
        // Predicated region
        $region97: #{tpu_custom_call.1} parent=47 // pred_check
          %p728 = pneg %p460
        $region98: #{tpu_custom_call.1} parent=47 // pred_check_branch
          %730 = sbr.rel (%p728) target = $region100
        $region99: #{tpu_custom_call.1} parent=47 // pred_region
          %p731 = scmp.lt.s32.totalorder %s40, 1
          %s732 = scalar_select %p731, %s40, 1
          %s733 = scalar_lea.vmem %s16, %s732
        $region100: #{tpu_custom_call.1} parent=47 // pred_fallthru
          _
      $region48: #{tpu_custom_call.1} parent=5 // pred_fallthru
        _
      %p734 = scmp.le.s32.totalorder 1, %s32
      %p735 = scmp.lt.s32.totalorder %s32, 5
      %p736 = pnand %p734, %p735
      %p737 = pneg %p736
      // Predicated region
      $region101: #{tpu_custom_call.1} parent=5 // pred_check
        _
      $region102: #{tpu_custom_call.1} parent=5 // pred_check_branch
        %739 = sbr.rel (%p736) target = $region104
      $region103: #{tpu_custom_call.1} parent=5 // pred_region
        %s740 = ssub.s32 %s32, 1
        %p741 = scmp.lt.s32.totalorder %s41, 1
        %s742 = scalar_select %p741, %s41, 1
        %s743 = smul.addr %s742, 2
        %s744 = scalar_lea.vmem %s0, %s743
        %p745 = pneg %p70
        %p746 = pneg %p67
        %p747 = pneg %p91
        %p748 = pneg %p88
        %p749 = pneg %p112
        %p750 = pneg %p109
        %p751 = pneg %p133
        %p752 = pneg %p130
        %p753 = pneg %p154
        %p754 = pneg %p151
        %p755 = scmp.lt.s32.totalorder %s42, 1
        %s756 = scalar_select %p755, %s42, 1
        %s757 = scalar_lea.vmem %s5, %s756
        %p758 = pneg %p180
        %p759 = pneg %p177
        %p760 = scmp.lt.s32.totalorder %s42, 1
        %s761 = scalar_select %p760, %s42, 1
        %s762 = scalar_lea.vmem %s6, %s761
        %p763 = pneg %p206
        %p764 = pneg %p203
        %p765 = scmp.lt.s32.totalorder %s42, 1
        %s766 = scalar_select %p765, %s42, 1
        %s767 = smul.addr %s766, 4
        %s768 = smul.addr %s767, 4
        %s769 = scalar_lea.vmem %s7, %s768
        %p770 = pneg %p232
        %p771 = pneg %p229
        %p772 = scmp.lt.s32.totalorder %s42, 1
        %s773 = scalar_select %p772, %s42, 1
        %s774 = scalar_lea.vmem %s8, %s773
        %p775 = pneg %p258
        %p776 = pneg %p255
        %p777 = scmp.lt.s32.totalorder %s42, 1
        %s778 = scalar_select %p777, %s42, 1
        %s779 = smul.addr %s778, 4
        %s780 = smul.addr %s779, 4
        %s781 = scalar_lea.vmem %s9, %s780
        %p782 = pneg %p284
        %p783 = pneg %p281
        %p784 = scmp.lt.s32.totalorder %s42, 1
        %s785 = scalar_select %p784, %s42, 1
        %s786 = scalar_lea.vmem %s10, %s785
        %p787 = pneg %p310
        %p788 = pneg %p307
        %p789 = scmp.lt.s32.totalorder %s42, 1
        %s790 = scalar_select %p789, %s42, 1
        %s791 = scalar_lea.vmem %s11, %s790
        %p792 = pneg %p336
        %p793 = pneg %p333
        %p794 = scmp.lt.s32.totalorder %s42, 1
        %s795 = scalar_select %p794, %s42, 1
        %s796 = scalar_lea.vmem %s12, %s795
        %p797 = pneg %p362
        %p798 = pneg %p359
        %p799 = scmp.lt.s32.totalorder %s42, 1
        %s800 = scalar_select %p799, %s42, 1
        %s801 = smul.addr %s800, 4
        %s802 = smul.addr %s801, 4
        %s803 = scalar_lea.vmem %s13, %s802
        %p804 = pneg %p388
        %p805 = pneg %p385
        %p806 = scmp.lt.s32.totalorder %s42, 1
        %s807 = scalar_select %p806, %s42, 1
        %s808 = scalar_lea.vmem %s14, %s807
        %p809 = pneg %p414
        %p810 = pneg %p411
        %p811 = scmp.lt.s32.totalorder %s42, 1
        %s812 = scalar_select %p811, %s42, 1
        %s813 = smul.addr %s812, 16
        %s814 = smul.addr %s813, 4
        %s815 = scalar_lea.vmem %s15, %s814
        %p816 = pneg %p440
        %p817 = pneg %p437
        %p818 = scmp.lt.s32.totalorder %s42, 1
        %s819 = scalar_select %p818, %s42, 1
        %s820 = scalar_lea.vmem %s16, %s819
        %p821 = pneg %p466
        %p822 = pneg %p463
        %p823 = pneg %p487
        %p824 = pneg %p484
        %p825 = pneg %p508
        %p826 = pneg %p505
        %p827 = pneg %p529
        %p828 = pneg %p526
        %p829 = pneg %p550
        %p830 = pneg %p547
        %p831 = pneg %p578
        %p832 = pneg %p575
        %s833 = sand.u32 %s565, 1
        %s834 = sand.u32 %s565, 1
        %s835 = smul.addr %s834, 32
        %s836 = scalar_lea.vmem [#allocation3], %s835
        %p837 = pneg %p604
        %p838 = pneg %p601
        %s839 = sand.u32 %s591, 1
        %s840 = scalar_lea.sflag [#allocation5], %s839
        %s841 = sand.u32 %s591, 1
        %s842 = scalar_lea.vmem [#allocation4], %s841
        %p843 = scmp.lt.s32.totalorder %s41, 1
        %s844 = scalar_select %p843, %s41, 1
        %s845 = smul.addr %s844, 2
        %s846 = scalar_lea.vmem %s0, %s845
        %p847 = scmp.lt.s32.totalorder %s42, 1
        %s848 = scalar_select %p847, %s42, 1
        %s849 = scalar_lea.vmem %s5, %s848
        %p850 = scmp.lt.s32.totalorder %s42, 1
        %s851 = scalar_select %p850, %s42, 1
        %s852 = scalar_lea.vmem %s6, %s851
        %p853 = scmp.lt.s32.totalorder %s42, 1
        %s854 = scalar_select %p853, %s42, 1
        %s855 = smul.addr %s854, 4
        %s856 = smul.addr %s855, 4
        %s857 = scalar_lea.vmem %s7, %s856
        %p858 = scmp.lt.s32.totalorder %s42, 1
        %s859 = scalar_select %p858, %s42, 1
        %s860 = scalar_lea.vmem %s8, %s859
        %p861 = scmp.lt.s32.totalorder %s42, 1
        %s862 = scalar_select %p861, %s42, 1
        %s863 = smul.addr %s862, 4
        %s864 = smul.addr %s863, 4
        %s865 = scalar_lea.vmem %s9, %s864
        %p866 = scmp.lt.s32.totalorder %s42, 1
        %s867 = scalar_select %p866, %s42, 1
        %s868 = scalar_lea.vmem %s10, %s867
        %p869 = scmp.lt.s32.totalorder %s42, 1
        %s870 = scalar_select %p869, %s42, 1
        %s871 = scalar_lea.vmem %s11, %s870
        %p872 = scmp.lt.s32.totalorder %s42, 1
        %s873 = scalar_select %p872, %s42, 1
        %s874 = scalar_lea.vmem %s12, %s873
        %p875 = scmp.lt.s32.totalorder %s42, 1
        %s876 = scalar_select %p875, %s42, 1
        %s877 = smul.addr %s876, 4
        %s878 = smul.addr %s877, 4
        %s879 = scalar_lea.vmem %s13, %s878
        %p880 = scmp.lt.s32.totalorder %s42, 1
        %s881 = scalar_select %p880, %s42, 1
        %s882 = scalar_lea.vmem %s14, %s881
        %p883 = scmp.lt.s32.totalorder %s42, 1
        %s884 = scalar_select %p883, %s42, 1
        %s885 = smul.addr %s884, 16
        %s886 = smul.addr %s885, 4
        %s887 = scalar_lea.vmem %s15, %s886
        %p888 = scmp.lt.s32.totalorder %s42, 1
        %s889 = scalar_select %p888, %s42, 1
        %s890 = scalar_lea.vmem %s16, %s889
        %s891 = smul.u32 4, %s42
        %p893 = scmp.eq.s32.totalorder %s42, 0
        // Predicated region
        $region105: #{tpu_custom_call.1} parent=103 // pred_check
          %p894 = pneg %p893
        $region106: #{tpu_custom_call.1} parent=103 // pred_check_branch
          %896 = sbr.rel (%p894) target = $region108
        $region107: #{tpu_custom_call.1} parent=103 // pred_region
          %v897 = vld [vmem:[%s846] sm:$0x3]
          %v898 = vld [vmem:[%s1] sm:$0xf]
          %v899 = vld [vmem:[%s1 + $0x4] sm:$0xf]
          %v900 = vld [vmem:[%s2] sm:$0x1]
          %v902 = vperm.slane %v900, 0
          %v906 = vunpack.c.l.b16 %v898
          %v907 = vunpack.c.l.b16 %v899
          %v908 = vpack.c.b16 %v907, %v906
          %vm910 = vcmask 130048
          %v912 = vsel %vm910, %v897, 0
          %914 = vmatpush.bf16.msra.mxu0 0
          %915 = vmatpush.bf16.msra.mxu0 0
          %916 = vmatpush.bf16.msra.mxu0 0
          %917 = vmatpush.bf16.msra.mxu0 0
          %918 = vmatpush.bf16.msra.mxu0 0
          %919 = vmatpush.bf16.msra.mxu0 0
          %920 = vmatpush.bf16.msra.mxu0 0
          %921 = vmatpush.bf16.msra.mxu0 %v908
          %922 = vmatmul.bf16.gmra.mxu0 %v912
          %v923 = vpop.f32.mrf.mxu0
          %v924 = vadd.f32 %v902, %v923
          %v925 = vpop.f32.mrf.mxu0
          %926 = vdwg.mxu0
          %v927 = vld [vmem:[%s4 + $0x1] sm:$0xf]
          %v928 = vadd.f32 %v924, %v927
          %v929 = vld [vmem:[%s3] sm:$0x1]
          %v930 = vld [vmem:[%s4] sm:$0x1]
          %v931 = vadd.f32 %v929, %v930
          %vm932 = vcmask 253952
          %933 = vst.msk [vmem:[#allocation2] sm:$0x1] %vm932, %v931
          %vm934 = vcmask 257024
          %935 = vst.msk [vmem:[#allocation2 + $0x1] sm:$0xf] %vm934, %v928
        $region108: #{tpu_custom_call.1} parent=103 // pred_fallthru
          _
        %v936 = vld [vmem:[#allocation2] sm:$0x1f]
        %v937 = vld [vmem:[%s849] sm:$0x1]
        %v938 = vld [vmem:[%s852] sm:$0x1]
        %vm939 = vcmask 258048
        %v940 = vsel %vm939, %v936, 0.0
        %941 = vadd.xlane.f32.xlu0 %v940
        %v942 = vpop.xlane.xlu0 %941
        %v943 = vrcp.pop 32.0
        %v944 = vmul.f32 32.0, %v943
        %v945 = vsub.f32 1.0, %v944
        %v946 = vmul.f32 %v943, %v945
        %v947 = vadd.f32 %v943, %v946
        %vm948 = vweird.f32 %v943
        %v949 = vsel %vm948, %v943, %v947
        %v950 = vmul.f32 %v942, %v949
        %v951 = vsub.f32 %v936, %v950
        %v952 = vmul.f32 %v951, %v951
        %v953 = vsel %vm939, %v952, 0.0
        %954 = vadd.xlane.f32.xlu0 %v953
        %v955 = vpop.xlane.xlu0 %954
        %v956 = vmul.f32 %v955, %v949
        %v957 = vadd.f32 %v956, 1e-05
        %v958 = vrsqrt.pop %v957
        %v959 = vmul.f32 %v958, %v957
        %v960 = vmul.f32 %v959, %v958
        %v961 = vmul.f32 0.5, %v960
        %v962 = vsub.f32 1.5, %v961
        %v963 = vmul.f32 %v958, %v962
        %vm964 = vweird.f32 %v957
        %vm965 = vweird.f32 %v958
        %vm966 = vmor %vm964, %vm965
        %v967 = vsel %vm966, %v958, %v963
        %v968 = vmul.f32 %v951, %v967
        %v970 = vperm.slane %v937, 0
        %v972 = vmul.f32 %v968, %v970
        %v974 = vperm.slane %v938, 0
        %v976 = vadd.f32 %v972, %v974
        %v977 = vpack.c.bf16 %v976, %v976
        %v978 = vld [vmem:[%s857] sm:$0xf]
        %v979 = vld [vmem:[%s857 + $0x4] sm:$0xf]
        %v980 = vld [vmem:[%s857 + $0x8] sm:$0xf]
        %v981 = vld [vmem:[%s857 + $0xc] sm:$0xf]
        %v982 = vld [vmem:[%s860] sm:$0x1]
        %v984 = vperm.slane %v982, 0
        %v990 = vunpack.c.l.b16 %v978
        %v991 = vunpack.c.l.b16 %v979
        %v992 = vunpack.c.l.b16 %v980
        %v993 = vunpack.c.l.b16 %v981
        %v994 = vpack.c.b16 %v991, %v990
        %v995 = vpack.c.b16 %v993, %v992
        %vm998 = vcmask 261120
        %v1000 = vsel %vm998, %v977, 0
        %1002 = vmatpush.bf16.msra.mxu0 0
        %1003 = vmatpush.bf16.msra.mxu0 0
        %1004 = vmatpush.bf16.msra.mxu0 0
        %1005 = vmatpush.bf16.msra.mxu0 0
        %1006 = vmatpush.bf16.msra.mxu0 0
        %1007 = vmatpush.bf16.msra.mxu0 0
        %1008 = vmatpush.bf16.msra.mxu0 %v995
        %1009 = vmatpush.bf16.msra.mxu0 %v994
        %1010 = vmatmul.bf16.gmra.mxu0 %v1000
        %v1011 = vpop.f32.mrf.mxu0
        %v1012 = vadd.f32 %v984, %v1011
        %v1013 = vpop.f32.mrf.mxu0
        %1014 = vdwg.mxu0
        %v1015 = vmul.f32 %v1012, 0.35355338
        %v1016 = vpack.c.bf16 %v1015, %v1015
        %v1017 = vpack.c.bf16 %v1012, %v1012
        %v1019 = vunpack.c.l.b16 %v1017
        %v1020 = vpack.c.b16 %v1019, %v1019
        %1021 = vrot.lane.b32.xlu0 %v1020, 96
        %v1022 = vpop.permute.xlu0 %1021
        %vm1023 = vcmask 64512
        %v1025 = vsel %vm1023, %v1016, 0
        %v1028 = vsel %vm1023, %v1022, 0
        %1030 = vmatpush.bf16.xpose.msra.mxu0 0
        %1031 = vmatpush.bf16.xpose.msra.mxu0 0
        %1032 = vmatpush.bf16.xpose.msra.mxu0 0
        %1033 = vmatpush.bf16.xpose.msra.mxu0 0
        %1034 = vmatpush.bf16.xpose.msra.mxu0 0
        %1035 = vmatpush.bf16.xpose.msra.mxu0 0
        %1036 = vmatpush.bf16.xpose.msra.mxu0 0
        %1037 = vmatpush.bf16.xpose.msra.mxu0 %v1028
        %1038 = vmatmul.bf16.gmra.mxu0 %v1025
        %v1039 = vpop.f32.mrf.mxu0
        %v1040 = vadd.f32 0.0, %v1039
        %v1041 = vpop.f32.mrf.mxu0
        %1042 = vdwg.mxu0
        %vm1043 = vcmask 36864
        %v1044 = vsel %vm1043, %v1040, -inf
        %1045 = vmax.xlane.f32.xlu0 %v1044
        %v1046 = vpop.xlane.xlu0 %1045
        %v1047 = vsub.f32 %v1040, %v1046
        %v1048 = vmul.f32 %v1047, 1.442695
        %v1049 = vpow.pop %v1048
        %v1050 = vsel %vm1043, %v1049, 0.0
        %1051 = vadd.xlane.f32.xlu0 %v1050
        %v1052 = vpop.xlane.xlu0 %1051
        %v1053 = vrcp.pop %v1052
        %v1054 = vmul.f32 %v1052, %v1053
        %v1055 = vsub.f32 1.0, %v1054
        %v1056 = vmul.f32 %v1053, %v1055
        %v1057 = vadd.f32 %v1053, %v1056
        %vm1058 = vweird.f32 %v1052
        %vm1059 = vweird.f32 %v1053
        %vm1060 = vmor %vm1058, %vm1059
        %v1061 = vsel %vm1060, %v1053, %v1057
        %v1062 = vand.u32 2147483647, %v1052
        %vm1063 = vcmp.eq.f32.partialorder %v1062, 8.507059e+37
        %v1064 = vand.u32 %v1052, 2147483648
        %v1065 = vor.u32 1.1754944e-38, %v1064
        %v1066 = vsel %vm1063, %v1065, %v1061
        %v1067 = vmul.f32 %v1049, %v1066
        %vm1068 = vcmask 39936
        %v1069 = vsel %vm1068, %v1067, 0.0
        %1070 = vst [vmem:[%s836] sm:$0x1f] %v1069
        %v1071 = vpack.c.bf16 %v1067, %v1067
        %1072 = vrot.lane.b32.xlu0 %v1020, 64
        %v1073 = vpop.permute.xlu0 %1072
        %v1075 = vsel %vm1068, %v1071, 0
        %vm1077 = vcmask 1041408
        %vm1078 = vcmask 1042432
        %v1079 = vsel %vm1077, 4294967295, 65535
        %v1080 = vsel %vm1078, %v1079, 0
        %v1082 = vand.u32 %v1073, %v1080
        %1084 = vmatpush.bf16.msra.mxu0 0
        %1085 = vmatpush.bf16.msra.mxu0 0
        %1086 = vmatpush.bf16.msra.mxu0 0
        %1087 = vmatpush.bf16.msra.mxu0 0
        %1088 = vmatpush.bf16.msra.mxu0 0
        %1089 = vmatpush.bf16.msra.mxu0 0
        %1090 = vmatpush.bf16.msra.mxu0 0
        %1091 = vmatpush.bf16.msra.mxu0 %v1082
        %1092 = vmatmul.bf16.gmra.mxu0 %v1075
        %v1093 = vpop.f32.mrf.mxu0
        %v1094 = vadd.f32 0.0, %v1093
        %v1095 = vpop.f32.mrf.mxu0
        %1096 = vdwg.mxu0
        %v1098 = vunpack.c.l.b16 %v1016
        %v1099 = vpack.c.b16 %v1098, %v1098
        %1100 = vrot.lane.b32.xlu0 %v1099, 120
        %v1101 = vpop.permute.xlu0 %1100
        %1102 = vrot.lane.b32.xlu0 %v1020, 88
        %v1103 = vpop.permute.xlu0 %1102
        %v1105 = vsel %vm1023, %v1101, 0
        %v1108 = vsel %vm1023, %v1103, 0
        %1110 = vmatpush.bf16.xpose.msra.mxu0 0
        %1111 = vmatpush.bf16.xpose.msra.mxu0 0
        %1112 = vmatpush.bf16.xpose.msra.mxu0 0
        %1113 = vmatpush.bf16.xpose.msra.mxu0 0
        %1114 = vmatpush.bf16.xpose.msra.mxu0 0
        %1115 = vmatpush.bf16.xpose.msra.mxu0 0
        %1116 = vmatpush.bf16.xpose.msra.mxu0 0
        %1117 = vmatpush.bf16.xpose.msra.mxu0 %v1108
        %1118 = vmatmul.bf16.gmra.mxu0 %v1105
        %v1119 = vpop.f32.mrf.mxu0
        %v1120 = vadd.f32 0.0, %v1119
        %v1121 = vpop.f32.mrf.mxu0
        %1122 = vdwg.mxu0
        %v1123 = vsel %vm1043, %v1120, -inf
        %1124 = vmax.xlane.f32.xlu0 %v1123
        %v1125 = vpop.xlane.xlu0 %1124
        %v1126 = vsub.f32 %v1120, %v1125
        %v1127 = vmul.f32 %v1126, 1.442695
        %v1128 = vpow.pop %v1127
        %v1129 = vsel %vm1043, %v1128, 0.0
        %1130 = vadd.xlane.f32.xlu0 %v1129
        %v1131 = vpop.xlane.xlu0 %1130
        %v1132 = vrcp.pop %v1131
        %v1133 = vmul.f32 %v1131, %v1132
        %v1134 = vsub.f32 1.0, %v1133
        %v1135 = vmul.f32 %v1132, %v1134
        %v1136 = vadd.f32 %v1132, %v1135
        %vm1137 = vweird.f32 %v1131
        %vm1138 = vweird.f32 %v1132
        %vm1139 = vmor %vm1137, %vm1138
        %v1140 = vsel %vm1139, %v1132, %v1136
        %v1141 = vand.u32 2147483647, %v1131
        %vm1142 = vcmp.eq.f32.partialorder %v1141, 8.507059e+37
        %v1143 = vand.u32 %v1131, 2147483648
        %v1144 = vor.u32 1.1754944e-38, %v1143
        %v1145 = vsel %vm1142, %v1144, %v1140
        %v1146 = vmul.f32 %v1128, %v1145
        %v1147 = vsel %vm1068, %v1146, 0.0
        %s1148 = scalar_lea.vmem %s836, 8 [#allocation3]
        %1149 = vst [vmem:[%s1148] sm:$0x1f] %v1147
        %v1150 = vpack.c.bf16 %v1146, %v1146
        %1151 = vrot.lane.b32.xlu0 %v1020, 56
        %v1152 = vpop.permute.xlu0 %1151
        %v1154 = vsel %vm1068, %v1150, 0
        %v1157 = vand.u32 %v1152, %v1080
        %1159 = vmatpush.bf16.msra.mxu0 0
        %1160 = vmatpush.bf16.msra.mxu0 0
        %1161 = vmatpush.bf16.msra.mxu0 0
        %1162 = vmatpush.bf16.msra.mxu0 0
        %1163 = vmatpush.bf16.msra.mxu0 0
        %1164 = vmatpush.bf16.msra.mxu0 0
        %1165 = vmatpush.bf16.msra.mxu0 0
        %1166 = vmatpush.bf16.msra.mxu0 %v1157
        %1167 = vmatmul.bf16.gmra.mxu0 %v1154
        %v1168 = vpop.f32.mrf.mxu0
        %v1169 = vadd.f32 0.0, %v1168
        %v1170 = vpop.f32.mrf.mxu0
        %1171 = vdwg.mxu0
        %1172 = vrot.lane.b32.xlu0 %v1099, 112
        %v1173 = vpop.permute.xlu0 %1172
        %1174 = vrot.lane.b32.xlu0 %v1020, 80
        %v1175 = vpop.permute.xlu0 %1174
        %v1177 = vsel %vm1023, %v1173, 0
        %v1180 = vsel %vm1023, %v1175, 0
        %1182 = vmatpush.bf16.xpose.msra.mxu0 0
        %1183 = vmatpush.bf16.xpose.msra.mxu0 0
        %1184 = vmatpush.bf16.xpose.msra.mxu0 0
        %1185 = vmatpush.bf16.xpose.msra.mxu0 0
        %1186 = vmatpush.bf16.xpose.msra.mxu0 0
        %1187 = vmatpush.bf16.xpose.msra.mxu0 0
        %1188 = vmatpush.bf16.xpose.msra.mxu0 0
        %1189 = vmatpush.bf16.xpose.msra.mxu0 %v1180
        %1190 = vmatmul.bf16.gmra.mxu0 %v1177
        %v1191 = vpop.f32.mrf.mxu0
        %v1192 = vadd.f32 0.0, %v1191
        %v1193 = vpop.f32.mrf.mxu0
        %1194 = vdwg.mxu0
        %v1195 = vsel %vm1043, %v1192, -inf
        %1196 = vmax.xlane.f32.xlu0 %v1195
        %v1197 = vpop.xlane.xlu0 %1196
        %v1198 = vsub.f32 %v1192, %v1197
        %v1199 = vmul.f32 %v1198, 1.442695
        %v1200 = vpow.pop %v1199
        %v1201 = vsel %vm1043, %v1200, 0.0
        %1202 = vadd.xlane.f32.xlu0 %v1201
        %v1203 = vpop.xlane.xlu0 %1202
        %v1204 = vrcp.pop %v1203
        %v1205 = vmul.f32 %v1203, %v1204
        %v1206 = vsub.f32 1.0, %v1205
        %v1207 = vmul.f32 %v1204, %v1206
        %v1208 = vadd.f32 %v1204, %v1207
        %vm1209 = vweird.f32 %v1203
        %vm1210 = vweird.f32 %v1204
        %vm1211 = vmor %vm1209, %vm1210
        %v1212 = vsel %vm1211, %v1204, %v1208
        %v1213 = vand.u32 2147483647, %v1203
        %vm1214 = vcmp.eq.f32.partialorder %v1213, 8.507059e+37
        %v1215 = vand.u32 %v1203, 2147483648
        %v1216 = vor.u32 1.1754944e-38, %v1215
        %v1217 = vsel %vm1214, %v1216, %v1212
        %v1218 = vmul.f32 %v1200, %v1217
        %v1219 = vsel %vm1068, %v1218, 0.0
        %s1220 = scalar_lea.vmem %s836, 16 [#allocation3]
        %1221 = vst [vmem:[%s1220] sm:$0x1f] %v1219
        %v1222 = vpack.c.bf16 %v1218, %v1218
        %1223 = vrot.lane.b32.xlu0 %v1020, 48
        %v1224 = vpop.permute.xlu0 %1223
        %v1226 = vsel %vm1068, %v1222, 0
        %v1229 = vand.u32 %v1224, %v1080
        %1231 = vmatpush.bf16.msra.mxu0 0
        %1232 = vmatpush.bf16.msra.mxu0 0
        %1233 = vmatpush.bf16.msra.mxu0 0
        %1234 = vmatpush.bf16.msra.mxu0 0
        %1235 = vmatpush.bf16.msra.mxu0 0
        %1236 = vmatpush.bf16.msra.mxu0 0
        %1237 = vmatpush.bf16.msra.mxu0 0
        %1238 = vmatpush.bf16.msra.mxu0 %v1229
        %1239 = vmatmul.bf16.gmra.mxu0 %v1226
        %v1240 = vpop.f32.mrf.mxu0
        %v1241 = vadd.f32 0.0, %v1240
        %v1242 = vpop.f32.mrf.mxu0
        %1243 = vdwg.mxu0
        %1244 = vrot.lane.b32.xlu0 %v1099, 104
        %v1245 = vpop.permute.xlu0 %1244
        %1246 = vrot.lane.b32.xlu0 %v1020, 72
        %v1247 = vpop.permute.xlu0 %1246
        %v1249 = vsel %vm1023, %v1245, 0
        %v1252 = vsel %vm1023, %v1247, 0
        %1254 = vmatpush.bf16.xpose.msra.mxu0 0
        %1255 = vmatpush.bf16.xpose.msra.mxu0 0
        %1256 = vmatpush.bf16.xpose.msra.mxu0 0
        %1257 = vmatpush.bf16.xpose.msra.mxu0 0
        %1258 = vmatpush.bf16.xpose.msra.mxu0 0
        %1259 = vmatpush.bf16.xpose.msra.mxu0 0
        %1260 = vmatpush.bf16.xpose.msra.mxu0 0
        %1261 = vmatpush.bf16.xpose.msra.mxu0 %v1252
        %1262 = vmatmul.bf16.gmra.mxu0 %v1249
        %v1263 = vpop.f32.mrf.mxu0
        %v1264 = vadd.f32 0.0, %v1263
        %v1265 = vpop.f32.mrf.mxu0
        %1266 = vdwg.mxu0
        %v1267 = vsel %vm1043, %v1264, -inf
        %1268 = vmax.xlane.f32.xlu0 %v1267
        %v1269 = vpop.xlane.xlu0 %1268
        %v1270 = vsub.f32 %v1264, %v1269
        %v1271 = vmul.f32 %v1270, 1.442695
        %v1272 = vpow.pop %v1271
        %v1273 = vsel %vm1043, %v1272, 0.0
        %1274 = vadd.xlane.f32.xlu0 %v1273
        %v1275 = vpop.xlane.xlu0 %1274
        %v1276 = vrcp.pop %v1275
        %v1277 = vmul.f32 %v1275, %v1276
        %v1278 = vsub.f32 1.0, %v1277
        %v1279 = vmul.f32 %v1276, %v1278
        %v1280 = vadd.f32 %v1276, %v1279
        %vm1281 = vweird.f32 %v1275
        %vm1282 = vweird.f32 %v1276
        %vm1283 = vmor %vm1281, %vm1282
        %v1284 = vsel %vm1283, %v1276, %v1280
        %v1285 = vand.u32 2147483647, %v1275
        %vm1286 = vcmp.eq.f32.partialorder %v1285, 8.507059e+37
        %v1287 = vand.u32 %v1275, 2147483648
        %v1288 = vor.u32 1.1754944e-38, %v1287
        %v1289 = vsel %vm1286, %v1288, %v1284
        %v1290 = vmul.f32 %v1272, %v1289
        %v1291 = vsel %vm1068, %v1290, 0.0
        %s1292 = scalar_lea.vmem %s836, 24 [#allocation3]
        %1293 = vst [vmem:[%s1292] sm:$0x1f] %v1291
        %v1294 = vpack.c.bf16 %v1290, %v1290
        %1295 = vrot.lane.b32.xlu0 %v1020, 40
        %v1296 = vpop.permute.xlu0 %1295
        %v1298 = vsel %vm1068, %v1294, 0
        %v1301 = vand.u32 %v1296, %v1080
        %1303 = vmatpush.bf16.msra.mxu0 0
        %1304 = vmatpush.bf16.msra.mxu0 0
        %1305 = vmatpush.bf16.msra.mxu0 0
        %1306 = vmatpush.bf16.msra.mxu0 0
        %1307 = vmatpush.bf16.msra.mxu0 0
        %1308 = vmatpush.bf16.msra.mxu0 0
        %1309 = vmatpush.bf16.msra.mxu0 0
        %1310 = vmatpush.bf16.msra.mxu0 %v1301
        %1311 = vmatmul.bf16.gmra.mxu0 %v1298
        %v1312 = vpop.f32.mrf.mxu0
        %v1313 = vadd.f32 0.0, %v1312
        %v1314 = vpop.f32.mrf.mxu0
        %1315 = vdwg.mxu0
        %1317 = vrot.lane.b32.xlu0 %v1169, 8
        %v1318 = vpop.permute.xlu0 %1317
        %1321 = vrot.lane.b32.xlu0 %v1241, 16
        %v1322 = vpop.permute.xlu0 %1321
        %1325 = vrot.lane.b32.xlu0 %v1313, 24
        %v1326 = vpop.permute.xlu0 %1325
        %v1328 = vsel %vm1023, %v1094, %v1318
        %vm1329 = vcmask 130048
        %v1330 = vsel %vm1329, %v1328, %v1322
        %vm1331 = vcmask 195584
        %v1332 = vsel %vm1331, %v1330, %v1326
        %v1333 = vpack.c.bf16 %v1332, %v1332
        %v1334 = vld [vmem:[%s865] sm:$0xf]
        %v1335 = vld [vmem:[%s865 + $0x4] sm:$0xf]
        %v1336 = vld [vmem:[%s865 + $0x8] sm:$0xf]
        %v1337 = vld [vmem:[%s865 + $0xc] sm:$0xf]
        %v1338 = vld [vmem:[%s868] sm:$0x1]
        %v1340 = vperm.slane %v1338, 0
        %v1346 = vunpack.c.l.b16 %v1334
        %v1347 = vunpack.c.l.b16 %v1335
        %v1348 = vunpack.c.l.b16 %v1336
        %v1349 = vunpack.c.l.b16 %v1337
        %v1350 = vpack.c.b16 %v1347, %v1346
        %v1351 = vpack.c.b16 %v1349, %v1348
        %v1355 = vsel %vm998, %v1333, 0
        %1357 = vmatpush.bf16.msra.mxu0 0
        %1358 = vmatpush.bf16.msra.mxu0 0
        %1359 = vmatpush.bf16.msra.mxu0 0
        %1360 = vmatpush.bf16.msra.mxu0 0
        %1361 = vmatpush.bf16.msra.mxu0 0
        %1362 = vmatpush.bf16.msra.mxu0 0
        %1363 = vmatpush.bf16.msra.mxu0 %v1351
        %1364 = vmatpush.bf16.msra.mxu0 %v1350
        %1365 = vmatmul.bf16.gmra.mxu0 %v1355
        %v1366 = vpop.f32.mrf.mxu0
        %v1367 = vadd.f32 %v1340, %v1366
        %v1368 = vpop.f32.mrf.mxu0
        %1369 = vdwg.mxu0
        %v1370 = vadd.f32 %v936, %v1367
        %v1371 = vld [vmem:[%s871] sm:$0x1]
        %v1372 = vld [vmem:[%s874] sm:$0x1]
        %v1373 = vsel %vm939, %v1370, 0.0
        %1374 = vadd.xlane.f32.xlu0 %v1373
        %v1375 = vpop.xlane.xlu0 %1374
        %v1376 = vmul.f32 %v1375, %v949
        %v1377 = vsub.f32 %v1370, %v1376
        %v1378 = vmul.f32 %v1377, %v1377
        %v1379 = vsel %vm939, %v1378, 0.0
        %1380 = vadd.xlane.f32.xlu0 %v1379
        %v1381 = vpop.xlane.xlu0 %1380
        %v1382 = vmul.f32 %v1381, %v949
        %v1383 = vadd.f32 %v1382, 1e-05
        %v1384 = vrsqrt.pop %v1383
        %v1385 = vmul.f32 %v1384, %v1383
        %v1386 = vmul.f32 %v1385, %v1384
        %v1387 = vmul.f32 0.5, %v1386
        %v1388 = vsub.f32 1.5, %v1387
        %v1389 = vmul.f32 %v1384, %v1388
        %vm1390 = vweird.f32 %v1383
        %vm1391 = vweird.f32 %v1384
        %vm1392 = vmor %vm1390, %vm1391
        %v1393 = vsel %vm1392, %v1384, %v1389
        %v1394 = vmul.f32 %v1377, %v1393
        %v1396 = vperm.slane %v1371, 0
        %v1398 = vmul.f32 %v1394, %v1396
        %v1400 = vperm.slane %v1372, 0
        %v1402 = vadd.f32 %v1398, %v1400
        %v1403 = vpack.c.bf16 %v1402, %v1402
        %v1404 = vld [vmem:[%s879] sm:$0xf]
        %v1405 = vld [vmem:[%s879 + $0x4] sm:$0xf]
        %v1406 = vld [vmem:[%s879 + $0x8] sm:$0xf]
        %v1407 = vld [vmem:[%s879 + $0xc] sm:$0xf]
        %v1408 = vld [vmem:[%s882] sm:$0x1]
        %v1410 = vperm.slane %v1408, 0
        %v1416 = vunpack.c.l.b16 %v1404
        %v1417 = vunpack.c.l.b16 %v1405
        %v1418 = vunpack.c.l.b16 %v1406
        %v1419 = vunpack.c.l.b16 %v1407
        %v1420 = vpack.c.b16 %v1417, %v1416
        %v1421 = vpack.c.b16 %v1419, %v1418
        %v1425 = vsel %vm998, %v1403, 0
        %1427 = vmatpush.bf16.msra.mxu0 0
        %1428 = vmatpush.bf16.msra.mxu0 0
        %1429 = vmatpush.bf16.msra.mxu0 0
        %1430 = vmatpush.bf16.msra.mxu0 0
        %1431 = vmatpush.bf16.msra.mxu0 0
        %1432 = vmatpush.bf16.msra.mxu0 0
        %1433 = vmatpush.bf16.msra.mxu0 %v1421
        %1434 = vmatpush.bf16.msra.mxu0 %v1420
        %1435 = vmatmul.bf16.gmra.mxu0 %v1425
        %v1436 = vpop.f32.mrf.mxu0
        %v1437 = vadd.f32 %v1410, %v1436
        %v1438 = vpop.f32.mrf.mxu0
        %1439 = vdwg.mxu0
        %v1440 = vmul.f32 %v1437, %v1437
        %v1441 = vmul.f32 %v1437, %v1440
        %v1442 = vmul.f32 %v1441, 0.044715
        %v1443 = vadd.f32 %v1437, %v1442
        %v1444 = vmul.f32 %v1443, 0.7978846
        %v1445 = vtanh.pop %v1444
        %v1446 = vadd.f32 %v1445, 1.0
        %v1447 = vmul.f32 %v1446, 0.5
        %v1448 = vmul.f32 %v1437, %v1447
        %v1449 = vpack.c.bf16 %v1448, %v1448
        %v1450 = vld [vmem:[%s887] sm:$0xf]
        %v1451 = vld [vmem:[%s887 + $0x4] sm:$0xf]
        %v1452 = vld [vmem:[%s887 + $0x8] sm:$0xf]
        %v1453 = vld [vmem:[%s887 + $0xc] sm:$0xf]
        %v1454 = vld [vmem:[%s887 + $0x10] sm:$0xf]
        %v1455 = vld [vmem:[%s887 + $0x14] sm:$0xf]
        %v1456 = vld [vmem:[%s887 + $0x18] sm:$0xf]
        %v1457 = vld [vmem:[%s887 + $0x1c] sm:$0xf]
        %v1458 = vld [vmem:[%s887 + $0x20] sm:$0xf]
        %v1459 = vld [vmem:[%s887 + $0x24] sm:$0xf]
        %v1460 = vld [vmem:[%s887 + $0x28] sm:$0xf]
        %v1461 = vld [vmem:[%s887 + $0x2c] sm:$0xf]
        %v1462 = vld [vmem:[%s887 + $0x30] sm:$0xf]
        %v1463 = vld [vmem:[%s887 + $0x34] sm:$0xf]
        %v1464 = vld [vmem:[%s887 + $0x38] sm:$0xf]
        %v1465 = vld [vmem:[%s887 + $0x3c] sm:$0xf]
        %v1466 = vld [vmem:[%s890] sm:$0x1]
        %v1468 = vperm.slane %v1466, 0
        %v1486 = vunpack.c.l.b16 %v1450
        %v1487 = vunpack.c.l.b16 %v1451
        %v1488 = vunpack.c.l.b16 %v1452
        %v1489 = vunpack.c.l.b16 %v1453
        %v1490 = vunpack.c.l.b16 %v1454
        %v1491 = vunpack.c.l.b16 %v1455
        %v1492 = vunpack.c.l.b16 %v1456
        %v1493 = vunpack.c.l.b16 %v1457
        %v1494 = vunpack.c.l.b16 %v1458
        %v1495 = vunpack.c.l.b16 %v1459
        %v1496 = vunpack.c.l.b16 %v1460
        %v1497 = vunpack.c.l.b16 %v1461
        %v1498 = vunpack.c.l.b16 %v1462
        %v1499 = vunpack.c.l.b16 %v1463
        %v1500 = vunpack.c.l.b16 %v1464
        %v1501 = vunpack.c.l.b16 %v1465
        %v1502 = vpack.c.b16 %v1487, %v1486
        %v1503 = vpack.c.b16 %v1489, %v1488
        %v1504 = vpack.c.b16 %v1491, %v1490
        %v1505 = vpack.c.b16 %v1493, %v1492
        %v1506 = vpack.c.b16 %v1495, %v1494
        %v1507 = vpack.c.b16 %v1497, %v1496
        %v1508 = vpack.c.b16 %v1499, %v1498
        %v1509 = vpack.c.b16 %v1501, %v1500
        %1518 = vmatpush.bf16.msra.mxu0 %v1509
        %1519 = vmatpush.bf16.msra.mxu0 %v1508
        %1520 = vmatpush.bf16.msra.mxu0 %v1507
        %1521 = vmatpush.bf16.msra.mxu0 %v1506
        %1522 = vmatpush.bf16.msra.mxu0 %v1505
        %1523 = vmatpush.bf16.msra.mxu0 %v1504
        %1524 = vmatpush.bf16.msra.mxu0 %v1503
        %1525 = vmatpush.bf16.msra.mxu0 %v1502
        %1526 = vmatmul.bf16.gmra.mxu0 %v1449
        %v1527 = vpop.f32.mrf.mxu0
        %v1528 = vadd.f32 %v1468, %v1527
        %v1529 = vpop.f32.mrf.mxu0
        %1530 = vdwg.mxu0
        %v1531 = vadd.f32 %v1370, %v1528
        %1532 = vst.msk [vmem:[#allocation2] sm:$0x1f] %vm939, %v1531
        %p1533 = scmp.eq.s32.totalorder %s42, 1
        // Predicated region
        $region109: #{tpu_custom_call.1} parent=103 // pred_check
          %p1534 = pneg %p1533
        $region110: #{tpu_custom_call.1} parent=103 // pred_check_branch
          %1536 = sbr.rel (%p1534) target = $region112
        $region111: #{tpu_custom_call.1} parent=103 // pred_region
          %v1537 = vld [vmem:[%s17] sm:$0x1]
          %v1538 = vld [vmem:[%s18] sm:$0x1]
          %vm1539 = vcmask 253952
          %v1540 = vsel %vm1539, %v1531, 0.0
          %1541 = vadd.xlane.f32.xlu0 %v1540
          %v1542 = vpop.xlane.xlu0 %1541
          %v1543 = vmul.f32 %v1542, %v949
          %v1544 = vsub.f32 %v1531, %v1543
          %v1545 = vmul.f32 %v1544, %v1544
          %v1546 = vsel %vm1539, %v1545, 0.0
          %1547 = vadd.xlane.f32.xlu0 %v1546
          %v1548 = vpop.xlane.xlu0 %1547
          %v1549 = vmul.f32 %v1548, %v949
          %v1550 = vadd.f32 %v1549, 1e-05
          %v1551 = vrsqrt.pop %v1550
          %v1552 = vmul.f32 %v1551, %v1550
          %v1553 = vmul.f32 %v1552, %v1551
          %v1554 = vmul.f32 0.5, %v1553
          %v1555 = vsub.f32 1.5, %v1554
          %v1556 = vmul.f32 %v1551, %v1555
          %vm1557 = vweird.f32 %v1550
          %vm1558 = vweird.f32 %v1551
          %vm1559 = vmor %vm1557, %vm1558
          %v1560 = vsel %vm1559, %v1551, %v1556
          %v1561 = vmul.f32 %v1544, %v1560
          %v1562 = vmul.f32 %v1561, %v1537
          %v1563 = vadd.f32 %v1562, %v1538
          %v1564 = vpack.c.bf16 %v1563, %v1563
          %v1565 = vld [vmem:[%s19] sm:$0xf]
          %v1566 = vld [vmem:[%s19 + $0x4] sm:$0xf]
          %v1567 = vld [vmem:[%s19 + $0x8] sm:$0xf]
          %v1568 = vld [vmem:[%s19 + $0xc] sm:$0xf]
          %v1569 = vld [vmem:[%s20] sm:$0x1]
          %v1574 = vunpack.c.l.b16 %v1565
          %v1575 = vunpack.c.l.b16 %v1566
          %v1576 = vunpack.c.l.b16 %v1567
          %v1577 = vunpack.c.l.b16 %v1568
          %v1578 = vpack.c.b16 %v1575, %v1574
          %v1579 = vpack.c.b16 %v1577, %v1576
          %v1583 = vsel %vm998, %v1564, 0
          %1585 = vmatpush.bf16.msra.mxu0 0
          %1586 = vmatpush.bf16.msra.mxu0 0
          %1587 = vmatpush.bf16.msra.mxu0 0
          %1588 = vmatpush.bf16.msra.mxu0 0
          %1589 = vmatpush.bf16.msra.mxu0 0
          %1590 = vmatpush.bf16.msra.mxu0 0
          %1591 = vmatpush.bf16.msra.mxu0 %v1579
          %1592 = vmatpush.bf16.msra.mxu0 %v1578
          %1593 = vmatmul.bf16.gmra.mxu0 %v1583
          %v1594 = vpop.f32.mrf.mxu0
          %v1595 = vadd.f32 %v1569, %v1594
          %v1596 = vpop.f32.mrf.mxu0
          %1597 = vdwg.mxu0
          %1598 = vst [vmem:[%s842] sm:$0x1] %v1595
        $region112: #{tpu_custom_call.1} parent=103 // pred_fallthru
          _
        %s1599 = sand.u32 %s565, 1
        %s1600 = sand.u32 %s565, 1
        %s1601 = smul.addr %s1600, 32
        %s1602 = scalar_lea.vmem [#allocation3], %s1601
        %s1603 = sand.u32 %s591, 1
        %s1604 = scalar_lea.sflag [#allocation5], %s1603
        %s1605 = sand.u32 %s591, 1
        %s1606 = scalar_lea.vmem [#allocation4], %s1605
        // Predicated region
        $region113: #{tpu_custom_call.1} parent=103 // pred_check
          %p1607 = pneg %p575
        $region114: #{tpu_custom_call.1} parent=103 // pred_check_branch
          %1609 = sbr.rel (%p1607) target = $region116
        $region115: #{tpu_custom_call.1} parent=103 // pred_region
          %s1610 = smul.u32 4, %s42
          %s1611 = smul.addr %s1610, 2
          %s1612 = sadd.s32 %s41, %s1611
          %s1613 = smul.addr %s1612, 8
          %s1614 = scalar_lea.vmem %s21, %s1613
          // Predicated region
          $region117: #{tpu_custom_call.1} parent=115 // pred_check
            _
          $region118: #{tpu_custom_call.1} parent=115 // pred_check_branch
            %1616 = sbr.rel (0) target = $region120
          $region119: #{tpu_custom_call.1} parent=115 // pred_region
            // Predicated region
            $region121: #{tpu_custom_call.1} parent=119 // pred_check
              _
            $region122: #{tpu_custom_call.1} parent=119 // pred_check_branch
              %1618 = sbr.rel (0) target = $region124
            $region123: #{tpu_custom_call.1} parent=119 // pred_region
              // Predicated region
              $region136: #{tpu_custom_call.1} parent=123 // pred_check
                _
              $region137: #{tpu_custom_call.1} parent=123 // pred_check_branch
                %1640 = sbr.rel (0) target = $region139
              $region138: #{tpu_custom_call.1} parent=123 // pred_region
                loop: start=0, step=1, limit=1
                $region140: #{tpu_custom_call.1} parent=138 // loop_pre_header
                  _
                $region141: #{tpu_custom_call.1} parent=138 // loop_header
                  %s1642 = sphi 0, %s1646
                  %p1643 = scmp.ge.s32.totalorder %s1642, 1
                  %s1647 = sphi %s1602, %s1602
                  %s1648 = sphi %s1614, %s1614
                $region142: #{tpu_custom_call.1} parent=138 // loop_header_branch
                  %1645 = sbr.rel (%p1643) target = $region146
                $region143: #{tpu_custom_call.1} parent=138 // loop_body
                  %v1649 = vld [vmem:[%s1647] sm:$0xff]
                  %1650 = vst [vmem:[%s1648] sm:$0xff] %v1649
                  %v1651 = vld [vmem:[%s1647 + $0x8] sm:$0xff]
                  %1652 = vst [vmem:[%s1648 + $0x10] sm:$0xff] %v1651
                  %v1653 = vld [vmem:[%s1647 + $0x10] sm:$0xff]
                  %1654 = vst [vmem:[%s1648 + $0x20] sm:$0xff] %v1653
                  %v1655 = vld [vmem:[%s1647 + $0x18] sm:$0xff]
                  %1656 = vst [vmem:[%s1648 + $0x30] sm:$0xff] %v1655
                $region144: #{tpu_custom_call.1} parent=138 // loop_footer
                  %s1646 = sadd.s32 1, %s1642
                $region145: #{tpu_custom_call.1} parent=138 // loop_footer_branch
                  %1641 = sbr.rel target = $region141
                $region146: #{tpu_custom_call.1} parent=138 // loop_exit
                  _
              $region139: #{tpu_custom_call.1} parent=123 // pred_fallthru
                _
              // Predicated region
              $region147: #{tpu_custom_call.1} parent=123 // pred_check
                _
              $region148: #{tpu_custom_call.1} parent=123 // pred_check_branch
                %1658 = sbr.rel target = $region150
              $region149: #{tpu_custom_call.1} parent=123 // pred_region
                _
              $region150: #{tpu_custom_call.1} parent=123 // pred_fallthru
                _
            $region124: #{tpu_custom_call.1} parent=119 // pred_fallthru
              _
            // Predicated region
            $region125: #{tpu_custom_call.1} parent=119 // pred_check
              _
            $region126: #{tpu_custom_call.1} parent=119 // pred_check_branch
              %1620 = sbr.rel target = $region128
            $region127: #{tpu_custom_call.1} parent=119 // pred_region
              %s1622 = ssub.s32 256, 1
              loop: start=0, step=1, limit=1
              $region129: #{tpu_custom_call.1} parent=127 // loop_pre_header
                _
              $region130: #{tpu_custom_call.1} parent=127 // loop_header
                %s1624 = sphi 0, %s1628
                %p1625 = scmp.ge.s32.totalorder %s1624, 1
                %s1629 = sphi %s1602, %s1602
                %s1630 = sphi %s1614, %s1614
              $region131: #{tpu_custom_call.1} parent=127 // loop_header_branch
                %1627 = sbr.rel (%p1625) target = $region135
              $region132: #{tpu_custom_call.1} parent=127 // loop_body
                %v1631 = vld [vmem:[%s1629] sm:%s1622]
                %1632 = vst [vmem:[%s1630] sm:%s1622] %v1631
                %v1633 = vld [vmem:[%s1629 + $0x8] sm:%s1622]
                %1634 = vst [vmem:[%s1630 + $0x10] sm:%s1622] %v1633
                %v1635 = vld [vmem:[%s1629 + $0x10] sm:%s1622]
                %1636 = vst [vmem:[%s1630 + $0x20] sm:%s1622] %v1635
                %v1637 = vld [vmem:[%s1629 + $0x18] sm:%s1622]
                %1638 = vst [vmem:[%s1630 + $0x30] sm:%s1622] %v1637
              $region133: #{tpu_custom_call.1} parent=127 // loop_footer
                %s1628 = sadd.s32 1, %s1624
              $region134: #{tpu_custom_call.1} parent=127 // loop_footer_branch
                %1623 = sbr.rel target = $region130
              $region135: #{tpu_custom_call.1} parent=127 // loop_exit
                _
            $region128: #{tpu_custom_call.1} parent=119 // pred_fallthru
              _
          $region120: #{tpu_custom_call.1} parent=115 // pred_fallthru
            _
          %1659 = vnop
        $region116: #{tpu_custom_call.1} parent=103 // pred_fallthru
          _
        // Predicated region
        $region151: #{tpu_custom_call.1} parent=103 // pred_check
          %p1660 = pneg %p601
        $region152: #{tpu_custom_call.1} parent=103 // pred_check_branch
          %1662 = sbr.rel (%p1660) target = $region154
        $region153: #{tpu_custom_call.1} parent=103 // pred_region
          %1664 = vsyncadd %s1604, 0
          %s1665 = scalar_lea.hbm %s22, %s41
          %s1667 = sshll.u32 %s1606, 4
          %s1668 = int_to_ptr.vmem [resolvable:$true] %s1667
          %s1669 = sshll.u32 %s1665, 4
          %s1670 = int_to_ptr.hbm [resolvable:$true] %s1669
          %1672 = dma.vmem_to_hbm [thread:$0]  %s1668, 16, %s1670, %s1604
        $region154: #{tpu_custom_call.1} parent=103 // pred_fallthru
          _
      $region104: #{tpu_custom_call.1} parent=5 // pred_fallthru
        _
      %p1673 = scmp.le.s32.totalorder 2, %s32
      // Predicated region
      $region155: #{tpu_custom_call.1} parent=5 // pred_check
        %p1674 = pneg %p1673
      $region156: #{tpu_custom_call.1} parent=5 // pred_check_branch
        %1676 = sbr.rel (%p1674) target = $region158
      $region157: #{tpu_custom_call.1} parent=5 // pred_region
        %s1677 = ssub.s32 %s32, 2
        // Predicated region
        $region159: #{tpu_custom_call.1} parent=157 // pred_check
          %p1678 = pneg %p581
        $region160: #{tpu_custom_call.1} parent=157 // pred_check_branch
          %1680 = sbr.rel (%p1678) target = $region162
        $region161: #{tpu_custom_call.1} parent=157 // pred_region
          %s1681 = sand.u32 %s566, 1
          %s1682 = sand.u32 %s566, 1
          %s1683 = smul.addr %s1682, 32
          %s1684 = scalar_lea.vmem [#allocation3], %s1683
        $region162: #{tpu_custom_call.1} parent=157 // pred_fallthru
          _
        // Predicated region
        $region163: #{tpu_custom_call.1} parent=157 // pred_check
          %p1685 = pneg %p607
        $region164: #{tpu_custom_call.1} parent=157 // pred_check_branch
          %1687 = sbr.rel (%p1685) target = $region166
        $region165: #{tpu_custom_call.1} parent=157 // pred_region
          %s1688 = sand.u32 %s592, 1
          %s1689 = scalar_lea.sflag [#allocation5], %s1688
          %s1690 = sand.u32 %s592, 1
          %s1691 = scalar_lea.vmem [#allocation4], %s1690
          %1693 = dma.done %s1689, 16
        $region166: #{tpu_custom_call.1} parent=157 // pred_fallthru
          _
      $region158: #{tpu_custom_call.1} parent=5 // pred_fallthru
        _
    $region6: #{tpu_custom_call.1} parent=1 // loop_footer
      %s36 = sadd.s32 1, %s32
    $region7: #{tpu_custom_call.1} parent=1 // loop_footer_branch
      %31 = sbr.rel target = $region3
    $region8: #{tpu_custom_call.1} parent=1 // loop_exit
      _
    %1694 = vsyncpa [#allocation5], 1
    %s1695 = scalar_lea.sflag [#allocation5], 1
    %1696 = vsyncpa %s1695, 1

</llo_original>
